<compile_context>
chip_gen: v5e
topology: v5e:2x2
jax: 0.10.0
libtpu: 0.0.40
codegen_flags: <defaults>
</compile_context>

<pallas_src>
import jax
import jax.numpy as jnp
from jax.experimental import pallas as pl
from jax.experimental.pallas import tpu as pltpu


def _round_up(x, m):
    return (x + m - 1) // m * m


# ----------------------------- Pallas kernels ------------------------------


def conv_pool_stream_kernel(x_ref, w_ref, b_ref, o_ref):
    """Grid = (image, pool offset); running max over the pool-offset axis.

    x_ref: (1, K, M) bf16   transposed im2col patches for this (image, offset)
    w_ref: (Cp, K)  bf16    conv weights, Cout padded to Cp (multiple of 8)
    b_ref: (Cp, 1)  f32     conv bias (padded)
    o_ref: (Cp, M)  f32     lane-dense pooled conv output for this image
    """
    p = pl.program_id(1)
    conv = jnp.dot(w_ref[...], x_ref[0], preferred_element_type=jnp.float32)

    @pl.when(p == 0)
    def _():
        o_ref[...] = conv

    @pl.when(p > 0)
    def _():
        o_ref[...] = jnp.maximum(o_ref[...], conv)

    @pl.when(p == pl.num_programs(1) - 1)
    def _():
        o_ref[...] = jnp.maximum(o_ref[...] + b_ref[...], 0.0)


def conv_pool_vmem_kernel(x_ref, w_ref, b_ref, o_ref):
    """Whole (small) conv layer in one invocation; pool offsets unrolled.

    x_ref: (P, K, M) bf16, w_ref: (Cp, K) bf16, b_ref: (Cp, 1) f32,
    o_ref: (Cp, M) f32.
    """
    w = w_ref[...]
    m = jnp.dot(w, x_ref[0], preferred_element_type=jnp.float32)
    for p in range(1, x_ref.shape[0]):
        m = jnp.maximum(
            m, jnp.dot(w, x_ref[p], preferred_element_type=jnp.float32))
    o_ref[...] = jnp.maximum(m + b_ref[...], 0.0)


def mlp_kernel(x_ref, w1_ref, b1_ref, w2_ref, b2_ref, w3_ref, b3_ref, o_ref):
    """fc1 -> ReLU -> fc2 -> ReLU -> fc3 -> sigmoid, all in one kernel."""
    h = jnp.dot(x_ref[...], w1_ref[...], preferred_element_type=jnp.float32)
    h = jnp.maximum(h + b1_ref[...], 0.0)
    h = jnp.dot(h, w2_ref[...], preferred_element_type=jnp.float32)
    h = jnp.maximum(h + b2_ref[...], 0.0)
    z = jnp.dot(h, w3_ref[...], preferred_element_type=jnp.float32) + b3_ref[...]
    # exact reciprocal keeps the sigmoid strictly inside [0, 1]
    o_ref[...] = pl.reciprocal(1.0 + jnp.exp(-z))


# ------------------------------ host-side glue ------------------------------


def build_pool_patches(x_nhwc, k, pool):
    """im2col patches grouped by pool offset, transposed to (K, M) form.

    Returns (N, P, K, Hp*Wp) bf16 with
      P = pool*pool ordered (pi, pj),
      K = k*k*Cin  ordered (ki, kj, ci),
      last dim = pooled output spatial (hp, wp)  -> lane-dense.
    """
    N, H, W, Cin = x_nhwc.shape
    Hc, Wc = H - k + 1, W - k + 1
    Hp, Wp = Hc // pool, Wc // pool
    P = pool * pool
    x_bf16 = x_nhwc.astype(jnp.bfloat16)
    pieces = []
    for ki in range(k):
        for kj in range(k):
            s = x_bf16[:, ki:ki + Hp * pool, kj:kj + Wp * pool, :]
            s = s.reshape(N, Hp, pool, Wp, pool, Cin)
            s = s.transpose(0, 2, 4, 5, 1, 3)      # (N, pi, pj, ci, hp, wp)
            pieces.append(s.reshape(N, P, Cin, Hp * Wp))
    return jnp.concatenate(pieces, axis=2)          # (N, P, K, Hp*Wp)


def conv_weight_mats(w_oihw, b, cout_pad):
    """torch (Cout, Cin, kh, kw) -> (Cp, K) bf16 with K ordered (ki, kj, ci)."""
    Cout, Cin, kh, kw = w_oihw.shape
    K = kh * kw * Cin
    w_mat = w_oihw.transpose(0, 2, 3, 1).reshape(Cout, K)
    w_mat = jnp.pad(w_mat, ((0, cout_pad - Cout), (0, 0))).astype(jnp.bfloat16)
    b_col = jnp.pad(b, (0, cout_pad - Cout)).reshape(cout_pad, 1)
    return w_mat, b_col.astype(jnp.float32)


def conv_relu_maxpool_streamed(x_nhwc, w_oihw, b, *, k, pool):
    """Large conv block: patches streamed per (image, pool offset)."""
    N, H, W, Cin = x_nhwc.shape
    Cout = w_oihw.shape[0]
    Hp, Wp = (H - k + 1) // pool, (W - k + 1) // pool
    P, K, M = pool * pool, k * k * Cin, Hp * Wp
    Cp = _round_up(Cout, 8)

    patches = build_pool_patches(x_nhwc, k, pool).reshape(N * P, K, M)
    w_mat, b_col = conv_weight_mats(w_oihw, b, Cp)

    out = pl.pallas_call(
        conv_pool_stream_kernel,
        out_shape=jax.ShapeDtypeStruct((N * Cp, M), jnp.float32),
        grid_spec=pltpu.PrefetchScalarGridSpec(
            num_scalar_prefetch=0,
            grid=(N, P),
            in_specs=[
                pl.BlockSpec((1, K, M), lambda n, p: (n * P + p, 0, 0)),
                pl.BlockSpec((Cp, K), lambda n, p: (0, 0)),
                pl.BlockSpec((Cp, 1), lambda n, p: (0, 0)),
            ],
            out_specs=pl.BlockSpec((Cp, M), lambda n, p: (n, 0)),
        ),
        compiler_params=pltpu.CompilerParams(
            dimension_semantics=("parallel", "arbitrary")),
    )(patches, w_mat, b_col)

    out = out.reshape(N, Cp, Hp, Wp)[:, :Cout]
    return jnp.transpose(out, (0, 2, 3, 1))         # NHWC


def conv_relu_maxpool_vmem(x_nhwc, w_oihw, b, *, k, pool):
    """Small conv block: all patches VMEM-resident, single kernel invocation."""
    N, H, W, Cin = x_nhwc.shape
    Cout = w_oihw.shape[0]
    Hp, Wp = (H - k + 1) // pool, (W - k + 1) // pool
    P, K = pool * pool, k * k * Cin
    M = N * Hp * Wp
    Cp = _round_up(Cout, 8)

    patches = build_pool_patches(x_nhwc, k, pool)    # (N, P, K, Hp*Wp)
    patches = patches.transpose(1, 2, 0, 3).reshape(P, K, M)
    w_mat, b_col = conv_weight_mats(w_oihw, b, Cp)

    vmem = pl.BlockSpec(memory_space=pltpu.MemorySpace.VMEM)
    out = pl.pallas_call(
        conv_pool_vmem_kernel,
        out_shape=jax.ShapeDtypeStruct((Cp, M), jnp.float32),
        in_specs=[vmem, vmem, vmem],
        out_specs=vmem,
    )(patches, w_mat, b_col)

    out = out[:Cout].reshape(Cout, N, Hp, Wp)
    return jnp.transpose(out, (1, 2, 3, 0))          # NHWC


def mlp_forward(x, params):
    N = x.shape[0]
    vmem = pl.BlockSpec(memory_space=pltpu.MemorySpace.VMEM)
    return pl.pallas_call(
        mlp_kernel,
        out_shape=jax.ShapeDtypeStruct((N, 2), jnp.float32),
        in_specs=[vmem] * 7,
        out_specs=vmem,
    )(
        x,
        params["fc1_w"], params["fc1_b"].reshape(1, -1),
        params["fc2_w"], params["fc2_b"].reshape(1, -1),
        params["fc3_w"], params["fc3_b"].reshape(1, -1),
    )


def cnn_forward(params, x_nchw):
    x = jnp.transpose(x_nchw, (0, 2, 3, 1))          # NCHW -> NHWC

    x = conv_relu_maxpool_streamed(
        x, params["conv1_w"], params["conv1_b"], k=5, pool=5)
    x = conv_relu_maxpool_vmem(
        x, params["conv2_w"], params["conv2_b"], k=5, pool=5)
    x = conv_relu_maxpool_vmem(
        x, params["conv3_w"], params["conv3_b"], k=3, pool=2)

    N = x.shape[0]
    # torch.nn.Flatten on NCHW flattens in (c, h, w) order
    x = jnp.transpose(x, (0, 3, 1, 2)).reshape(N, -1)    # (N, 24*3*3) = (N, 216)
    return mlp_forward(x, params)


# ------------------------------ params / main -------------------------------


def init_params(key):
    ks = jax.random.split(key, 12)

    def u(k, shape, fan_in):
        bound = 1.0 / jnp.sqrt(jnp.float32(fan_in))
        return jax.random.uniform(k, shape, jnp.float32, -bound, bound)

    return {
        "conv1_w": u(ks[0], (6, 3, 5, 5), 3 * 5 * 5),
        "conv1_b": u(ks[1], (6,), 3 * 5 * 5),
        "conv2_w": u(ks[2], (12, 6, 5, 5), 6 * 5 * 5),
        "conv2_b": u(ks[3], (12,), 6 * 5 * 5),
        "conv3_w": u(ks[4], (24, 12, 3, 3), 12 * 3 * 3),
        "conv3_b": u(ks[5], (24,), 12 * 3 * 3),
        # FC weights stored directly as (in, out)
        "fc1_w": u(ks[6], (24 * 3 * 3, 64), 24 * 3 * 3),
        "fc1_b": u(ks[7], (64,), 24 * 3 * 3),
        "fc2_w": u(ks[8], (64, 16), 64),
        "fc2_b": u(ks[9], (16,), 64),
        "fc3_w": u(ks[10], (16, 2), 16),
        "fc3_b": u(ks[11], (2,), 16),
    }


if __name__ == "__main__":
    key = jax.random.PRNGKey(0)
    k_param, k_data = jax.random.split(key)

    params = init_params(k_param)
    # fc1 expects 24*3*3 features, which (given the conv/pool stack) implies a
    # 224x224 spatial input: 224 ->conv5-> 220 ->pool5-> 44 ->conv5-> 40
    # ->pool5-> 8 ->conv3-> 6 ->pool2-> 3.  Batch kept small (N=2).
    x = jax.random.normal(k_data, (2, 3, 224, 224), jnp.float32)

    out = jax.jit(cnn_forward)(params, x)
    out = jax.block_until_ready(out)

    assert out.shape == (2, 2)
    assert bool(jnp.all(jnp.isfinite(out)))
    assert bool(jnp.all((out >= 0.0) & (out <= 1.0)))  # sigmoid output
    print("KERNEL_OK")
</pallas_src>

<mosaic_0001>
module attributes {stable_mosaic.version = 11 : i64} {
  func.func @conv_pool_stream_kernel(%arg0: i32, %arg1: i32, %arg2: memref<1x75x1936xbf16, #tpu.memory_space<vmem>>, %arg3: memref<8x75xbf16, #tpu.memory_space<vmem>>, %arg4: memref<8x1xf32, #tpu.memory_space<vmem>>, %arg5: memref<8x1936xf32, #tpu.memory_space<vmem>>) attributes {dimension_semantics = [#tpu.dimension_semantics<parallel>, #tpu.dimension_semantics<arbitrary>], iteration_bounds = array<i64: 2, 25>, scalar_prefetch = 0 : i64, scratch_operands = 0 : i64, tpu.core_type = #tpu.core_type<tc>, window_params = [{transform_indices = @transform_0, window_bounds = array<i64: 1, 75, 1936>}, {pipeline_mode = #tpu.pipeline_mode<synchronous>, transform_indices = @transform_1, window_bounds = array<i64: 8, 75>}, {pipeline_mode = #tpu.pipeline_mode<synchronous>, transform_indices = @transform_2, window_bounds = array<i64: 8, 1>}, {transform_indices = @transform_3, window_bounds = array<i64: 8, 1936>}]} {
    %c0 = arith.constant 0 : index
    %c0_0 = arith.constant 0 : index
    %0 = vector.load %arg3[%c0, %c0_0] : memref<8x75xbf16, #tpu.memory_space<vmem>>, vector<8x75xbf16>
    %c0_1 = arith.constant 0 : index
    %c0_2 = arith.constant 0 : index
    %c0_3 = arith.constant 0 : index
    %1 = vector.load %arg2[%c0_1, %c0_2, %c0_3] : memref<1x75x1936xbf16, #tpu.memory_space<vmem>>, vector<1x75x1936xbf16>
    %2 = vector.shape_cast %1 : vector<1x75x1936xbf16> to vector<75x1936xbf16>
    %cst = arith.constant dense<0.000000e+00> : vector<8x1936xf32>
    %3 = tpu.matmul %0, %2, %cst {dimension_numbers = #tpu.dot_dimension_numbers<[1], [0], [0], [1], [0, 0, 1, 1], [], []>} : vector<8x75xbf16>, vector<75x1936xbf16>, vector<8x1936xf32> -> vector<8x1936xf32>
    %c0_i32 = arith.constant 0 : i32
    %4 = arith.cmpi eq, %arg1, %c0_i32 : i32
    %5 = arith.extui %4 : i1 to i32
    %c0_i32_4 = arith.constant 0 : i32
    %6 = arith.cmpi ne, %5, %c0_i32_4 : i32
    scf.if %6 {
      %c0_8 = arith.constant 0 : index
      %c0_9 = arith.constant 0 : index
      %13 = vector.load %arg5[%c0_8, %c0_9] : memref<8x1936xf32, #tpu.memory_space<vmem>>, vector<8x1936xf32>
      tpu.vector_store %arg5[%c0_8, %c0_9], %3 {strides = array<i32>} : memref<8x1936xf32, #tpu.memory_space<vmem>>, vector<8x1936xf32>,
    } else {
    }
    %c0_i32_5 = arith.constant 0 : i32
    %7 = arith.cmpi sgt, %arg1, %c0_i32_5 : i32
    %8 = arith.extui %7 : i1 to i32
    %c0_i32_6 = arith.constant 0 : i32
    %9 = arith.cmpi ne, %8, %c0_i32_6 : i32
    scf.if %9 {
      %c0_8 = arith.constant 0 : index
      %c0_9 = arith.constant 0 : index
      %13 = vector.load %arg5[%c0_8, %c0_9] : memref<8x1936xf32, #tpu.memory_space<vmem>>, vector<8x1936xf32>
      %14 = arith.maximumf %13, %3 : vector<8x1936xf32>
      %c0_10 = arith.constant 0 : index
      %c0_11 = arith.constant 0 : index
      %15 = vector.load %arg5[%c0_10, %c0_11] : memref<8x1936xf32, #tpu.memory_space<vmem>>, vector<8x1936xf32>
      tpu.vector_store %arg5[%c0_10, %c0_11], %14 {strides = array<i32>} : memref<8x1936xf32, #tpu.memory_space<vmem>>, vector<8x1936xf32>,
    } else {
    }
    %c24_i32 = arith.constant 24 : i32
    %10 = arith.cmpi eq, %arg1, %c24_i32 : i32
    %11 = arith.extui %10 : i1 to i32
    %c0_i32_7 = arith.constant 0 : i32
    %12 = arith.cmpi ne, %11, %c0_i32_7 : i32
    scf.if %12 {
      %c0_8 = arith.constant 0 : index
      %c0_9 = arith.constant 0 : index
      %13 = vector.load %arg5[%c0_8, %c0_9] : memref<8x1936xf32, #tpu.memory_space<vmem>>, vector<8x1936xf32>
      %c0_10 = arith.constant 0 : index
      %c0_11 = arith.constant 0 : index
      %14 = vector.load %arg4[%c0_10, %c0_11] : memref<8x1xf32, #tpu.memory_space<vmem>>, vector<8x1xf32>
      %15 = vector.broadcast %14 : vector<8x1xf32> to vector<8x1936xf32>
      %16 = arith.addf %13, %15 : vector<8x1936xf32>
      %cst_12 = arith.constant 0.000000e+00 : f32
      %17 = vector.broadcast %cst_12 : f32 to vector<8x1936xf32>
      %18 = arith.maximumf %16, %17 : vector<8x1936xf32>
      %c0_13 = arith.constant 0 : index
      %c0_14 = arith.constant 0 : index
      %19 = vector.load %arg5[%c0_13, %c0_14] : memref<8x1936xf32, #tpu.memory_space<vmem>>, vector<8x1936xf32>
      tpu.vector_store %arg5[%c0_13, %c0_14], %18 {strides = array<i32>} : memref<8x1936xf32, #tpu.memory_space<vmem>>, vector<8x1936xf32>,
    } else {
    }
    return
  }
  func.func @transform_0(%arg0: i32, %arg1: i32) -> (i32, i32, i32) {
    %c25_i32 = arith.constant 25 : i32
    %0 = arith.muli %arg0, %c25_i32 : i32
    %1 = arith.addi %0, %arg1 : i32
    %c0_i32 = arith.constant 0 : i32
    %c0_i32_0 = arith.constant 0 : i32
    %c0_i32_1 = arith.constant 0 : i32
    return %1, %c0_i32, %c0_i32_0 : i32, i32, i32
  }
  func.func @transform_1(%arg0: i32, %arg1: i32) -> (i32, i32) {
    %c0_i32 = arith.constant 0 : i32
    %c0_i32_0 = arith.constant 0 : i32
    %c0_i32_1 = arith.constant 0 : i32
    return %c0_i32, %c0_i32_0 : i32, i32
  }
  func.func @transform_2(%arg0: i32, %arg1: i32) -> (i32, i32) {
    %c0_i32 = arith.constant 0 : i32
    %c0_i32_0 = arith.constant 0 : i32
    %c0_i32_1 = arith.constant 0 : i32
    return %c0_i32, %c0_i32_0 : i32, i32
  }
  func.func @transform_3(%arg0: i32, %arg1: i32) -> (i32, i32) {
    %c0_i32 = arith.constant 0 : i32
    %c0_i32_0 = arith.constant 0 : i32
    return %arg0, %c0_i32 : i32, i32
  }
}

module attributes {stable_mosaic.version = 11 : i64} {
  func.func @conv_pool_vmem_kernel(%arg0: memref<25x150x128xbf16, #tpu.memory_space<vmem>>, %arg1: memref<16x150xbf16, #tpu.memory_space<vmem>>, %arg2: memref<16x1xf32, #tpu.memory_space<vmem>>, %arg3: memref<16x128xf32, #tpu.memory_space<vmem>>) attributes {dimension_semantics = [], scalar_prefetch = 0 : i64, scratch_operands = 0 : i64, tpu.core_type = #tpu.core_type<tc>} {
    %c0 = arith.constant 0 : index
    %c0_0 = arith.constant 0 : index
    %0 = vector.load %arg1[%c0, %c0_0] : memref<16x150xbf16, #tpu.memory_space<vmem>>, vector<16x150xbf16>
    %c0_1 = arith.constant 0 : index
    %c0_2 = arith.constant 0 : index
    %c0_3 = arith.constant 0 : index
    %1 = vector.load %arg0[%c0_1, %c0_2, %c0_3] : memref<25x150x128xbf16, #tpu.memory_space<vmem>>, vector<1x150x128xbf16>
    %2 = vector.shape_cast %1 : vector<1x150x128xbf16> to vector<150x128xbf16>
    %cst = arith.constant dense<0.000000e+00> : vector<16x128xf32>
    %3 = tpu.matmul %0, %2, %cst {dimension_numbers = #tpu.dot_dimension_numbers<[1], [0], [0], [1], [0, 0, 1, 1], [], []>} : vector<16x150xbf16>, vector<150x128xbf16>, vector<16x128xf32> -> vector<16x128xf32>
    %c1 = arith.constant 1 : index
    %c0_4 = arith.constant 0 : index
    %c0_5 = arith.constant 0 : index
    %4 = vector.load %arg0[%c1, %c0_4, %c0_5] : memref<25x150x128xbf16, #tpu.memory_space<vmem>>, vector<1x150x128xbf16>
    %5 = vector.shape_cast %4 : vector<1x150x128xbf16> to vector<150x128xbf16>
    %cst_6 = arith.constant dense<0.000000e+00> : vector<16x128xf32>
    %6 = tpu.matmul %0, %5, %cst_6 {dimension_numbers = #tpu.dot_dimension_numbers<[1], [0], [0], [1], [0, 0, 1, 1], [], []>} : vector<16x150xbf16>, vector<150x128xbf16>, vector<16x128xf32> -> vector<16x128xf32>
    %7 = arith.maximumf %3, %6 : vector<16x128xf32>
    %c2 = arith.constant 2 : index
    %c0_7 = arith.constant 0 : index
    %c0_8 = arith.constant 0 : index
    %8 = vector.load %arg0[%c2, %c0_7, %c0_8] : memref<25x150x128xbf16, #tpu.memory_space<vmem>>, vector<1x150x128xbf16>
    %9 = vector.shape_cast %8 : vector<1x150x128xbf16> to vector<150x128xbf16>
    %cst_9 = arith.constant dense<0.000000e+00> : vector<16x128xf32>
    %10 = tpu.matmul %0, %9, %cst_9 {dimension_numbers = #tpu.dot_dimension_numbers<[1], [0], [0], [1], [0, 0, 1, 1], [], []>} : vector<16x150xbf16>, vector<150x128xbf16>, vector<16x128xf32> -> vector<16x128xf32>
    %11 = arith.maximumf %7, %10 : vector<16x128xf32>
    %c3 = arith.constant 3 : index
    %c0_10 = arith.constant 0 : index
    %c0_11 = arith.constant 0 : index
    %12 = vector.load %arg0[%c3, %c0_10, %c0_11] : memref<25x150x128xbf16, #tpu.memory_space<vmem>>, vector<1x150x128xbf16>
    %13 = vector.shape_cast %12 : vector<1x150x128xbf16> to vector<150x128xbf16>
    %cst_12 = arith.constant dense<0.000000e+00> : vector<16x128xf32>
    %14 = tpu.matmul %0, %13, %cst_12 {dimension_numbers = #tpu.dot_dimension_numbers<[1], [0], [0], [1], [0, 0, 1, 1], [], []>} : vector<16x150xbf16>, vector<150x128xbf16>, vector<16x128xf32> -> vector<16x128xf32>
    %15 = arith.maximumf %11, %14 : vector<16x128xf32>
    %c4 = arith.constant 4 : index
    %c0_13 = arith.constant 0 : index
    %c0_14 = arith.constant 0 : index
    %16 = vector.load %arg0[%c4, %c0_13, %c0_14] : memref<25x150x128xbf16, #tpu.memory_space<vmem>>, vector<1x150x128xbf16>
    %17 = vector.shape_cast %16 : vector<1x150x128xbf16> to vector<150x128xbf16>
    %cst_15 = arith.constant dense<0.000000e+00> : vector<16x128xf32>
    %18 = tpu.matmul %0, %17, %cst_15 {dimension_numbers = #tpu.dot_dimension_numbers<[1], [0], [0], [1], [0, 0, 1, 1], [], []>} : vector<16x150xbf16>, vector<150x128xbf16>, vector<16x128xf32> -> vector<16x128xf32>
    %19 = arith.maximumf %15, %18 : vector<16x128xf32>
    %c5 = arith.constant 5 : index
    %c0_16 = arith.constant 0 : index
    %c0_17 = arith.constant 0 : index
    %20 = vector.load %arg0[%c5, %c0_16, %c0_17] : memref<25x150x128xbf16, #tpu.memory_space<vmem>>, vector<1x150x128xbf16>
    %21 = vector.shape_cast %20 : vector<1x150x128xbf16> to vector<150x128xbf16>
    %cst_18 = arith.constant dense<0.000000e+00> : vector<16x128xf32>
    %22 = tpu.matmul %0, %21, %cst_18 {dimension_numbers = #tpu.dot_dimension_numbers<[1], [0], [0], [1], [0, 0, 1, 1], [], []>} : vector<16x150xbf16>, vector<150x128xbf16>, vector<16x128xf32> -> vector<16x128xf32>
    %23 = arith.maximumf %19, %22 : vector<16x128xf32>
    %c6 = arith.constant 6 : index
    %c0_19 = arith.constant 0 : index
    %c0_20 = arith.constant 0 : index
    %24 = vector.load %arg0[%c6, %c0_19, %c0_20] : memref<25x150x128xbf16, #tpu.memory_space<vmem>>, vector<1x150x128xbf16>
    %25 = vector.shape_cast %24 : vector<1x150x128xbf16> to vector<150x128xbf16>
    %cst_21 = arith.constant dense<0.000000e+00> : vector<16x128xf32>
    %26 = tpu.matmul %0, %25, %cst_21 {dimension_numbers = #tpu.dot_dimension_numbers<[1], [0], [0], [1], [0, 0, 1, 1], [], []>} : vector<16x150xbf16>, vector<150x128xbf16>, vector<16x128xf32> -> vector<16x128xf32>
    %27 = arith.maximumf %23, %26 : vector<16x128xf32>
    %c7 = arith.constant 7 : index
    %c0_22 = arith.constant 0 : index
    %c0_23 = arith.constant 0 : index
    %28 = vector.load %arg0[%c7, %c0_22, %c0_23] : memref<25x150x128xbf16, #tpu.memory_space<vmem>>, vector<1x150x128xbf16>
    %29 = vector.shape_cast %28 : vector<1x150x128xbf16> to vector<150x128xbf16>
    %cst_24 = arith.constant dense<0.000000e+00> : vector<16x128xf32>
    %30 = tpu.matmul %0, %29, %cst_24 {dimension_numbers = #tpu.dot_dimension_numbers<[1], [0], [0], [1], [0, 0, 1, 1], [], []>} : vector<16x150xbf16>, vector<150x128xbf16>, vector<16x128xf32> -> vector<16x128xf32>
    %31 = arith.maximumf %27, %30 : vector<16x128xf32>
    %c8 = arith.constant 8 : index
    %c0_25 = arith.constant 0 : index
    %c0_26 = arith.constant 0 : index
    %32 = vector.load %arg0[%c8, %c0_25, %c0_26] : memref<25x150x128xbf16, #tpu.memory_space<vmem>>, vector<1x150x128xbf16>
    %33 = vector.shape_cast %32 : vector<1x150x128xbf16> to vector<150x128xbf16>
    %cst_27 = arith.constant dense<0.000000e+00> : vector<16x128xf32>
    %34 = tpu.matmul %0, %33, %cst_27 {dimension_numbers = #tpu.dot_dimension_numbers<[1], [0], [0], [1], [0, 0, 1, 1], [], []>} : vector<16x150xbf16>, vector<150x128xbf16>, vector<16x128xf32> -> vector<16x128xf32>
    %35 = arith.maximumf %31, %34 : vector<16x128xf32>
    %c9 = arith.constant 9 : index
    %c0_28 = arith.constant 0 : index
    %c0_29 = arith.constant 0 : index
    %36 = vector.load %arg0[%c9, %c0_28, %c0_29] : memref<25x150x128xbf16, #tpu.memory_space<vmem>>, vector<1x150x128xbf16>
    %37 = vector.shape_cast %36 : vector<1x150x128xbf16> to vector<150x128xbf16>
    %cst_30 = arith.constant dense<0.000000e+00> : vector<16x128xf32>
    %38 = tpu.matmul %0, %37, %cst_30 {dimension_numbers = #tpu.dot_dimension_numbers<[1], [0], [0], [1], [0, 0, 1, 1], [], []>} : vector<16x150xbf16>, vector<150x128xbf16>, vector<16x128xf32> -> vector<16x128xf32>
    %39 = arith.maximumf %35, %38 : vector<16x128xf32>
    %c10 = arith.constant 10 : index
    %c0_31 = arith.constant 0 : index
    %c0_32 = arith.constant 0 : index
    %40 = vector.load %arg0[%c10, %c0_31, %c0_32] : memref<25x150x128xbf16, #tpu.memory_space<vmem>>, vector<1x150x128xbf16>
    %41 = vector.shape_cast %40 : vector<1x150x128xbf16> to vector<150x128xbf16>
    %cst_33 = arith.constant dense<0.000000e+00> : vector<16x128xf32>
    %42 = tpu.matmul %0, %41, %cst_33 {dimension_numbers = #tpu.dot_dimension_numbers<[1], [0], [0], [1], [0, 0, 1, 1], [], []>} : vector<16x150xbf16>, vector<150x128xbf16>, vector<16x128xf32> -> vector<16x128xf32>
    %43 = arith.maximumf %39, %42 : vector<16x128xf32>
    %c11 = arith.constant 11 : index
    %c0_34 = arith.constant 0 : index
    %c0_35 = arith.constant 0 : index
    %44 = vector.load %arg0[%c11, %c0_34, %c0_35] : memref<25x150x128xbf16, #tpu.memory_space<vmem>>, vector<1x150x128xbf16>
    %45 = vector.shape_cast %44 : vector<1x150x128xbf16> to vector<150x128xbf16>
    %cst_36 = arith.constant dense<0.000000e+00> : vector<16x128xf32>
    %46 = tpu.matmul %0, %45, %cst_36 {dimension_numbers = #tpu.dot_dimension_numbers<[1], [0], [0], [1], [0, 0, 1, 1], [], []>} : vector<16x150xbf16>, vector<150x128xbf16>, vector<16x128xf32> -> vector<16x128xf32>
    %47 = arith.maximumf %43, %46 : vector<16x128xf32>
    %c12 = arith.constant 12 : index
    %c0_37 = arith.constant 0 : index
    %c0_38 = arith.constant 0 : index
    %48 = vector.load %arg0[%c12, %c0_37, %c0_38] : memref<25x150x128xbf16, #tpu.memory_space<vmem>>, vector<1x150x128xbf16>
    %49 = vector.shape_cast %48 : vector<1x150x128xbf16> to vector<150x128xbf16>
    %cst_39 = arith.constant dense<0.000000e+00> : vector<16x128xf32>
    %50 = tpu.matmul %0, %49, %cst_39 {dimension_numbers = #tpu.dot_dimension_numbers<[1], [0], [0], [1], [0, 0, 1, 1], [], []>} : vector<16x150xbf16>, vector<150x128xbf16>, vector<16x128xf32> -> vector<16x128xf32>
    %51 = arith.maximumf %47, %50 : vector<16x128xf32>
    %c13 = arith.constant 13 : index
    %c0_40 = arith.constant 0 : index
    %c0_41 = arith.constant 0 : index
    %52 = vector.load %arg0[%c13, %c0_40, %c0_41] : memref<25x150x128xbf16, #tpu.memory_space<vmem>>, vector<1x150x128xbf16>
    %53 = vector.shape_cast %52 : vector<1x150x128xbf16> to vector<150x128xbf16>
    %cst_42 = arith.constant dense<0.000000e+00> : vector<16x128xf32>
    %54 = tpu.matmul %0, %53, %cst_42 {dimension_numbers = #tpu.dot_dimension_numbers<[1], [0], [0], [1], [0, 0, 1, 1], [], []>} : vector<16x150xbf16>, vector<150x128xbf16>, vector<16x128xf32> -> vector<16x128xf32>
    %55 = arith.maximumf %51, %54 : vector<16x128xf32>
    %c14 = arith.constant 14 : index
    %c0_43 = arith.constant 0 : index
    %c0_44 = arith.constant 0 : index
    %56 = vector.load %arg0[%c14, %c0_43, %c0_44] : memref<25x150x128xbf16, #tpu.memory_space<vmem>>, vector<1x150x128xbf16>
    %57 = vector.shape_cast %56 : vector<1x150x128xbf16> to vector<150x128xbf16>
    %cst_45 = arith.constant dense<0.000000e+00> : vector<16x128xf32>
    %58 = tpu.matmul %0, %57, %cst_45 {dimension_numbers = #tpu.dot_dimension_numbers<[1], [0], [0], [1], [0, 0, 1, 1], [], []>} : vector<16x150xbf16>, vector<150x128xbf16>, vector<16x128xf32> -> vector<16x128xf32>
    %59 = arith.maximumf %55, %58 : vector<16x128xf32>
    %c15 = arith.constant 15 : index
    %c0_46 = arith.constant 0 : index
    %c0_47 = arith.constant 0 : index
    %60 = vector.load %arg0[%c15, %c0_46, %c0_47] : memref<25x150x128xbf16, #tpu.memory_space<vmem>>, vector<1x150x128xbf16>
    %61 = vector.shape_cast %60 : vector<1x150x128xbf16> to vector<150x128xbf16>
    %cst_48 = arith.constant dense<0.000000e+00> : vector<16x128xf32>
    %62 = tpu.matmul %0, %61, %cst_48 {dimension_numbers = #tpu.dot_dimension_numbers<[1], [0], [0], [1], [0, 0, 1, 1], [], []>} : vector<16x150xbf16>, vector<150x128xbf16>, vector<16x128xf32> -> vector<16x128xf32>
    %63 = arith.maximumf %59, %62 : vector<16x128xf32>
    %c16 = arith.constant 16 : index
    %c0_49 = arith.constant 0 : index
    %c0_50 = arith.constant 0 : index
    %64 = vector.load %arg0[%c16, %c0_49, %c0_50] : memref<25x150x128xbf16, #tpu.memory_space<vmem>>, vector<1x150x128xbf16>
    %65 = vector.shape_cast %64 : vector<1x150x128xbf16> to vector<150x128xbf16>
    %cst_51 = arith.constant dense<0.000000e+00> : vector<16x128xf32>
    %66 = tpu.matmul %0, %65, %cst_51 {dimension_numbers = #tpu.dot_dimension_numbers<[1], [0], [0], [1], [0, 0, 1, 1], [], []>} : vector<16x150xbf16>, vector<150x128xbf16>, vector<16x128xf32> -> vector<16x128xf32>
    %67 = arith.maximumf %63, %66 : vector<16x128xf32>
    %c17 = arith.constant 17 : index
    %c0_52 = arith.constant 0 : index
    %c0_53 = arith.constant 0 : index
    %68 = vector.load %arg0[%c17, %c0_52, %c0_53] : memref<25x150x128xbf16, #tpu.memory_space<vmem>>, vector<1x150x128xbf16>
    %69 = vector.shape_cast %68 : vector<1x150x128xbf16> to vector<150x128xbf16>
    %cst_54 = arith.constant dense<0.000000e+00> : vector<16x128xf32>
    %70 = tpu.matmul %0, %69, %cst_54 {dimension_numbers = #tpu.dot_dimension_numbers<[1], [0], [0], [1], [0, 0, 1, 1], [], []>} : vector<16x150xbf16>, vector<150x128xbf16>, vector<16x128xf32> -> vector<16x128xf32>
    %71 = arith.maximumf %67, %70 : vector<16x128xf32>
    %c18 = arith.constant 18 : index
    %c0_55 = arith.constant 0 : index
    %c0_56 = arith.constant 0 : index
    %72 = vector.load %arg0[%c18, %c0_55, %c0_56] : memref<25x150x128xbf16, #tpu.memory_space<vmem>>, vector<1x150x128xbf16>
    %73 = vector.shape_cast %72 : vector<1x150x128xbf16> to vector<150x128xbf16>
    %cst_57 = arith.constant dense<0.000000e+00> : vector<16x128xf32>
    %74 = tpu.matmul %0, %73, %cst_57 {dimension_numbers = #tpu.dot_dimension_numbers<[1], [0], [0], [1], [0, 0, 1, 1], [], []>} : vector<16x150xbf16>, vector<150x128xbf16>, vector<16x128xf32> -> vector<16x128xf32>
    %75 = arith.maximumf %71, %74 : vector<16x128xf32>
    %c19 = arith.constant 19 : index
    %c0_58 = arith.constant 0 : index
    %c0_59 = arith.constant 0 : index
    %76 = vector.load %arg0[%c19, %c0_58, %c0_59] : memref<25x150x128xbf16, #tpu.memory_space<vmem>>, vector<1x150x128xbf16>
    %77 = vector.shape_cast %76 : vector<1x150x128xbf16> to vector<150x128xbf16>
    %cst_60 = arith.constant dense<0.000000e+00> : vector<16x128xf32>
    %78 = tpu.matmul %0, %77, %cst_60 {dimension_numbers = #tpu.dot_dimension_numbers<[1], [0], [0], [1], [0, 0, 1, 1], [], []>} : vector<16x150xbf16>, vector<150x128xbf16>, vector<16x128xf32> -> vector<16x128xf32>
    %79 = arith.maximumf %75, %78 : vector<16x128xf32>
    %c20 = arith.constant 20 : index
    %c0_61 = arith.constant 0 : index
    %c0_62 = arith.constant 0 : index
    %80 = vector.load %arg0[%c20, %c0_61, %c0_62] : memref<25x150x128xbf16, #tpu.memory_space<vmem>>, vector<1x150x128xbf16>
    %81 = vector.shape_cast %80 : vector<1x150x128xbf16> to vector<150x128xbf16>
    %cst_63 = arith.constant dense<0.000000e+00> : vector<16x128xf32>
    %82 = tpu.matmul %0, %81, %cst_63 {dimension_numbers = #tpu.dot_dimension_numbers<[1], [0], [0], [1], [0, 0, 1, 1], [], []>} : vector<16x150xbf16>, vector<150x128xbf16>, vector<16x128xf32> -> vector<16x128xf32>
    %83 = arith.maximumf %79, %82 : vector<16x128xf32>
    %c21 = arith.constant 21 : index
    %c0_64 = arith.constant 0 : index
    %c0_65 = arith.constant 0 : index
    %84 = vector.load %arg0[%c21, %c0_64, %c0_65] : memref<25x150x128xbf16, #tpu.memory_space<vmem>>, vector<1x150x128xbf16>
    %85 = vector.shape_cast %84 : vector<1x150x128xbf16> to vector<150x128xbf16>
    %cst_66 = arith.constant dense<0.000000e+00> : vector<16x128xf32>
    %86 = tpu.matmul %0, %85, %cst_66 {dimension_numbers = #tpu.dot_dimension_numbers<[1], [0], [0], [1], [0, 0, 1, 1], [], []>} : vector<16x150xbf16>, vector<150x128xbf16>, vector<16x128xf32> -> vector<16x128xf32>
    %87 = arith.maximumf %83, %86 : vector<16x128xf32>
    %c22 = arith.constant 22 : index
    %c0_67 = arith.constant 0 : index
    %c0_68 = arith.constant 0 : index
    %88 = vector.load %arg0[%c22, %c0_67, %c0_68] : memref<25x150x128xbf16, #tpu.memory_space<vmem>>, vector<1x150x128xbf16>
    %89 = vector.shape_cast %88 : vector<1x150x128xbf16> to vector<150x128xbf16>
    %cst_69 = arith.constant dense<0.000000e+00> : vector<16x128xf32>
    %90 = tpu.matmul %0, %89, %cst_69 {dimension_numbers = #tpu.dot_dimension_numbers<[1], [0], [0], [1], [0, 0, 1, 1], [], []>} : vector<16x150xbf16>, vector<150x128xbf16>, vector<16x128xf32> -> vector<16x128xf32>
    %91 = arith.maximumf %87, %90 : vector<16x128xf32>
    %c23 = arith.constant 23 : index
    %c0_70 = arith.constant 0 : index
    %c0_71 = arith.constant 0 : index
    %92 = vector.load %arg0[%c23, %c0_70, %c0_71] : memref<25x150x128xbf16, #tpu.memory_space<vmem>>, vector<1x150x128xbf16>
    %93 = vector.shape_cast %92 : vector<1x150x128xbf16> to vector<150x128xbf16>
    %cst_72 = arith.constant dense<0.000000e+00> : vector<16x128xf32>
    %94 = tpu.matmul %0, %93, %cst_72 {dimension_numbers = #tpu.dot_dimension_numbers<[1], [0], [0], [1], [0, 0, 1, 1], [], []>} : vector<16x150xbf16>, vector<150x128xbf16>, vector<16x128xf32> -> vector<16x128xf32>
    %95 = arith.maximumf %91, %94 : vector<16x128xf32>
    %c24 = arith.constant 24 : index
    %c0_73 = arith.constant 0 : index
    %c0_74 = arith.constant 0 : index
    %96 = vector.load %arg0[%c24, %c0_73, %c0_74] : memref<25x150x128xbf16, #tpu.memory_space<vmem>>, vector<1x150x128xbf16>
    %97 = vector.shape_cast %96 : vector<1x150x128xbf16> to vector<150x128xbf16>
    %cst_75 = arith.constant dense<0.000000e+00> : vector<16x128xf32>
    %98 = tpu.matmul %0, %97, %cst_75 {dimension_numbers = #tpu.dot_dimension_numbers<[1], [0], [0], [1], [0, 0, 1, 1], [], []>} : vector<16x150xbf16>, vector<150x128xbf16>, vector<16x128xf32> -> vector<16x128xf32>
    %99 = arith.maximumf %95, %98 : vector<16x128xf32>
    %c0_76 = arith.constant 0 : index
    %c0_77 = arith.constant 0 : index
    %100 = vector.load %arg2[%c0_76, %c0_77] : memref<16x1xf32, #tpu.memory_space<vmem>>, vector<16x1xf32>
    %101 = vector.broadcast %100 : vector<16x1xf32> to vector<16x128xf32>
    %102 = arith.addf %99, %101 : vector<16x128xf32>
    %cst_78 = arith.constant 0.000000e+00 : f32
    %103 = vector.broadcast %cst_78 : f32 to vector<16x128xf32>
    %104 = arith.maximumf %102, %103 : vector<16x128xf32>
    %c0_79 = arith.constant 0 : index
    %c0_80 = arith.constant 0 : index
    %105 = vector.load %arg3[%c0_79, %c0_80] : memref<16x128xf32, #tpu.memory_space<vmem>>, vector<16x128xf32>
    tpu.vector_store %arg3[%c0_79, %c0_80], %104 {strides = array<i32>} : memref<16x128xf32, #tpu.memory_space<vmem>>, vector<16x128xf32>,
    return
  }
}

module attributes {stable_mosaic.version = 11 : i64} {
  func.func @conv_pool_vmem_kernel(%arg0: memref<4x108x18xbf16, #tpu.memory_space<vmem>>, %arg1: memref<24x108xbf16, #tpu.memory_space<vmem>>, %arg2: memref<24x1xf32, #tpu.memory_space<vmem>>, %arg3: memref<24x18xf32, #tpu.memory_space<vmem>>) attributes {dimension_semantics = [], scalar_prefetch = 0 : i64, scratch_operands = 0 : i64, tpu.core_type = #tpu.core_type<tc>} {
    %c0 = arith.constant 0 : index
    %c0_0 = arith.constant 0 : index
    %0 = vector.load %arg1[%c0, %c0_0] : memref<24x108xbf16, #tpu.memory_space<vmem>>, vector<24x108xbf16>
    %c0_1 = arith.constant 0 : index
    %c0_2 = arith.constant 0 : index
    %c0_3 = arith.constant 0 : index
    %1 = vector.load %arg0[%c0_1, %c0_2, %c0_3] : memref<4x108x18xbf16, #tpu.memory_space<vmem>>, vector<1x108x18xbf16>
    %2 = vector.shape_cast %1 : vector<1x108x18xbf16> to vector<108x18xbf16>
    %cst = arith.constant dense<0.000000e+00> : vector<24x18xf32>
    %3 = tpu.matmul %0, %2, %cst {dimension_numbers = #tpu.dot_dimension_numbers<[1], [0], [0], [1], [0, 0, 1, 1], [], []>} : vector<24x108xbf16>, vector<108x18xbf16>, vector<24x18xf32> -> vector<24x18xf32>
    %c1 = arith.constant 1 : index
    %c0_4 = arith.constant 0 : index
    %c0_5 = arith.constant 0 : index
    %4 = vector.load %arg0[%c1, %c0_4, %c0_5] : memref<4x108x18xbf16, #tpu.memory_space<vmem>>, vector<1x108x18xbf16>
    %5 = vector.shape_cast %4 : vector<1x108x18xbf16> to vector<108x18xbf16>
    %cst_6 = arith.constant dense<0.000000e+00> : vector<24x18xf32>
    %6 = tpu.matmul %0, %5, %cst_6 {dimension_numbers = #tpu.dot_dimension_numbers<[1], [0], [0], [1], [0, 0, 1, 1], [], []>} : vector<24x108xbf16>, vector<108x18xbf16>, vector<24x18xf32> -> vector<24x18xf32>
    %7 = arith.maximumf %3, %6 : vector<24x18xf32>
    %c2 = arith.constant 2 : index
    %c0_7 = arith.constant 0 : index
    %c0_8 = arith.constant 0 : index
    %8 = vector.load %arg0[%c2, %c0_7, %c0_8] : memref<4x108x18xbf16, #tpu.memory_space<vmem>>, vector<1x108x18xbf16>
    %9 = vector.shape_cast %8 : vector<1x108x18xbf16> to vector<108x18xbf16>
    %cst_9 = arith.constant dense<0.000000e+00> : vector<24x18xf32>
    %10 = tpu.matmul %0, %9, %cst_9 {dimension_numbers = #tpu.dot_dimension_numbers<[1], [0], [0], [1], [0, 0, 1, 1], [], []>} : vector<24x108xbf16>, vector<108x18xbf16>, vector<24x18xf32> -> vector<24x18xf32>
    %11 = arith.maximumf %7, %10 : vector<24x18xf32>
    %c3 = arith.constant 3 : index
    %c0_10 = arith.constant 0 : index
    %c0_11 = arith.constant 0 : index
    %12 = vector.load %arg0[%c3, %c0_10, %c0_11] : memref<4x108x18xbf16, #tpu.memory_space<vmem>>, vector<1x108x18xbf16>
    %13 = vector.shape_cast %12 : vector<1x108x18xbf16> to vector<108x18xbf16>
    %cst_12 = arith.constant dense<0.000000e+00> : vector<24x18xf32>
    %14 = tpu.matmul %0, %13, %cst_12 {dimension_numbers = #tpu.dot_dimension_numbers<[1], [0], [0], [1], [0, 0, 1, 1], [], []>} : vector<24x108xbf16>, vector<108x18xbf16>, vector<24x18xf32> -> vector<24x18xf32>
    %15 = arith.maximumf %11, %14 : vector<24x18xf32>
    %c0_13 = arith.constant 0 : index
    %c0_14 = arith.constant 0 : index
    %16 = vector.load %arg2[%c0_13, %c0_14] : memref<24x1xf32, #tpu.memory_space<vmem>>, vector<24x1xf32>
    %17 = vector.broadcast %16 : vector<24x1xf32> to vector<24x18xf32>
    %18 = arith.addf %15, %17 : vector<24x18xf32>
    %cst_15 = arith.constant 0.000000e+00 : f32
    %19 = vector.broadcast %cst_15 : f32 to vector<24x18xf32>
    %20 = arith.maximumf %18, %19 : vector<24x18xf32>
    %c0_16 = arith.constant 0 : index
    %c0_17 = arith.constant 0 : index
    %21 = vector.load %arg3[%c0_16, %c0_17] : memref<24x18xf32, #tpu.memory_space<vmem>>, vector<24x18xf32>
    tpu.vector_store %arg3[%c0_16, %c0_17], %20 {strides = array<i32>} : memref<24x18xf32, #tpu.memory_space<vmem>>, vector<24x18xf32>,
    return
  }
}

module attributes {stable_mosaic.version = 11 : i64} {
  func.func @mlp_kernel(%arg0: memref<2x216xf32, #tpu.memory_space<vmem>>, %arg1: memref<216x64xf32, #tpu.memory_space<vmem>>, %arg2: memref<1x64xf32, #tpu.memory_space<vmem>>, %arg3: memref<64x16xf32, #tpu.memory_space<vmem>>, %arg4: memref<1x16xf32, #tpu.memory_space<vmem>>, %arg5: memref<16x2xf32, #tpu.memory_space<vmem>>, %arg6: memref<1x2xf32, #tpu.memory_space<vmem>>, %arg7: memref<2x2xf32, #tpu.memory_space<vmem>>) attributes {dimension_semantics = [], scalar_prefetch = 0 : i64, scratch_operands = 0 : i64, tpu.core_type = #tpu.core_type<tc>} {
    %c0 = arith.constant 0 : index
    %c0_0 = arith.constant 0 : index
    %0 = vector.load %arg0[%c0, %c0_0] : memref<2x216xf32, #tpu.memory_space<vmem>>, vector<2x216xf32>
    %c0_1 = arith.constant 0 : index
    %c0_2 = arith.constant 0 : index
    %1 = vector.load %arg1[%c0_1, %c0_2] : memref<216x64xf32, #tpu.memory_space<vmem>>, vector<216x64xf32>
    %cst = arith.constant dense<0.000000e+00> : vector<2x64xf32>
    %2 = tpu.matmul %0, %1, %cst {dimension_numbers = #tpu.dot_dimension_numbers<[1], [0], [0], [1], [0, 0, 1, 1], [], []>} : vector<2x216xf32>, vector<216x64xf32>, vector<2x64xf32> -> vector<2x64xf32>
    %c0_3 = arith.constant 0 : index
    %c0_4 = arith.constant 0 : index
    %3 = vector.load %arg2[%c0_3, %c0_4] : memref<1x64xf32, #tpu.memory_space<vmem>>, vector<1x64xf32>
    %4 = vector.broadcast %3 : vector<1x64xf32> to vector<2x64xf32>
    %5 = arith.addf %2, %4 : vector<2x64xf32>
    %cst_5 = arith.constant 0.000000e+00 : f32
    %6 = vector.broadcast %cst_5 : f32 to vector<2x64xf32>
    %7 = arith.maximumf %5, %6 : vector<2x64xf32>
    %c0_6 = arith.constant 0 : index
    %c0_7 = arith.constant 0 : index
    %8 = vector.load %arg3[%c0_6, %c0_7] : memref<64x16xf32, #tpu.memory_space<vmem>>, vector<64x16xf32>
    %cst_8 = arith.constant dense<0.000000e+00> : vector<2x16xf32>
    %9 = tpu.matmul %7, %8, %cst_8 {dimension_numbers = #tpu.dot_dimension_numbers<[1], [0], [0], [1], [0, 0, 1, 1], [], []>} : vector<2x64xf32>, vector<64x16xf32>, vector<2x16xf32> -> vector<2x16xf32>
    %c0_9 = arith.constant 0 : index
    %c0_10 = arith.constant 0 : index
    %10 = vector.load %arg4[%c0_9, %c0_10] : memref<1x16xf32, #tpu.memory_space<vmem>>, vector<1x16xf32>
    %11 = vector.broadcast %10 : vector<1x16xf32> to vector<2x16xf32>
    %12 = arith.addf %9, %11 : vector<2x16xf32>
    %cst_11 = arith.constant 0.000000e+00 : f32
    %13 = vector.broadcast %cst_11 : f32 to vector<2x16xf32>
    %14 = arith.maximumf %12, %13 : vector<2x16xf32>
    %c0_12 = arith.constant 0 : index
    %c0_13 = arith.constant 0 : index
    %15 = vector.load %arg5[%c0_12, %c0_13] : memref<16x2xf32, #tpu.memory_space<vmem>>, vector<16x2xf32>
    %cst_14 = arith.constant dense<0.000000e+00> : vector<2x2xf32>
    %16 = tpu.matmul %14, %15, %cst_14 {dimension_numbers = #tpu.dot_dimension_numbers<[1], [0], [0], [1], [0, 0, 1, 1], [], []>} : vector<2x16xf32>, vector<16x2xf32>, vector<2x2xf32> -> vector<2x2xf32>
    %c0_15 = arith.constant 0 : index
    %c0_16 = arith.constant 0 : index
    %17 = vector.load %arg6[%c0_15, %c0_16] : memref<1x2xf32, #tpu.memory_space<vmem>>, vector<1x2xf32>
    %18 = vector.broadcast %17 : vector<1x2xf32> to vector<2x2xf32>
    %19 = arith.addf %16, %18 : vector<2x2xf32>
    %cst_17 = arith.constant 0.000000e+00 : f32
    %20 = vector.broadcast %cst_17 : f32 to vector<2x2xf32>
    %21 = arith.subf %20, %19 : vector<2x2xf32>
    %22 = math.exp %21 : vector<2x2xf32>
    %cst_18 = arith.constant 1.000000e+00 : f32
    %23 = vector.broadcast %cst_18 : f32 to vector<2x2xf32>
    %24 = arith.addf %23, %22 : vector<2x2xf32>
    %25 = tpu.reciprocal %24 : vector<2x2xf32> -> vector<2x2xf32>
    %c0_19 = arith.constant 0 : index
    %c0_20 = arith.constant 0 : index
    %26 = vector.load %arg7[%c0_19, %c0_20] : memref<2x2xf32, #tpu.memory_space<vmem>>, vector<2x2xf32>
    tpu.vector_store %arg7[%c0_19, %c0_20], %25 {strides = array<i32>} : memref<2x2xf32, #tpu.memory_space<vmem>>, vector<2x2xf32>,
    return
  }
}

</mosaic_0001>

<llo_original>
// kernel: cnn_forward.4
$region0: #{cnn_forward.4}
  #allocation0 [shape = 'u32[]', space=smem, size = 0x4, offset = 0x4, fixed_abs, tag = 'smem constant byte address 0x4 - core index']
  #allocation1 [shape = 'u32[72,128]{1,0:T(1,128)}', space=vmem, size = 0x9000, scoped, tag = 'internal scratch']
  %s0 = inlined_call_operand.vmem [shape: bf16[50,75,1936], index: 0, kind: input, shape index: {}]
  %s1 = inlined_call_operand.vmem [shape: bf16[8,75], index: 1, kind: input, shape index: {}]
  %s2 = inlined_call_operand.vmem [shape: f32[8,1], index: 2, kind: input, shape index: {}]
  %s3 = inlined_call_operand.vmem [shape: f32[16,1936], index: 3, kind: output, shape index: {}]
  %s4 = sld [smem:[#allocation0]]
  $region57: #{cnn_forward.4} parent=0
    _
  %s6 = ssub.s32 1, %s4
  %s7 = scalar_select 0, %s6, %s4
  loop: start=0, step=1, limit=52
  $region2: #{cnn_forward.4} parent=0 // loop_pre_header
    _
  $region3: #{cnn_forward.4} parent=0 // loop_header
    %s9 = sphi 0, %s13
    %p10 = scmp.ge.s32.totalorder %s9, 52
    %s16 = sphi 0, %s28
    %s17 = sphi 0, %s24
    %s18 = sphi 0, %s16
    %s19 = sphi 0, %s17
    %s20 = sphi 0, %s18
    %s21 = sphi 0, %s19
    %s35 = sphi 0, %s37
    %s38 = sphi 0, %s35
    %s39 = sphi 0, %s38
    %s55 = sphi 0, %s39
    %s59 = sphi 0, %s59
    %s61 = sphi 0, %s59
    %s62 = sphi 0, %s61
    %s76 = sphi 0, %s62
    %s80 = sphi 0, %s80
    %s82 = sphi 0, %s80
    %s83 = sphi 0, %s82
    %s97 = sphi 0, %s83
    %s103 = sphi 0, %s105
    %s106 = sphi 0, %s103
    %s107 = sphi 0, %s106
    %s123 = sphi 0, %s107
  $region4: #{cnn_forward.4} parent=0 // loop_header_branch
    %12 = sbr.rel (%p10) target = $region8
  $region5: #{cnn_forward.4} parent=0 // loop_body
    %s14 = ssub.s32 %s9, 1
    %s15 = ssub.s32 %s9, 2
    %s22 = sadd.s32 1, %s17
    %p23 = scmp.ge.s32.totalorder %s22, 25
    %s24 = scalar_select %p23, 0, %s22
    %s25 = sadd.s32 1, %s16
    %s26 = scalar_select %p23, %s25, %s16
    %p27 = scmp.ge.s32.totalorder %s26, 2
    %s28 = scalar_select %p27, 0, %s26
    %s29 = smul.u32 %s16, 25
    %s30 = sadd.s32 %s29, %s17
    %s31 = smul.u32 %s28, 25
    %s32 = sadd.s32 %s31, %s24
    %s33 = ssub.s32 %s30, %s32
    %p34 = scmp.eq.s32.totalorder %s33, 0
    %s36 = sadd.s32 %s35, 1
    %s37 = scalar_select %p34, %s35, %s36
    %p40 = pneg %p34
    %p41 = scmp.eq.s32.totalorder %s9, 49
    %p42 = por %p40, %p41
    %p43 = scmp.ne.s32.totalorder %s35, %s38
    %p44 = scmp.eq.s32.totalorder %s9, 0
    %p45 = por %p43, %p44
    %p46 = scmp.ne.s32.totalorder %s35, %s38
    %p47 = scmp.eq.s32.totalorder %s14, 49
    %p48 = por %p46, %p47
    %p49 = scmp.ne.s32.totalorder %s38, %s39
    %p50 = scmp.eq.s32.totalorder %s14, 0
    %p51 = por %p49, %p50
    %p52 = scmp.ne.s32.totalorder %s38, %s39
    %p53 = scmp.eq.s32.totalorder %s15, 49
    %p54 = por %p52, %p53
    %p56 = scmp.ne.s32.totalorder %s39, %s55
    %p57 = scmp.eq.s32.totalorder %s15, 0
    %p58 = por %p56, %p57
    %s60 = sadd.s32 %s59, 1
    %p63 = scmp.eq.s32.totalorder %s9, 49
    %p64 = scmp.ne.s32.totalorder %s59, %s61
    %p65 = scmp.eq.s32.totalorder %s9, 0
    %p66 = por %p64, %p65
    %p67 = scmp.ne.s32.totalorder %s59, %s61
    %p68 = scmp.eq.s32.totalorder %s14, 49
    %p69 = por %p67, %p68
    %p70 = scmp.ne.s32.totalorder %s61, %s62
    %p71 = scmp.eq.s32.totalorder %s14, 0
    %p72 = por %p70, %p71
    %p73 = scmp.ne.s32.totalorder %s61, %s62
    %p74 = scmp.eq.s32.totalorder %s15, 49
    %p75 = por %p73, %p74
    %p77 = scmp.ne.s32.totalorder %s62, %s76
    %p78 = scmp.eq.s32.totalorder %s15, 0
    %p79 = por %p77, %p78
    %s81 = sadd.s32 %s80, 1
    %p84 = scmp.eq.s32.totalorder %s9, 49
    %p85 = scmp.ne.s32.totalorder %s80, %s82
    %p86 = scmp.eq.s32.totalorder %s9, 0
    %p87 = por %p85, %p86
    %p88 = scmp.ne.s32.totalorder %s80, %s82
    %p89 = scmp.eq.s32.totalorder %s14, 49
    %p90 = por %p88, %p89
    %p91 = scmp.ne.s32.totalorder %s82, %s83
    %p92 = scmp.eq.s32.totalorder %s14, 0
    %p93 = por %p91, %p92
    %p94 = scmp.ne.s32.totalorder %s82, %s83
    %p95 = scmp.eq.s32.totalorder %s15, 49
    %p96 = por %p94, %p95
    %p98 = scmp.ne.s32.totalorder %s83, %s97
    %p99 = scmp.eq.s32.totalorder %s15, 0
    %p100 = por %p98, %p99
    %s101 = ssub.s32 %s16, %s28
    %p102 = scmp.eq.s32.totalorder %s101, 0
    %s104 = sadd.s32 %s103, 1
    %s105 = scalar_select %p102, %s103, %s104
    %p108 = pneg %p102
    %p109 = scmp.eq.s32.totalorder %s9, 49
    %p110 = por %p108, %p109
    %p111 = scmp.ne.s32.totalorder %s103, %s106
    %p112 = scmp.eq.s32.totalorder %s9, 0
    %p113 = por %p111, %p112
    %p114 = scmp.ne.s32.totalorder %s103, %s106
    %p115 = scmp.eq.s32.totalorder %s14, 49
    %p116 = por %p114, %p115
    %p117 = scmp.ne.s32.totalorder %s106, %s107
    %p118 = scmp.eq.s32.totalorder %s14, 0
    %p119 = por %p117, %p118
    %p120 = scmp.ne.s32.totalorder %s106, %s107
    %p121 = scmp.eq.s32.totalorder %s15, 49
    %p122 = por %p120, %p121
    %p124 = scmp.ne.s32.totalorder %s107, %s123
    %p125 = scmp.eq.s32.totalorder %s15, 0
    %p126 = por %p124, %p125
    %p127 = scmp.le.s32.totalorder 1, %s9
    %p128 = scmp.lt.s32.totalorder %s9, 51
    %p129 = pnand %p127, %p128
    %p130 = pneg %p129
    // Predicated region
    $region9: #{cnn_forward.4} parent=5 // pred_check
      _
    $region10: #{cnn_forward.4} parent=5 // pred_check_branch
      %132 = sbr.rel (%p129) target = $region12
    $region11: #{cnn_forward.4} parent=5 // pred_region
      %s133 = ssub.s32 %s9, 1
      // Predicated region
      $region13: #{cnn_forward.4} parent=11 // pred_check
        %p134 = pneg %p72
      $region14: #{cnn_forward.4} parent=11 // pred_check_branch
        %136 = sbr.rel (%p134) target = $region16
      $region15: #{cnn_forward.4} parent=11 // pred_region
        _
      $region16: #{cnn_forward.4} parent=11 // pred_fallthru
        _
      // Predicated region
      $region17: #{cnn_forward.4} parent=11 // pred_check
        %p137 = pneg %p93
      $region18: #{cnn_forward.4} parent=11 // pred_check_branch
        %139 = sbr.rel (%p137) target = $region20
      $region19: #{cnn_forward.4} parent=11 // pred_region
        _
      $region20: #{cnn_forward.4} parent=11 // pred_fallthru
        _
    $region12: #{cnn_forward.4} parent=5 // pred_fallthru
      _
    %p140 = scmp.lt.s32.totalorder %s9, 50
    // Predicated region
    $region21: #{cnn_forward.4} parent=5 // pred_check
      %p141 = pneg %p140
    $region22: #{cnn_forward.4} parent=5 // pred_check_branch
      %143 = sbr.rel (%p141) target = $region24
    $region23: #{cnn_forward.4} parent=5 // pred_region
      // Predicated region
      $region25: #{cnn_forward.4} parent=23 // pred_check
        %p144 = pneg %p45
      $region26: #{cnn_forward.4} parent=23 // pred_check_branch
        %146 = sbr.rel (%p144) target = $region28
      $region27: #{cnn_forward.4} parent=23 // pred_region
        %s147 = smul.u32 %s16, 25
        %s148 = sadd.s32 %s147, %s17
        %p149 = scmp.lt.s32.totalorder %s148, 49
        %s150 = scalar_select %p149, %s148, 49
        %s151 = smul.addr %s150, 160
        %s152 = smul.addr %s151, 4
        %s153 = scalar_lea.vmem %s0, %s152
        %s154 = smul.u32 %s16, 25
        %s155 = sadd.s32 %s154, %s17
      $region28: #{cnn_forward.4} parent=23 // pred_fallthru
        _
    $region24: #{cnn_forward.4} parent=5 // pred_fallthru
      _
    %p156 = scmp.le.s32.totalorder 1, %s9
    %p157 = scmp.lt.s32.totalorder %s9, 51
    %p158 = pnand %p156, %p157
    %p159 = pneg %p158
    // Predicated region
    $region29: #{cnn_forward.4} parent=5 // pred_check
      _
    $region30: #{cnn_forward.4} parent=5 // pred_check_branch
      %161 = sbr.rel (%p158) target = $region32
    $region31: #{cnn_forward.4} parent=5 // pred_region
      %s162 = ssub.s32 %s9, 1
      %s163 = smul.u32 %s18, 25
      %s164 = sadd.s32 %s163, %s19
      %p165 = scmp.lt.s32.totalorder %s164, 49
      %s166 = scalar_select %p165, %s164, 49
      %s167 = smul.addr %s166, 160
      %s168 = smul.addr %s167, 4
      %s169 = scalar_lea.vmem %s0, %s168
      %p170 = pneg %p51
      %p171 = pneg %p48
      %p172 = pneg %p72
      %p173 = pneg %p69
      %p174 = pneg %p93
      %p175 = pneg %p90
      %p176 = pneg %p119
      %p177 = pneg %p116
      %p178 = scmp.lt.s32.totalorder %s18, 1
      %s179 = scalar_select %p178, %s18, 1
      %s180 = smul.addr %s179, 16
      %s181 = smul.addr %s180, 8
      %s182 = scalar_lea.vmem %s3, %s181
      %s183 = smul.u32 %s18, 25
      %s184 = sadd.s32 %s183, %s19
      %p185 = scmp.lt.s32.totalorder %s184, 49
      %s186 = scalar_select %p185, %s184, 49
      %s187 = smul.addr %s186, 160
      %s188 = smul.addr %s187, 4
      %s189 = scalar_lea.vmem %s0, %s188
      %s190 = smul.u32 %s18, 25
      %s191 = sadd.s32 %s190, %s19
      %p192 = scmp.lt.s32.totalorder %s18, 1
      %s193 = scalar_select %p192, %s18, 1
      %s194 = smul.addr %s193, 16
      %s195 = smul.addr %s194, 8
      %s196 = scalar_lea.vmem %s3, %s195
      %v198 = vld [vmem:[%s1] sm:$0xf]
      %v199 = vld [vmem:[%s189] sm:$0xff]
      %v200 = vld [vmem:[%s189 + $0x8] sm:$0xff]
      %v201 = vld [vmem:[%s189 + $0x10] sm:$0xff]
      %v202 = vld [vmem:[%s189 + $0x18] sm:$0xff]
      %v203 = vld [vmem:[%s189 + $0x20] sm:$0xff]
      %v204 = vld [vmem:[%s189 + $0x28] sm:$0xff]
      %v205 = vld [vmem:[%s189 + $0x30] sm:$0xff]
      %v206 = vld [vmem:[%s189 + $0x38] sm:$0xff]
      %v207 = vld [vmem:[%s189 + $0x40] sm:$0xff]
      %v208 = vld [vmem:[%s189 + $0x48] sm:$0xff]
      %v209 = vld [vmem:[%s189 + $0x50] sm:$0xff]
      %v210 = vld [vmem:[%s189 + $0x58] sm:$0xff]
      %v211 = vld [vmem:[%s189 + $0x60] sm:$0xff]
      %v212 = vld [vmem:[%s189 + $0x68] sm:$0xff]
      %v213 = vld [vmem:[%s189 + $0x70] sm:$0xff]
      %v214 = vld [vmem:[%s189 + $0x78] sm:$0xff]
      %v215 = vld [vmem:[%s189 + $0x80] sm:$0xff]
      %v216 = vld [vmem:[%s189 + $0x88] sm:$0xff]
      %v217 = vld [vmem:[%s189 + $0x90] sm:$0xff]
      %v218 = vld [vmem:[%s189 + $0x98] sm:$0xff]
      %v219 = vld [vmem:[%s189 + $0xa0] sm:$0xff]
      %v220 = vld [vmem:[%s189 + $0xa8] sm:$0xff]
      %v221 = vld [vmem:[%s189 + $0xb0] sm:$0xff]
      %v222 = vld [vmem:[%s189 + $0xb8] sm:$0xff]
      %v223 = vld [vmem:[%s189 + $0xc0] sm:$0xff]
      %v224 = vld [vmem:[%s189 + $0xc8] sm:$0xff]
      %v225 = vld [vmem:[%s189 + $0xd0] sm:$0xff]
      %v226 = vld [vmem:[%s189 + $0xd8] sm:$0xff]
      %v227 = vld [vmem:[%s189 + $0xe0] sm:$0xff]
      %v228 = vld [vmem:[%s189 + $0xe8] sm:$0xff]
      %v229 = vld [vmem:[%s189 + $0xf0] sm:$0xff]
      %v230 = vld [vmem:[%s189 + $0xf8] sm:$0xff]
      %v231 = vld [vmem:[%s189 + $0x100] sm:$0xff]
      %v232 = vld [vmem:[%s189 + $0x108] sm:$0xff]
      %v233 = vld [vmem:[%s189 + $0x110] sm:$0xff]
      %v234 = vld [vmem:[%s189 + $0x118] sm:$0xff]
      %v235 = vld [vmem:[%s189 + $0x120] sm:$0xff]
      %v236 = vld [vmem:[%s189 + $0x128] sm:$0xff]
      %v237 = vld [vmem:[%s189 + $0x130] sm:$0xff]
      %v238 = vld [vmem:[%s189 + $0x138] sm:$0xff]
      %v239 = vld [vmem:[%s189 + $0x140] sm:$0xff]
      %v240 = vld [vmem:[%s189 + $0x148] sm:$0xff]
      %v241 = vld [vmem:[%s189 + $0x150] sm:$0xff]
      %v242 = vld [vmem:[%s189 + $0x158] sm:$0xff]
      %v243 = vld [vmem:[%s189 + $0x160] sm:$0xff]
      %v244 = vld [vmem:[%s189 + $0x168] sm:$0xff]
      %v245 = vld [vmem:[%s189 + $0x170] sm:$0xff]
      %v246 = vld [vmem:[%s189 + $0x178] sm:$0xff]
      %v247 = vld [vmem:[%s189 + $0x180] sm:$0xff]
      %v248 = vld [vmem:[%s189 + $0x188] sm:$0xff]
      %v249 = vld [vmem:[%s189 + $0x190] sm:$0xff]
      %v250 = vld [vmem:[%s189 + $0x198] sm:$0xff]
      %v251 = vld [vmem:[%s189 + $0x1a0] sm:$0xff]
      %v252 = vld [vmem:[%s189 + $0x1a8] sm:$0xff]
      %v253 = vld [vmem:[%s189 + $0x1b0] sm:$0xff]
      %v254 = vld [vmem:[%s189 + $0x1b8] sm:$0xff]
      %v255 = vld [vmem:[%s189 + $0x1c0] sm:$0xff]
      %v256 = vld [vmem:[%s189 + $0x1c8] sm:$0xff]
      %v257 = vld [vmem:[%s189 + $0x1d0] sm:$0xff]
      %v258 = vld [vmem:[%s189 + $0x1d8] sm:$0xff]
      %v259 = vld [vmem:[%s189 + $0x1e0] sm:$0xff]
      %v260 = vld [vmem:[%s189 + $0x1e8] sm:$0xff]
      %v261 = vld [vmem:[%s189 + $0x1f0] sm:$0xff]
      %v262 = vld [vmem:[%s189 + $0x1f8] sm:$0xff]
      %v263 = vld [vmem:[%s189 + $0x200] sm:$0xff]
      %v264 = vld [vmem:[%s189 + $0x208] sm:$0xff]
      %v265 = vld [vmem:[%s189 + $0x210] sm:$0xff]
      %v266 = vld [vmem:[%s189 + $0x218] sm:$0xff]
      %v267 = vld [vmem:[%s189 + $0x220] sm:$0xff]
      %v268 = vld [vmem:[%s189 + $0x228] sm:$0xff]
      %v269 = vld [vmem:[%s189 + $0x230] sm:$0xff]
      %v270 = vld [vmem:[%s189 + $0x238] sm:$0xff]
      %v271 = vld [vmem:[%s189 + $0x240] sm:$0x33]
      %v272 = vld [vmem:[%s189 + $0x248] sm:$0x33]
      %v273 = vld [vmem:[%s189 + $0x250] sm:$0x33]
      %v274 = vld [vmem:[%s189 + $0x258] sm:$0x33]
      %v275 = vld [vmem:[%s189 + $0x260] sm:$0x33]
      %v276 = vld [vmem:[%s189 + $0x268] sm:$0x33]
      %v277 = vld [vmem:[%s189 + $0x270] sm:$0x33]
      %v278 = vld [vmem:[%s189 + $0x278] sm:$0x33]
      %v359 = vunpack.c.l.b16 %v199
      %v360 = vunpack.c.h.b16 %v199
      %v361 = vunpack.c.l.b16 %v200
      %v362 = vunpack.c.h.b16 %v200
      %v363 = vunpack.c.l.b16 %v201
      %v364 = vunpack.c.h.b16 %v201
      %v365 = vunpack.c.l.b16 %v202
      %v366 = vunpack.c.h.b16 %v202
      %v367 = vunpack.c.l.b16 %v203
      %v368 = vunpack.c.h.b16 %v203
      %v369 = vunpack.c.l.b16 %v204
      %v370 = vunpack.c.h.b16 %v204
      %v371 = vunpack.c.l.b16 %v205
      %v372 = vunpack.c.h.b16 %v205
      %v373 = vunpack.c.l.b16 %v206
      %v374 = vunpack.c.h.b16 %v206
      %v375 = vunpack.c.l.b16 %v207
      %v376 = vunpack.c.h.b16 %v207
      %v377 = vunpack.c.l.b16 %v208
      %v378 = vunpack.c.h.b16 %v208
      %v379 = vunpack.c.l.b16 %v209
      %v380 = vunpack.c.h.b16 %v209
      %v381 = vunpack.c.l.b16 %v210
      %v382 = vunpack.c.h.b16 %v210
      %v383 = vunpack.c.l.b16 %v211
      %v384 = vunpack.c.h.b16 %v211
      %v385 = vunpack.c.l.b16 %v212
      %v386 = vunpack.c.h.b16 %v212
      %v387 = vunpack.c.l.b16 %v213
      %v388 = vunpack.c.h.b16 %v213
      %v389 = vunpack.c.l.b16 %v214
      %v390 = vunpack.c.h.b16 %v214
      %v391 = vunpack.c.l.b16 %v215
      %v392 = vunpack.c.h.b16 %v215
      %v393 = vunpack.c.l.b16 %v216
      %v394 = vunpack.c.h.b16 %v216
      %v395 = vunpack.c.l.b16 %v217
      %v396 = vunpack.c.h.b16 %v217
      %v397 = vunpack.c.l.b16 %v218
      %v398 = vunpack.c.h.b16 %v218
      %v399 = vunpack.c.l.b16 %v219
      %v400 = vunpack.c.h.b16 %v219
      %v401 = vunpack.c.l.b16 %v220
      %v402 = vunpack.c.h.b16 %v220
      %v403 = vunpack.c.l.b16 %v221
      %v404 = vunpack.c.h.b16 %v221
      %v405 = vunpack.c.l.b16 %v222
      %v406 = vunpack.c.h.b16 %v222
      %v407 = vunpack.c.l.b16 %v223
      %v408 = vunpack.c.h.b16 %v223
      %v409 = vunpack.c.l.b16 %v224
      %v410 = vunpack.c.h.b16 %v224
      %v411 = vunpack.c.l.b16 %v225
      %v412 = vunpack.c.h.b16 %v225
      %v413 = vunpack.c.l.b16 %v226
      %v414 = vunpack.c.h.b16 %v226
      %v415 = vunpack.c.l.b16 %v227
      %v416 = vunpack.c.h.b16 %v227
      %v417 = vunpack.c.l.b16 %v228
      %v418 = vunpack.c.h.b16 %v228
      %v419 = vunpack.c.l.b16 %v229
      %v420 = vunpack.c.h.b16 %v229
      %v421 = vunpack.c.l.b16 %v230
      %v422 = vunpack.c.h.b16 %v230
      %v423 = vunpack.c.l.b16 %v231
      %v424 = vunpack.c.h.b16 %v231
      %v425 = vunpack.c.l.b16 %v232
      %v426 = vunpack.c.h.b16 %v232
      %v427 = vunpack.c.l.b16 %v233
      %v428 = vunpack.c.h.b16 %v233
      %v429 = vunpack.c.l.b16 %v234
      %v430 = vunpack.c.h.b16 %v234
      %v431 = vunpack.c.l.b16 %v235
      %v432 = vunpack.c.h.b16 %v235
      %v433 = vunpack.c.l.b16 %v236
      %v434 = vunpack.c.h.b16 %v236
      %v435 = vunpack.c.l.b16 %v237
      %v436 = vunpack.c.h.b16 %v237
      %v437 = vunpack.c.l.b16 %v238
      %v438 = vunpack.c.h.b16 %v238
      %v439 = vunpack.c.l.b16 %v239
      %v440 = vunpack.c.h.b16 %v239
      %v441 = vunpack.c.l.b16 %v240
      %v442 = vunpack.c.h.b16 %v240
      %v443 = vunpack.c.l.b16 %v241
      %v444 = vunpack.c.h.b16 %v241
      %v445 = vunpack.c.l.b16 %v242
      %v446 = vunpack.c.h.b16 %v242
      %v447 = vunpack.c.l.b16 %v243
      %v448 = vunpack.c.h.b16 %v243
      %v449 = vunpack.c.l.b16 %v244
      %v450 = vunpack.c.h.b16 %v244
      %v451 = vunpack.c.l.b16 %v245
      %v452 = vunpack.c.h.b16 %v245
      %v453 = vunpack.c.l.b16 %v246
      %v454 = vunpack.c.h.b16 %v246
      %v455 = vunpack.c.l.b16 %v247
      %v456 = vunpack.c.h.b16 %v247
      %v457 = vunpack.c.l.b16 %v248
      %v458 = vunpack.c.h.b16 %v248
      %v459 = vunpack.c.l.b16 %v249
      %v460 = vunpack.c.h.b16 %v249
      %v461 = vunpack.c.l.b16 %v250
      %v462 = vunpack.c.h.b16 %v250
      %v463 = vunpack.c.l.b16 %v251
      %v464 = vunpack.c.h.b16 %v251
      %v465 = vunpack.c.l.b16 %v252
      %v466 = vunpack.c.h.b16 %v252
      %v467 = vunpack.c.l.b16 %v253
      %v468 = vunpack.c.h.b16 %v253
      %v469 = vunpack.c.l.b16 %v254
      %v470 = vunpack.c.h.b16 %v254
      %v471 = vunpack.c.l.b16 %v255
      %v472 = vunpack.c.h.b16 %v255
      %v473 = vunpack.c.l.b16 %v256
      %v474 = vunpack.c.h.b16 %v256
      %v475 = vunpack.c.l.b16 %v257
      %v476 = vunpack.c.h.b16 %v257
      %v477 = vunpack.c.l.b16 %v258
      %v478 = vunpack.c.h.b16 %v258
      %v479 = vunpack.c.l.b16 %v259
      %v480 = vunpack.c.h.b16 %v259
      %v481 = vunpack.c.l.b16 %v260
      %v482 = vunpack.c.h.b16 %v260
      %v483 = vunpack.c.l.b16 %v261
      %v484 = vunpack.c.h.b16 %v261
      %v485 = vunpack.c.l.b16 %v262
      %v486 = vunpack.c.h.b16 %v262
      %v487 = vunpack.c.l.b16 %v263
      %v488 = vunpack.c.h.b16 %v263
      %v489 = vunpack.c.l.b16 %v264
      %v490 = vunpack.c.h.b16 %v264
      %v491 = vunpack.c.l.b16 %v265
      %v492 = vunpack.c.h.b16 %v265
      %v493 = vunpack.c.l.b16 %v266
      %v494 = vunpack.c.h.b16 %v266
      %v495 = vunpack.c.l.b16 %v267
      %v496 = vunpack.c.h.b16 %v267
      %v497 = vunpack.c.l.b16 %v268
      %v498 = vunpack.c.h.b16 %v268
      %v499 = vunpack.c.l.b16 %v269
      %v500 = vunpack.c.h.b16 %v269
      %v501 = vunpack.c.l.b16 %v270
      %v502 = vunpack.c.h.b16 %v270
      %v503 = vunpack.c.l.b16 %v271
      %v504 = vunpack.c.h.b16 %v271
      %v505 = vunpack.c.l.b16 %v272
      %v506 = vunpack.c.h.b16 %v272
      %v507 = vunpack.c.l.b16 %v273
      %v508 = vunpack.c.h.b16 %v273
      %v509 = vunpack.c.l.b16 %v274
      %v510 = vunpack.c.h.b16 %v274
      %v511 = vunpack.c.l.b16 %v275
      %v512 = vunpack.c.h.b16 %v275
      %v513 = vunpack.c.l.b16 %v276
      %v514 = vunpack.c.h.b16 %v276
      %v515 = vunpack.c.l.b16 %v277
      %v516 = vunpack.c.h.b16 %v277
      %v517 = vunpack.c.l.b16 %v278
      %v518 = vunpack.c.h.b16 %v278
      %v519 = vpack.c.b16 %v375, %v359
      %v520 = vpack.c.b16 %v376, %v360
      %v521 = vpack.c.b16 %v377, %v361
      %v522 = vpack.c.b16 %v378, %v362
      %v523 = vpack.c.b16 %v379, %v363
      %v524 = vpack.c.b16 %v380, %v364
      %v525 = vpack.c.b16 %v381, %v365
      %v526 = vpack.c.b16 %v382, %v366
      %v527 = vpack.c.b16 %v383, %v367
      %v528 = vpack.c.b16 %v384, %v368
      %v529 = vpack.c.b16 %v385, %v369
      %v530 = vpack.c.b16 %v386, %v370
      %v531 = vpack.c.b16 %v387, %v371
      %v532 = vpack.c.b16 %v388, %v372
      %v533 = vpack.c.b16 %v389, %v373
      %v534 = vpack.c.b16 %v390, %v374
      %v535 = vpack.c.b16 %v407, %v391
      %v536 = vpack.c.b16 %v408, %v392
      %v537 = vpack.c.b16 %v409, %v393
      %v538 = vpack.c.b16 %v410, %v394
      %v539 = vpack.c.b16 %v411, %v395
      %v540 = vpack.c.b16 %v412, %v396
      %v541 = vpack.c.b16 %v413, %v397
      %v542 = vpack.c.b16 %v414, %v398
      %v543 = vpack.c.b16 %v415, %v399
      %v544 = vpack.c.b16 %v416, %v400
      %v545 = vpack.c.b16 %v417, %v401
      %v546 = vpack.c.b16 %v418, %v402
      %v547 = vpack.c.b16 %v419, %v403
      %v548 = vpack.c.b16 %v420, %v404
      %v549 = vpack.c.b16 %v421, %v405
      %v550 = vpack.c.b16 %v422, %v406
      %v551 = vpack.c.b16 %v439, %v423
      %v552 = vpack.c.b16 %v440, %v424
      %v553 = vpack.c.b16 %v441, %v425
      %v554 = vpack.c.b16 %v442, %v426
      %v555 = vpack.c.b16 %v443, %v427
      %v556 = vpack.c.b16 %v444, %v428
      %v557 = vpack.c.b16 %v445, %v429
      %v558 = vpack.c.b16 %v446, %v430
      %v559 = vpack.c.b16 %v447, %v431
      %v560 = vpack.c.b16 %v448, %v432
      %v561 = vpack.c.b16 %v449, %v433
      %v562 = vpack.c.b16 %v450, %v434
      %v563 = vpack.c.b16 %v451, %v435
      %v564 = vpack.c.b16 %v452, %v436
      %v565 = vpack.c.b16 %v453, %v437
      %v566 = vpack.c.b16 %v454, %v438
      %v567 = vpack.c.b16 %v471, %v455
      %v568 = vpack.c.b16 %v472, %v456
      %v569 = vpack.c.b16 %v473, %v457
      %v570 = vpack.c.b16 %v474, %v458
      %v571 = vpack.c.b16 %v475, %v459
      %v572 = vpack.c.b16 %v476, %v460
      %v573 = vpack.c.b16 %v477, %v461
      %v574 = vpack.c.b16 %v478, %v462
      %v575 = vpack.c.b16 %v479, %v463
      %v576 = vpack.c.b16 %v480, %v464
      %v577 = vpack.c.b16 %v481, %v465
      %v578 = vpack.c.b16 %v482, %v466
      %v579 = vpack.c.b16 %v483, %v467
      %v580 = vpack.c.b16 %v484, %v468
      %v581 = vpack.c.b16 %v485, %v469
      %v582 = vpack.c.b16 %v486, %v470
      %v583 = vpack.c.b16 %v503, %v487
      %v584 = vpack.c.b16 %v504, %v488
      %v585 = vpack.c.b16 %v505, %v489
      %v586 = vpack.c.b16 %v506, %v490
      %v587 = vpack.c.b16 %v507, %v491
      %v588 = vpack.c.b16 %v508, %v492
      %v589 = vpack.c.b16 %v509, %v493
      %v590 = vpack.c.b16 %v510, %v494
      %v591 = vpack.c.b16 %v511, %v495
      %v592 = vpack.c.b16 %v512, %v496
      %v593 = vpack.c.b16 %v513, %v497
      %v594 = vpack.c.b16 %v514, %v498
      %v595 = vpack.c.b16 %v515, %v499
      %v596 = vpack.c.b16 %v516, %v500
      %v597 = vpack.c.b16 %v517, %v501
      %v598 = vpack.c.b16 %v518, %v502
      %vm663 = vcmask 613376
      %v665 = vsel %vm663, %v198, 0
      %vm667 = vcmask 1044480
      %vm668 = vcmask 1045504
      %v669 = vsel %vm667, 4294967295, 65535
      %v670 = vsel %vm668, %v669, 0
      %v672 = vand.u32 %v583, %v670
      %v675 = vand.u32 %v584, %v670
      %v678 = vand.u32 %v585, %v670
      %v681 = vand.u32 %v586, %v670
      %v684 = vand.u32 %v587, %v670
      %v687 = vand.u32 %v588, %v670
      %v690 = vand.u32 %v589, %v670
      %v693 = vand.u32 %v590, %v670
      %v696 = vand.u32 %v591, %v670
      %v699 = vand.u32 %v592, %v670
      %v702 = vand.u32 %v593, %v670
      %v705 = vand.u32 %v594, %v670
      %v708 = vand.u32 %v595, %v670
      %v711 = vand.u32 %v596, %v670
      %v714 = vand.u32 %v597, %v670
      %v717 = vand.u32 %v598, %v670
      %719 = vmatpush.bf16.msra.mxu0 0
      %720 = vmatpush.bf16.msra.mxu0 0
      %721 = vmatpush.bf16.msra.mxu0 0
      %722 = vmatpush.bf16.msra.mxu0 %v672
      %723 = vmatpush.bf16.msra.mxu0 %v567
      %724 = vmatpush.bf16.msra.mxu0 %v551
      %725 = vmatpush.bf16.msra.mxu0 %v535
      %726 = vmatpush.bf16.msra.mxu0 %v519
      %727 = vmatmul.bf16.gmra.mxu0 %v665
      %v728 = vpop.f32.mrf.mxu0
      %v729 = vadd.f32 0.0, %v728
      %v730 = vpop.f32.mrf.mxu0
      %731 = vdwg.mxu0
      %732 = vmatpush.bf16.msra.mxu0 0
      %733 = vmatpush.bf16.msra.mxu0 0
      %734 = vmatpush.bf16.msra.mxu0 0
      %735 = vmatpush.bf16.msra.mxu0 %v675
      %736 = vmatpush.bf16.msra.mxu0 %v568
      %737 = vmatpush.bf16.msra.mxu0 %v552
      %738 = vmatpush.bf16.msra.mxu0 %v536
      %739 = vmatpush.bf16.msra.mxu0 %v520
      %740 = vmatmul.bf16.gmra.mxu0 %v665
      %v741 = vpop.f32.mrf.mxu0
      %v742 = vadd.f32 0.0, %v741
      %v743 = vpop.f32.mrf.mxu0
      %744 = vdwg.mxu0
      %745 = vmatpush.bf16.msra.mxu0 0
      %746 = vmatpush.bf16.msra.mxu0 0
      %747 = vmatpush.bf16.msra.mxu0 0
      %748 = vmatpush.bf16.msra.mxu0 %v678
      %749 = vmatpush.bf16.msra.mxu0 %v569
      %750 = vmatpush.bf16.msra.mxu0 %v553
      %751 = vmatpush.bf16.msra.mxu0 %v537
      %752 = vmatpush.bf16.msra.mxu0 %v521
      %753 = vmatmul.bf16.gmra.mxu0 %v665
      %v754 = vpop.f32.mrf.mxu0
      %v755 = vadd.f32 0.0, %v754
      %v756 = vpop.f32.mrf.mxu0
      %757 = vdwg.mxu0
      %758 = vmatpush.bf16.msra.mxu0 0
      %759 = vmatpush.bf16.msra.mxu0 0
      %760 = vmatpush.bf16.msra.mxu0 0
      %761 = vmatpush.bf16.msra.mxu0 %v681
      %762 = vmatpush.bf16.msra.mxu0 %v570
      %763 = vmatpush.bf16.msra.mxu0 %v554
      %764 = vmatpush.bf16.msra.mxu0 %v538
      %765 = vmatpush.bf16.msra.mxu0 %v522
      %766 = vmatmul.bf16.gmra.mxu0 %v665
      %v767 = vpop.f32.mrf.mxu0
      %v768 = vadd.f32 0.0, %v767
      %v769 = vpop.f32.mrf.mxu0
      %770 = vdwg.mxu0
      %771 = vmatpush.bf16.msra.mxu0 0
      %772 = vmatpush.bf16.msra.mxu0 0
      %773 = vmatpush.bf16.msra.mxu0 0
      %774 = vmatpush.bf16.msra.mxu0 %v684
      %775 = vmatpush.bf16.msra.mxu0 %v571
      %776 = vmatpush.bf16.msra.mxu0 %v555
      %777 = vmatpush.bf16.msra.mxu0 %v539
      %778 = vmatpush.bf16.msra.mxu0 %v523
      %779 = vmatmul.bf16.gmra.mxu0 %v665
      %v780 = vpop.f32.mrf.mxu0
      %v781 = vadd.f32 0.0, %v780
      %v782 = vpop.f32.mrf.mxu0
      %783 = vdwg.mxu0
      %784 = vmatpush.bf16.msra.mxu0 0
      %785 = vmatpush.bf16.msra.mxu0 0
      %786 = vmatpush.bf16.msra.mxu0 0
      %787 = vmatpush.bf16.msra.mxu0 %v687
      %788 = vmatpush.bf16.msra.mxu0 %v572
      %789 = vmatpush.bf16.msra.mxu0 %v556
      %790 = vmatpush.bf16.msra.mxu0 %v540
      %791 = vmatpush.bf16.msra.mxu0 %v524
      %792 = vmatmul.bf16.gmra.mxu0 %v665
      %v793 = vpop.f32.mrf.mxu0
      %v794 = vadd.f32 0.0, %v793
      %v795 = vpop.f32.mrf.mxu0
      %796 = vdwg.mxu0
      %797 = vmatpush.bf16.msra.mxu0 0
      %798 = vmatpush.bf16.msra.mxu0 0
      %799 = vmatpush.bf16.msra.mxu0 0
      %800 = vmatpush.bf16.msra.mxu0 %v690
      %801 = vmatpush.bf16.msra.mxu0 %v573
      %802 = vmatpush.bf16.msra.mxu0 %v557
      %803 = vmatpush.bf16.msra.mxu0 %v541
      %804 = vmatpush.bf16.msra.mxu0 %v525
      %805 = vmatmul.bf16.gmra.mxu0 %v665
      %v806 = vpop.f32.mrf.mxu0
      %v807 = vadd.f32 0.0, %v806
      %v808 = vpop.f32.mrf.mxu0
      %809 = vdwg.mxu0
      %810 = vmatpush.bf16.msra.mxu0 0
      %811 = vmatpush.bf16.msra.mxu0 0
      %812 = vmatpush.bf16.msra.mxu0 0
      %813 = vmatpush.bf16.msra.mxu0 %v693
      %814 = vmatpush.bf16.msra.mxu0 %v574
      %815 = vmatpush.bf16.msra.mxu0 %v558
      %816 = vmatpush.bf16.msra.mxu0 %v542
      %817 = vmatpush.bf16.msra.mxu0 %v526
      %818 = vmatmul.bf16.gmra.mxu0 %v665
      %v819 = vpop.f32.mrf.mxu0
      %v820 = vadd.f32 0.0, %v819
      %v821 = vpop.f32.mrf.mxu0
      %822 = vdwg.mxu0
      %823 = vmatpush.bf16.msra.mxu0 0
      %824 = vmatpush.bf16.msra.mxu0 0
      %825 = vmatpush.bf16.msra.mxu0 0
      %826 = vmatpush.bf16.msra.mxu0 %v696
      %827 = vmatpush.bf16.msra.mxu0 %v575
      %828 = vmatpush.bf16.msra.mxu0 %v559
      %829 = vmatpush.bf16.msra.mxu0 %v543
      %830 = vmatpush.bf16.msra.mxu0 %v527
      %831 = vmatmul.bf16.gmra.mxu0 %v665
      %v832 = vpop.f32.mrf.mxu0
      %v833 = vadd.f32 0.0, %v832
      %v834 = vpop.f32.mrf.mxu0
      %835 = vdwg.mxu0
      %836 = vmatpush.bf16.msra.mxu0 0
      %837 = vmatpush.bf16.msra.mxu0 0
      %838 = vmatpush.bf16.msra.mxu0 0
      %839 = vmatpush.bf16.msra.mxu0 %v699
      %840 = vmatpush.bf16.msra.mxu0 %v576
      %841 = vmatpush.bf16.msra.mxu0 %v560
      %842 = vmatpush.bf16.msra.mxu0 %v544
      %843 = vmatpush.bf16.msra.mxu0 %v528
      %844 = vmatmul.bf16.gmra.mxu0 %v665
      %v845 = vpop.f32.mrf.mxu0
      %v846 = vadd.f32 0.0, %v845
      %v847 = vpop.f32.mrf.mxu0
      %848 = vdwg.mxu0
      %849 = vmatpush.bf16.msra.mxu0 0
      %850 = vmatpush.bf16.msra.mxu0 0
      %851 = vmatpush.bf16.msra.mxu0 0
      %852 = vmatpush.bf16.msra.mxu0 %v702
      %853 = vmatpush.bf16.msra.mxu0 %v577
      %854 = vmatpush.bf16.msra.mxu0 %v561
      %855 = vmatpush.bf16.msra.mxu0 %v545
      %856 = vmatpush.bf16.msra.mxu0 %v529
      %857 = vmatmul.bf16.gmra.mxu0 %v665
      %v858 = vpop.f32.mrf.mxu0
      %v859 = vadd.f32 0.0, %v858
      %v860 = vpop.f32.mrf.mxu0
      %861 = vdwg.mxu0
      %862 = vmatpush.bf16.msra.mxu0 0
      %863 = vmatpush.bf16.msra.mxu0 0
      %864 = vmatpush.bf16.msra.mxu0 0
      %865 = vmatpush.bf16.msra.mxu0 %v705
      %866 = vmatpush.bf16.msra.mxu0 %v578
      %867 = vmatpush.bf16.msra.mxu0 %v562
      %868 = vmatpush.bf16.msra.mxu0 %v546
      %869 = vmatpush.bf16.msra.mxu0 %v530
      %870 = vmatmul.bf16.gmra.mxu0 %v665
      %v871 = vpop.f32.mrf.mxu0
      %v872 = vadd.f32 0.0, %v871
      %v873 = vpop.f32.mrf.mxu0
      %874 = vdwg.mxu0
      %875 = vmatpush.bf16.msra.mxu0 0
      %876 = vmatpush.bf16.msra.mxu0 0
      %877 = vmatpush.bf16.msra.mxu0 0
      %878 = vmatpush.bf16.msra.mxu0 %v708
      %879 = vmatpush.bf16.msra.mxu0 %v579
      %880 = vmatpush.bf16.msra.mxu0 %v563
      %881 = vmatpush.bf16.msra.mxu0 %v547
      %882 = vmatpush.bf16.msra.mxu0 %v531
      %883 = vmatmul.bf16.gmra.mxu0 %v665
      %v884 = vpop.f32.mrf.mxu0
      %v885 = vadd.f32 0.0, %v884
      %v886 = vpop.f32.mrf.mxu0
      %887 = vdwg.mxu0
      %888 = vmatpush.bf16.msra.mxu0 0
      %889 = vmatpush.bf16.msra.mxu0 0
      %890 = vmatpush.bf16.msra.mxu0 0
      %891 = vmatpush.bf16.msra.mxu0 %v711
      %892 = vmatpush.bf16.msra.mxu0 %v580
      %893 = vmatpush.bf16.msra.mxu0 %v564
      %894 = vmatpush.bf16.msra.mxu0 %v548
      %895 = vmatpush.bf16.msra.mxu0 %v532
      %896 = vmatmul.bf16.gmra.mxu0 %v665
      %v897 = vpop.f32.mrf.mxu0
      %v898 = vadd.f32 0.0, %v897
      %v899 = vpop.f32.mrf.mxu0
      %900 = vdwg.mxu0
      %901 = vmatpush.bf16.msra.mxu0 0
      %902 = vmatpush.bf16.msra.mxu0 0
      %903 = vmatpush.bf16.msra.mxu0 0
      %904 = vmatpush.bf16.msra.mxu0 %v714
      %905 = vmatpush.bf16.msra.mxu0 %v581
      %906 = vmatpush.bf16.msra.mxu0 %v565
      %907 = vmatpush.bf16.msra.mxu0 %v549
      %908 = vmatpush.bf16.msra.mxu0 %v533
      %909 = vmatmul.bf16.gmra.mxu0 %v665
      %v910 = vpop.f32.mrf.mxu0
      %v911 = vadd.f32 0.0, %v910
      %v912 = vpop.f32.mrf.mxu0
      %913 = vdwg.mxu0
      %914 = vmatpush.bf16.msra.mxu0 0
      %915 = vmatpush.bf16.msra.mxu0 0
      %916 = vmatpush.bf16.msra.mxu0 0
      %917 = vmatpush.bf16.msra.mxu0 %v717
      %918 = vmatpush.bf16.msra.mxu0 %v582
      %919 = vmatpush.bf16.msra.mxu0 %v566
      %920 = vmatpush.bf16.msra.mxu0 %v550
      %921 = vmatpush.bf16.msra.mxu0 %v534
      %922 = vmatmul.bf16.gmra.mxu0 %v665
      %v923 = vpop.f32.mrf.mxu0
      %v924 = vadd.f32 0.0, %v923
      %v925 = vpop.f32.mrf.mxu0
      %926 = vdwg.mxu0
      %p927 = scmp.eq.s32.totalorder %s19, 0
      // Predicated region
      $region33: #{cnn_forward.4} parent=31 // pred_check
        %p928 = pneg %p927
      $region34: #{cnn_forward.4} parent=31 // pred_check_branch
        %930 = sbr.rel (%p928) target = $region36
      $region35: #{cnn_forward.4} parent=31 // pred_region
        %931 = vst [vmem:[%s196] sm:$0xff] %v729
        %932 = vst [vmem:[%s196 + $0x8] sm:$0xff] %v742
        %933 = vst [vmem:[%s196 + $0x10] sm:$0xff] %v755
        %934 = vst [vmem:[%s196 + $0x18] sm:$0xff] %v768
        %935 = vst [vmem:[%s196 + $0x20] sm:$0xff] %v781
        %936 = vst [vmem:[%s196 + $0x28] sm:$0xff] %v794
        %937 = vst [vmem:[%s196 + $0x30] sm:$0xff] %v807
        %938 = vst [vmem:[%s196 + $0x38] sm:$0xff] %v820
        %939 = vst [vmem:[%s196 + $0x40] sm:$0xff] %v833
        %940 = vst [vmem:[%s196 + $0x48] sm:$0xff] %v846
        %941 = vst [vmem:[%s196 + $0x50] sm:$0xff] %v859
        %942 = vst [vmem:[%s196 + $0x58] sm:$0xff] %v872
        %943 = vst [vmem:[%s196 + $0x60] sm:$0xff] %v885
        %944 = vst [vmem:[%s196 + $0x68] sm:$0xff] %v898
        %945 = vst [vmem:[%s196 + $0x70] sm:$0xff] %v911
        %vm946 = vcmask 130048
        %947 = vst.msk [vmem:[%s196 + $0x78] sm:$0xff] %vm946, %v924
      $region36: #{cnn_forward.4} parent=31 // pred_fallthru
        _
      %p948 = scmp.gt.s32.totalorder %s19, 0
      // Predicated region
      $region37: #{cnn_forward.4} parent=31 // pred_check
        %p949 = pneg %p948
      $region38: #{cnn_forward.4} parent=31 // pred_check_branch
        %951 = sbr.rel (%p949) target = $region40
      $region39: #{cnn_forward.4} parent=31 // pred_region
        %v952 = vld [vmem:[%s196] sm:$0xff]
        %v953 = vld [vmem:[%s196 + $0x8] sm:$0xff]
        %v954 = vld [vmem:[%s196 + $0x10] sm:$0xff]
        %v955 = vld [vmem:[%s196 + $0x18] sm:$0xff]
        %v956 = vld [vmem:[%s196 + $0x20] sm:$0xff]
        %v957 = vld [vmem:[%s196 + $0x28] sm:$0xff]
        %v958 = vld [vmem:[%s196 + $0x30] sm:$0xff]
        %v959 = vld [vmem:[%s196 + $0x38] sm:$0xff]
        %v960 = vld [vmem:[%s196 + $0x40] sm:$0xff]
        %v961 = vld [vmem:[%s196 + $0x48] sm:$0xff]
        %v962 = vld [vmem:[%s196 + $0x50] sm:$0xff]
        %v963 = vld [vmem:[%s196 + $0x58] sm:$0xff]
        %v964 = vld [vmem:[%s196 + $0x60] sm:$0xff]
        %v965 = vld [vmem:[%s196 + $0x68] sm:$0xff]
        %v966 = vld [vmem:[%s196 + $0x70] sm:$0xff]
        %v967 = vld [vmem:[%s196 + $0x78] sm:$0xff]
        %v968 = vmax.f32 %v952, %v729
        %v969 = vmax.f32 %v953, %v742
        %v970 = vmax.f32 %v954, %v755
        %v971 = vmax.f32 %v955, %v768
        %v972 = vmax.f32 %v956, %v781
        %v973 = vmax.f32 %v957, %v794
        %v974 = vmax.f32 %v958, %v807
        %v975 = vmax.f32 %v959, %v820
        %v976 = vmax.f32 %v960, %v833
        %v977 = vmax.f32 %v961, %v846
        %v978 = vmax.f32 %v962, %v859
        %v979 = vmax.f32 %v963, %v872
        %v980 = vmax.f32 %v964, %v885
        %v981 = vmax.f32 %v965, %v898
        %v982 = vmax.f32 %v966, %v911
        %v983 = vmax.f32 %v967, %v924
        %984 = vst [vmem:[%s196] sm:$0xff] %v968
        %985 = vst [vmem:[%s196 + $0x8] sm:$0xff] %v969
        %986 = vst [vmem:[%s196 + $0x10] sm:$0xff] %v970
        %987 = vst [vmem:[%s196 + $0x18] sm:$0xff] %v971
        %988 = vst [vmem:[%s196 + $0x20] sm:$0xff] %v972
        %989 = vst [vmem:[%s196 + $0x28] sm:$0xff] %v973
        %990 = vst [vmem:[%s196 + $0x30] sm:$0xff] %v974
        %991 = vst [vmem:[%s196 + $0x38] sm:$0xff] %v975
        %992 = vst [vmem:[%s196 + $0x40] sm:$0xff] %v976
        %993 = vst [vmem:[%s196 + $0x48] sm:$0xff] %v977
        %994 = vst [vmem:[%s196 + $0x50] sm:$0xff] %v978
        %995 = vst [vmem:[%s196 + $0x58] sm:$0xff] %v979
        %996 = vst [vmem:[%s196 + $0x60] sm:$0xff] %v980
        %997 = vst [vmem:[%s196 + $0x68] sm:$0xff] %v981
        %998 = vst [vmem:[%s196 + $0x70] sm:$0xff] %v982
        %vm999 = vcmask 130048
        %1000 = vst.msk [vmem:[%s196 + $0x78] sm:$0xff] %vm999, %v983
      $region40: #{cnn_forward.4} parent=31 // pred_fallthru
        _
      %p1001 = scmp.eq.s32.totalorder %s19, 24
      // Predicated region
      $region41: #{cnn_forward.4} parent=31 // pred_check
        %p1002 = pneg %p1001
      $region42: #{cnn_forward.4} parent=31 // pred_check_branch
        %1004 = sbr.rel (%p1002) target = $region44
      $region43: #{cnn_forward.4} parent=31 // pred_region
        %v1005 = vld [vmem:[%s196] sm:$0xff]
        %v1006 = vld [vmem:[%s196 + $0x8] sm:$0xff]
        %v1007 = vld [vmem:[%s196 + $0x10] sm:$0xff]
        %v1008 = vld [vmem:[%s196 + $0x18] sm:$0xff]
        %v1009 = vld [vmem:[%s196 + $0x20] sm:$0xff]
        %v1010 = vld [vmem:[%s196 + $0x28] sm:$0xff]
        %v1011 = vld [vmem:[%s196 + $0x30] sm:$0xff]
        %v1012 = vld [vmem:[%s196 + $0x38] sm:$0xff]
        %v1013 = vld [vmem:[%s196 + $0x40] sm:$0xff]
        %v1014 = vld [vmem:[%s196 + $0x48] sm:$0xff]
        %v1015 = vld [vmem:[%s196 + $0x50] sm:$0xff]
        %v1016 = vld [vmem:[%s196 + $0x58] sm:$0xff]
        %v1017 = vld [vmem:[%s196 + $0x60] sm:$0xff]
        %v1018 = vld [vmem:[%s196 + $0x68] sm:$0xff]
        %v1019 = vld [vmem:[%s196 + $0x70] sm:$0xff]
        %v1020 = vld [vmem:[%s196 + $0x78] sm:$0xff]
        %v1021 = vld [vmem:[%s2] sm:$0xff]
        %1023 = vset.pattern.permute.xlu0 0
        %1024 = vperm.xlu0 %1023, %v1021
        %v1025 = vpop.permute.xlu0 %1024
        %v1027 = vadd.f32 %v1005, %v1025
        %v1028 = vadd.f32 %v1006, %v1025
        %v1029 = vadd.f32 %v1007, %v1025
        %v1030 = vadd.f32 %v1008, %v1025
        %v1031 = vadd.f32 %v1009, %v1025
        %v1032 = vadd.f32 %v1010, %v1025
        %v1033 = vadd.f32 %v1011, %v1025
        %v1034 = vadd.f32 %v1012, %v1025
        %v1035 = vadd.f32 %v1013, %v1025
        %v1036 = vadd.f32 %v1014, %v1025
        %v1037 = vadd.f32 %v1015, %v1025
        %v1038 = vadd.f32 %v1016, %v1025
        %v1039 = vadd.f32 %v1017, %v1025
        %v1040 = vadd.f32 %v1018, %v1025
        %v1041 = vadd.f32 %v1019, %v1025
        %v1042 = vadd.f32 %v1020, %v1025
        %v1043 = vmax.f32 %v1027, 0.0
        %v1044 = vmax.f32 %v1028, 0.0
        %v1045 = vmax.f32 %v1029, 0.0
        %v1046 = vmax.f32 %v1030, 0.0
        %v1047 = vmax.f32 %v1031, 0.0
        %v1048 = vmax.f32 %v1032, 0.0
        %v1049 = vmax.f32 %v1033, 0.0
        %v1050 = vmax.f32 %v1034, 0.0
        %v1051 = vmax.f32 %v1035, 0.0
        %v1052 = vmax.f32 %v1036, 0.0
        %v1053 = vmax.f32 %v1037, 0.0
        %v1054 = vmax.f32 %v1038, 0.0
        %v1055 = vmax.f32 %v1039, 0.0
        %v1056 = vmax.f32 %v1040, 0.0
        %v1057 = vmax.f32 %v1041, 0.0
        %v1058 = vmax.f32 %v1042, 0.0
        %1059 = vst [vmem:[%s196] sm:$0xff] %v1043
        %1060 = vst [vmem:[%s196 + $0x8] sm:$0xff] %v1044
        %1061 = vst [vmem:[%s196 + $0x10] sm:$0xff] %v1045
        %1062 = vst [vmem:[%s196 + $0x18] sm:$0xff] %v1046
        %1063 = vst [vmem:[%s196 + $0x20] sm:$0xff] %v1047
        %1064 = vst [vmem:[%s196 + $0x28] sm:$0xff] %v1048
        %1065 = vst [vmem:[%s196 + $0x30] sm:$0xff] %v1049
        %1066 = vst [vmem:[%s196 + $0x38] sm:$0xff] %v1050
        %1067 = vst [vmem:[%s196 + $0x40] sm:$0xff] %v1051
        %1068 = vst [vmem:[%s196 + $0x48] sm:$0xff] %v1052
        %1069 = vst [vmem:[%s196 + $0x50] sm:$0xff] %v1053
        %1070 = vst [vmem:[%s196 + $0x58] sm:$0xff] %v1054
        %1071 = vst [vmem:[%s196 + $0x60] sm:$0xff] %v1055
        %1072 = vst [vmem:[%s196 + $0x68] sm:$0xff] %v1056
        %1073 = vst [vmem:[%s196 + $0x70] sm:$0xff] %v1057
        %vm1074 = vcmask 130048
        %1075 = vst.msk [vmem:[%s196 + $0x78] sm:$0xff] %vm1074, %v1058
      $region44: #{cnn_forward.4} parent=31 // pred_fallthru
        _
      %p1076 = scmp.lt.s32.totalorder %s18, 1
      %s1077 = scalar_select %p1076, %s18, 1
      %s1078 = smul.addr %s1077, 16
      %s1079 = smul.addr %s1078, 8
      %s1080 = scalar_lea.vmem %s3, %s1079
      // Predicated region
      $region45: #{cnn_forward.4} parent=31 // pred_check
        %p1081 = pneg %p116
      $region46: #{cnn_forward.4} parent=31 // pred_check_branch
        %1083 = sbr.rel (%p1081) target = $region48
      $region47: #{cnn_forward.4} parent=31 // pred_region
        _
      $region48: #{cnn_forward.4} parent=31 // pred_fallthru
        _
    $region32: #{cnn_forward.4} parent=5 // pred_fallthru
      _
    %p1084 = scmp.le.s32.totalorder 2, %s9
    // Predicated region
    $region49: #{cnn_forward.4} parent=5 // pred_check
      %p1085 = pneg %p1084
    $region50: #{cnn_forward.4} parent=5 // pred_check_branch
      %1087 = sbr.rel (%p1085) target = $region52
    $region51: #{cnn_forward.4} parent=5 // pred_region
      %s1088 = ssub.s32 %s9, 2
      // Predicated region
      $region53: #{cnn_forward.4} parent=51 // pred_check
        %p1089 = pneg %p122
      $region54: #{cnn_forward.4} parent=51 // pred_check_branch
        %1091 = sbr.rel (%p1089) target = $region56
      $region55: #{cnn_forward.4} parent=51 // pred_region
        %p1092 = scmp.lt.s32.totalorder %s20, 1
        %s1093 = scalar_select %p1092, %s20, 1
        %s1094 = smul.addr %s1093, 16
        %s1095 = smul.addr %s1094, 8
        %s1096 = scalar_lea.vmem %s3, %s1095
      $region56: #{cnn_forward.4} parent=51 // pred_fallthru
        _
    $region52: #{cnn_forward.4} parent=5 // pred_fallthru
      _
  $region6: #{cnn_forward.4} parent=0 // loop_footer
    %s13 = sadd.s32 1, %s9
  $region7: #{cnn_forward.4} parent=0 // loop_footer_branch
    %8 = sbr.rel target = $region3
  $region8: #{cnn_forward.4} parent=0 // loop_exit
    _

// kernel: cnn_forward.5
$region0: #{cnn_forward.5}
  #allocation0 [shape = 'u32[]', space=smem, size = 0x4, offset = 0x4, fixed_abs, tag = 'smem constant byte address 0x4 - core index']
  #allocation1 [shape = 'u32[72,128]{1,0:T(1,128)}', space=vmem, size = 0x9000, scoped, tag = 'internal scratch']
  %s0 = inlined_call_operand.vmem [shape: bf16[25,150,128], index: 0, kind: input, shape index: {}]
  %s1 = inlined_call_operand.vmem [shape: bf16[16,150], index: 1, kind: input, shape index: {}]
  %s2 = inlined_call_operand.vmem [shape: f32[16,1], index: 2, kind: input, shape index: {}]
  %s3 = inlined_call_operand.vmem [shape: f32[16,128], index: 3, kind: output, shape index: {}]
  %s4 = sld [smem:[#allocation0]]
  $region22: #{cnn_forward.5} parent=0
    _
  %s6 = ssub.s32 1, %s4
  %s7 = scalar_select 0, %s6, %s4
  // Predicated region
  $region2: #{cnn_forward.5} parent=0 // pred_check
    _
  $region3: #{cnn_forward.5} parent=0 // pred_check_branch
    %9 = sbr.rel (0) target = $region5
  $region4: #{cnn_forward.5} parent=0 // pred_region
    _
  $region5: #{cnn_forward.5} parent=0 // pred_fallthru
    _
  // Predicated region
  $region6: #{cnn_forward.5} parent=0 // pred_check
    _
  $region7: #{cnn_forward.5} parent=0 // pred_check_branch
    %11 = sbr.rel (0) target = $region9
  $region8: #{cnn_forward.5} parent=0 // pred_region
    _
  $region9: #{cnn_forward.5} parent=0 // pred_fallthru
    _
  // Predicated region
  $region10: #{cnn_forward.5} parent=0 // pred_check
    _
  $region11: #{cnn_forward.5} parent=0 // pred_check_branch
    %13 = sbr.rel (0) target = $region13
  $region12: #{cnn_forward.5} parent=0 // pred_region
    _
  $region13: #{cnn_forward.5} parent=0 // pred_fallthru
    _
  %v15 = vld [vmem:[%s1] sm:$0xff]
  %v16 = vld [vmem:[%s1 + $0x8] sm:$0xff]
  %v17 = vld [vmem:[%s0] sm:$0xf]
  %v18 = vld [vmem:[%s0 + $0x4] sm:$0xf]
  %v19 = vld [vmem:[%s0 + $0x8] sm:$0xf]
  %v20 = vld [vmem:[%s0 + $0xc] sm:$0xf]
  %v21 = vld [vmem:[%s0 + $0x10] sm:$0xf]
  %v22 = vld [vmem:[%s0 + $0x14] sm:$0xf]
  %v23 = vld [vmem:[%s0 + $0x18] sm:$0xf]
  %v24 = vld [vmem:[%s0 + $0x1c] sm:$0xf]
  %v25 = vld [vmem:[%s0 + $0x20] sm:$0xf]
  %v26 = vld [vmem:[%s0 + $0x24] sm:$0xf]
  %v27 = vld [vmem:[%s0 + $0x28] sm:$0xf]
  %v28 = vld [vmem:[%s0 + $0x2c] sm:$0xf]
  %v29 = vld [vmem:[%s0 + $0x30] sm:$0xf]
  %v30 = vld [vmem:[%s0 + $0x34] sm:$0xf]
  %v31 = vld [vmem:[%s0 + $0x38] sm:$0xf]
  %v32 = vld [vmem:[%s0 + $0x3c] sm:$0xf]
  %v33 = vld [vmem:[%s0 + $0x40] sm:$0xf]
  %v34 = vld [vmem:[%s0 + $0x44] sm:$0xf]
  %v35 = vld [vmem:[%s0 + $0x48] sm:$0x7]
  %v38 = vunpack.c.l.b16 %v15
  %v39 = vunpack.c.h.b16 %v15
  %v40 = vunpack.c.l.b16 %v16
  %v41 = vunpack.c.h.b16 %v16
  %v42 = vpack.c.b16 %v40, %v38
  %v43 = vpack.c.b16 %v41, %v39
  %v64 = vunpack.c.l.b16 %v17
  %v65 = vunpack.c.l.b16 %v18
  %v66 = vunpack.c.l.b16 %v19
  %v67 = vunpack.c.l.b16 %v20
  %v68 = vunpack.c.l.b16 %v21
  %v69 = vunpack.c.l.b16 %v22
  %v70 = vunpack.c.l.b16 %v23
  %v71 = vunpack.c.l.b16 %v24
  %v72 = vunpack.c.l.b16 %v25
  %v73 = vunpack.c.l.b16 %v26
  %v74 = vunpack.c.l.b16 %v27
  %v75 = vunpack.c.l.b16 %v28
  %v76 = vunpack.c.l.b16 %v29
  %v77 = vunpack.c.l.b16 %v30
  %v78 = vunpack.c.l.b16 %v31
  %v79 = vunpack.c.l.b16 %v32
  %v80 = vunpack.c.l.b16 %v33
  %v81 = vunpack.c.l.b16 %v34
  %v82 = vunpack.c.l.b16 %v35
  %v83 = vpack.c.b16 %v65, %v64
  %v84 = vpack.c.b16 %v67, %v66
  %v85 = vpack.c.b16 %v69, %v68
  %v86 = vpack.c.b16 %v71, %v70
  %v87 = vpack.c.b16 %v73, %v72
  %v88 = vpack.c.b16 %v75, %v74
  %v89 = vpack.c.b16 %v77, %v76
  %v90 = vpack.c.b16 %v79, %v78
  %v91 = vpack.c.b16 %v81, %v80
  %v92 = vpack.c.b16 %v82, %v82
  %vm102 = vcmask 179200
  %v104 = vsel %vm102, %v43, 0
  %vm106 = vcmask 1042432
  %v108 = vsel %vm106, %v92, 0
  %110 = vmatpush.bf16.msra.mxu0 %v90
  %111 = vmatpush.bf16.msra.mxu0 %v89
  %112 = vmatpush.bf16.msra.mxu0 %v88
  %113 = vmatpush.bf16.msra.mxu0 %v87
  %114 = vmatpush.bf16.msra.mxu0 %v86
  %115 = vmatpush.bf16.msra.mxu0 %v85
  %116 = vmatpush.bf16.msra.mxu0 %v84
  %117 = vmatpush.bf16.msra.mxu0 %v83
  %118 = vmatmul.bf16.gmra.mxu0 %v42
  %v119 = vpop.f32.mrf.mxu0
  %v120 = vadd.f32 0.0, %v119
  %v121 = vpop.f32.mrf.mxu0
  %v122 = vadd.f32 0.0, %v121
  %123 = vdwg.mxu0
  %124 = vmatpush.bf16.msra.mxu0 0
  %125 = vmatpush.bf16.msra.mxu0 0
  %126 = vmatpush.bf16.msra.mxu0 0
  %127 = vmatpush.bf16.msra.mxu0 0
  %128 = vmatpush.bf16.msra.mxu0 0
  %129 = vmatpush.bf16.msra.mxu0 0
  %130 = vmatpush.bf16.msra.mxu0 %v108
  %131 = vmatpush.bf16.msra.mxu0 %v91
  %132 = vmatmul.bf16.gmra.mxu0 %v104
  %v133 = vpop.f32.mrf.mxu0
  %v134 = vadd.f32 %v120, %v133
  %v135 = vpop.f32.mrf.mxu0
  %v136 = vadd.f32 %v122, %v135
  %137 = vdwg.mxu0
  %s138 = scalar_lea.vmem %s0, 76
  %v139 = vld [vmem:[%s138] sm:$0xf]
  %v140 = vld [vmem:[%s138 + $0x4] sm:$0xf]
  %v141 = vld [vmem:[%s138 + $0x8] sm:$0xf]
  %v142 = vld [vmem:[%s138 + $0xc] sm:$0xf]
  %v143 = vld [vmem:[%s138 + $0x10] sm:$0xf]
  %v144 = vld [vmem:[%s138 + $0x14] sm:$0xf]
  %v145 = vld [vmem:[%s138 + $0x18] sm:$0xf]
  %v146 = vld [vmem:[%s138 + $0x1c] sm:$0xf]
  %v147 = vld [vmem:[%s138 + $0x20] sm:$0xf]
  %v148 = vld [vmem:[%s138 + $0x24] sm:$0xf]
  %v149 = vld [vmem:[%s138 + $0x28] sm:$0xf]
  %v150 = vld [vmem:[%s138 + $0x2c] sm:$0xf]
  %v151 = vld [vmem:[%s138 + $0x30] sm:$0xf]
  %v152 = vld [vmem:[%s138 + $0x34] sm:$0xf]
  %v153 = vld [vmem:[%s138 + $0x38] sm:$0xf]
  %v154 = vld [vmem:[%s138 + $0x3c] sm:$0xf]
  %v155 = vld [vmem:[%s138 + $0x40] sm:$0xf]
  %v156 = vld [vmem:[%s138 + $0x44] sm:$0xf]
  %v157 = vld [vmem:[%s138 + $0x48] sm:$0x7]
  %v177 = vunpack.c.l.b16 %v139
  %v178 = vunpack.c.l.b16 %v140
  %v179 = vunpack.c.l.b16 %v141
  %v180 = vunpack.c.l.b16 %v142
  %v181 = vunpack.c.l.b16 %v143
  %v182 = vunpack.c.l.b16 %v144
  %v183 = vunpack.c.l.b16 %v145
  %v184 = vunpack.c.l.b16 %v146
  %v185 = vunpack.c.l.b16 %v147
  %v186 = vunpack.c.l.b16 %v148
  %v187 = vunpack.c.l.b16 %v149
  %v188 = vunpack.c.l.b16 %v150
  %v189 = vunpack.c.l.b16 %v151
  %v190 = vunpack.c.l.b16 %v152
  %v191 = vunpack.c.l.b16 %v153
  %v192 = vunpack.c.l.b16 %v154
  %v193 = vunpack.c.l.b16 %v155
  %v194 = vunpack.c.l.b16 %v156
  %v195 = vunpack.c.l.b16 %v157
  %v196 = vpack.c.b16 %v178, %v177
  %v197 = vpack.c.b16 %v180, %v179
  %v198 = vpack.c.b16 %v182, %v181
  %v199 = vpack.c.b16 %v184, %v183
  %v200 = vpack.c.b16 %v186, %v185
  %v201 = vpack.c.b16 %v188, %v187
  %v202 = vpack.c.b16 %v190, %v189
  %v203 = vpack.c.b16 %v192, %v191
  %v204 = vpack.c.b16 %v194, %v193
  %v205 = vpack.c.b16 %v195, %v195
  %v216 = vsel %vm106, %v205, 0
  %218 = vmatpush.bf16.msra.mxu0 %v203
  %219 = vmatpush.bf16.msra.mxu0 %v202
  %220 = vmatpush.bf16.msra.mxu0 %v201
  %221 = vmatpush.bf16.msra.mxu0 %v200
  %222 = vmatpush.bf16.msra.mxu0 %v199
  %223 = vmatpush.bf16.msra.mxu0 %v198
  %224 = vmatpush.bf16.msra.mxu0 %v197
  %225 = vmatpush.bf16.msra.mxu0 %v196
  %226 = vmatmul.bf16.gmra.mxu0 %v42
  %v227 = vpop.f32.mrf.mxu0
  %v228 = vadd.f32 0.0, %v227
  %v229 = vpop.f32.mrf.mxu0
  %v230 = vadd.f32 0.0, %v229
  %231 = vdwg.mxu0
  %232 = vmatpush.bf16.msra.mxu0 0
  %233 = vmatpush.bf16.msra.mxu0 0
  %234 = vmatpush.bf16.msra.mxu0 0
  %235 = vmatpush.bf16.msra.mxu0 0
  %236 = vmatpush.bf16.msra.mxu0 0
  %237 = vmatpush.bf16.msra.mxu0 0
  %238 = vmatpush.bf16.msra.mxu0 %v216
  %239 = vmatpush.bf16.msra.mxu0 %v204
  %240 = vmatmul.bf16.gmra.mxu0 %v104
  %v241 = vpop.f32.mrf.mxu0
  %v242 = vadd.f32 %v228, %v241
  %v243 = vpop.f32.mrf.mxu0
  %v244 = vadd.f32 %v230, %v243
  %245 = vdwg.mxu0
  %v246 = vmax.f32 %v134, %v242
  %v247 = vmax.f32 %v136, %v244
  %s248 = scalar_lea.vmem %s0, 152
  %v249 = vld [vmem:[%s248] sm:$0xf]
  %v250 = vld [vmem:[%s248 + $0x4] sm:$0xf]
  %v251 = vld [vmem:[%s248 + $0x8] sm:$0xf]
  %v252 = vld [vmem:[%s248 + $0xc] sm:$0xf]
  %v253 = vld [vmem:[%s248 + $0x10] sm:$0xf]
  %v254 = vld [vmem:[%s248 + $0x14] sm:$0xf]
  %v255 = vld [vmem:[%s248 + $0x18] sm:$0xf]
  %v256 = vld [vmem:[%s248 + $0x1c] sm:$0xf]
  %v257 = vld [vmem:[%s248 + $0x20] sm:$0xf]
  %v258 = vld [vmem:[%s248 + $0x24] sm:$0xf]
  %v259 = vld [vmem:[%s248 + $0x28] sm:$0xf]
  %v260 = vld [vmem:[%s248 + $0x2c] sm:$0xf]
  %v261 = vld [vmem:[%s248 + $0x30] sm:$0xf]
  %v262 = vld [vmem:[%s248 + $0x34] sm:$0xf]
  %v263 = vld [vmem:[%s248 + $0x38] sm:$0xf]
  %v264 = vld [vmem:[%s248 + $0x3c] sm:$0xf]
  %v265 = vld [vmem:[%s248 + $0x40] sm:$0xf]
  %v266 = vld [vmem:[%s248 + $0x44] sm:$0xf]
  %v267 = vld [vmem:[%s248 + $0x48] sm:$0x7]
  %v287 = vunpack.c.l.b16 %v249
  %v288 = vunpack.c.l.b16 %v250
  %v289 = vunpack.c.l.b16 %v251
  %v290 = vunpack.c.l.b16 %v252
  %v291 = vunpack.c.l.b16 %v253
  %v292 = vunpack.c.l.b16 %v254
  %v293 = vunpack.c.l.b16 %v255
  %v294 = vunpack.c.l.b16 %v256
  %v295 = vunpack.c.l.b16 %v257
  %v296 = vunpack.c.l.b16 %v258
  %v297 = vunpack.c.l.b16 %v259
  %v298 = vunpack.c.l.b16 %v260
  %v299 = vunpack.c.l.b16 %v261
  %v300 = vunpack.c.l.b16 %v262
  %v301 = vunpack.c.l.b16 %v263
  %v302 = vunpack.c.l.b16 %v264
  %v303 = vunpack.c.l.b16 %v265
  %v304 = vunpack.c.l.b16 %v266
  %v305 = vunpack.c.l.b16 %v267
  %v306 = vpack.c.b16 %v288, %v287
  %v307 = vpack.c.b16 %v290, %v289
  %v308 = vpack.c.b16 %v292, %v291
  %v309 = vpack.c.b16 %v294, %v293
  %v310 = vpack.c.b16 %v296, %v295
  %v311 = vpack.c.b16 %v298, %v297
  %v312 = vpack.c.b16 %v300, %v299
  %v313 = vpack.c.b16 %v302, %v301
  %v314 = vpack.c.b16 %v304, %v303
  %v315 = vpack.c.b16 %v305, %v305
  %v326 = vsel %vm106, %v315, 0
  %328 = vmatpush.bf16.msra.mxu0 %v313
  %329 = vmatpush.bf16.msra.mxu0 %v312
  %330 = vmatpush.bf16.msra.mxu0 %v311
  %331 = vmatpush.bf16.msra.mxu0 %v310
  %332 = vmatpush.bf16.msra.mxu0 %v309
  %333 = vmatpush.bf16.msra.mxu0 %v308
  %334 = vmatpush.bf16.msra.mxu0 %v307
  %335 = vmatpush.bf16.msra.mxu0 %v306
  %336 = vmatmul.bf16.gmra.mxu0 %v42
  %v337 = vpop.f32.mrf.mxu0
  %v338 = vadd.f32 0.0, %v337
  %v339 = vpop.f32.mrf.mxu0
  %v340 = vadd.f32 0.0, %v339
  %341 = vdwg.mxu0
  %342 = vmatpush.bf16.msra.mxu0 0
  %343 = vmatpush.bf16.msra.mxu0 0
  %344 = vmatpush.bf16.msra.mxu0 0
  %345 = vmatpush.bf16.msra.mxu0 0
  %346 = vmatpush.bf16.msra.mxu0 0
  %347 = vmatpush.bf16.msra.mxu0 0
  %348 = vmatpush.bf16.msra.mxu0 %v326
  %349 = vmatpush.bf16.msra.mxu0 %v314
  %350 = vmatmul.bf16.gmra.mxu0 %v104
  %v351 = vpop.f32.mrf.mxu0
  %v352 = vadd.f32 %v338, %v351
  %v353 = vpop.f32.mrf.mxu0
  %v354 = vadd.f32 %v340, %v353
  %355 = vdwg.mxu0
  %v356 = vmax.f32 %v246, %v352
  %v357 = vmax.f32 %v247, %v354
  %s358 = scalar_lea.vmem %s0, 228
  %v359 = vld [vmem:[%s358] sm:$0xf]
  %v360 = vld [vmem:[%s358 + $0x4] sm:$0xf]
  %v361 = vld [vmem:[%s358 + $0x8] sm:$0xf]
  %v362 = vld [vmem:[%s358 + $0xc] sm:$0xf]
  %v363 = vld [vmem:[%s358 + $0x10] sm:$0xf]
  %v364 = vld [vmem:[%s358 + $0x14] sm:$0xf]
  %v365 = vld [vmem:[%s358 + $0x18] sm:$0xf]
  %v366 = vld [vmem:[%s358 + $0x1c] sm:$0xf]
  %v367 = vld [vmem:[%s358 + $0x20] sm:$0xf]
  %v368 = vld [vmem:[%s358 + $0x24] sm:$0xf]
  %v369 = vld [vmem:[%s358 + $0x28] sm:$0xf]
  %v370 = vld [vmem:[%s358 + $0x2c] sm:$0xf]
  %v371 = vld [vmem:[%s358 + $0x30] sm:$0xf]
  %v372 = vld [vmem:[%s358 + $0x34] sm:$0xf]
  %v373 = vld [vmem:[%s358 + $0x38] sm:$0xf]
  %v374 = vld [vmem:[%s358 + $0x3c] sm:$0xf]
  %v375 = vld [vmem:[%s358 + $0x40] sm:$0xf]
  %v376 = vld [vmem:[%s358 + $0x44] sm:$0xf]
  %v377 = vld [vmem:[%s358 + $0x48] sm:$0x7]
  %v397 = vunpack.c.l.b16 %v359
  %v398 = vunpack.c.l.b16 %v360
  %v399 = vunpack.c.l.b16 %v361
  %v400 = vunpack.c.l.b16 %v362
  %v401 = vunpack.c.l.b16 %v363
  %v402 = vunpack.c.l.b16 %v364
  %v403 = vunpack.c.l.b16 %v365
  %v404 = vunpack.c.l.b16 %v366
  %v405 = vunpack.c.l.b16 %v367
  %v406 = vunpack.c.l.b16 %v368
  %v407 = vunpack.c.l.b16 %v369
  %v408 = vunpack.c.l.b16 %v370
  %v409 = vunpack.c.l.b16 %v371
  %v410 = vunpack.c.l.b16 %v372
  %v411 = vunpack.c.l.b16 %v373
  %v412 = vunpack.c.l.b16 %v374
  %v413 = vunpack.c.l.b16 %v375
  %v414 = vunpack.c.l.b16 %v376
  %v415 = vunpack.c.l.b16 %v377
  %v416 = vpack.c.b16 %v398, %v397
  %v417 = vpack.c.b16 %v400, %v399
  %v418 = vpack.c.b16 %v402, %v401
  %v419 = vpack.c.b16 %v404, %v403
  %v420 = vpack.c.b16 %v406, %v405
  %v421 = vpack.c.b16 %v408, %v407
  %v422 = vpack.c.b16 %v410, %v409
  %v423 = vpack.c.b16 %v412, %v411
  %v424 = vpack.c.b16 %v414, %v413
  %v425 = vpack.c.b16 %v415, %v415
  %v436 = vsel %vm106, %v425, 0
  %438 = vmatpush.bf16.msra.mxu0 %v423
  %439 = vmatpush.bf16.msra.mxu0 %v422
  %440 = vmatpush.bf16.msra.mxu0 %v421
  %441 = vmatpush.bf16.msra.mxu0 %v420
  %442 = vmatpush.bf16.msra.mxu0 %v419
  %443 = vmatpush.bf16.msra.mxu0 %v418
  %444 = vmatpush.bf16.msra.mxu0 %v417
  %445 = vmatpush.bf16.msra.mxu0 %v416
  %446 = vmatmul.bf16.gmra.mxu0 %v42
  %v447 = vpop.f32.mrf.mxu0
  %v448 = vadd.f32 0.0, %v447
  %v449 = vpop.f32.mrf.mxu0
  %v450 = vadd.f32 0.0, %v449
  %451 = vdwg.mxu0
  %452 = vmatpush.bf16.msra.mxu0 0
  %453 = vmatpush.bf16.msra.mxu0 0
  %454 = vmatpush.bf16.msra.mxu0 0
  %455 = vmatpush.bf16.msra.mxu0 0
  %456 = vmatpush.bf16.msra.mxu0 0
  %457 = vmatpush.bf16.msra.mxu0 0
  %458 = vmatpush.bf16.msra.mxu0 %v436
  %459 = vmatpush.bf16.msra.mxu0 %v424
  %460 = vmatmul.bf16.gmra.mxu0 %v104
  %v461 = vpop.f32.mrf.mxu0
  %v462 = vadd.f32 %v448, %v461
  %v463 = vpop.f32.mrf.mxu0
  %v464 = vadd.f32 %v450, %v463
  %465 = vdwg.mxu0
  %v466 = vmax.f32 %v356, %v462
  %v467 = vmax.f32 %v357, %v464
  %s468 = scalar_lea.vmem %s0, 304
  %v469 = vld [vmem:[%s468] sm:$0xf]
  %v470 = vld [vmem:[%s468 + $0x4] sm:$0xf]
  %v471 = vld [vmem:[%s468 + $0x8] sm:$0xf]
  %v472 = vld [vmem:[%s468 + $0xc] sm:$0xf]
  %v473 = vld [vmem:[%s468 + $0x10] sm:$0xf]
  %v474 = vld [vmem:[%s468 + $0x14] sm:$0xf]
  %v475 = vld [vmem:[%s468 + $0x18] sm:$0xf]
  %v476 = vld [vmem:[%s468 + $0x1c] sm:$0xf]
  %v477 = vld [vmem:[%s468 + $0x20] sm:$0xf]
  %v478 = vld [vmem:[%s468 + $0x24] sm:$0xf]
  %v479 = vld [vmem:[%s468 + $0x28] sm:$0xf]
  %v480 = vld [vmem:[%s468 + $0x2c] sm:$0xf]
  %v481 = vld [vmem:[%s468 + $0x30] sm:$0xf]
  %v482 = vld [vmem:[%s468 + $0x34] sm:$0xf]
  %v483 = vld [vmem:[%s468 + $0x38] sm:$0xf]
  %v484 = vld [vmem:[%s468 + $0x3c] sm:$0xf]
  %v485 = vld [vmem:[%s468 + $0x40] sm:$0xf]
  %v486 = vld [vmem:[%s468 + $0x44] sm:$0xf]
  %v487 = vld [vmem:[%s468 + $0x48] sm:$0x7]
  %v507 = vunpack.c.l.b16 %v469
  %v508 = vunpack.c.l.b16 %v470
  %v509 = vunpack.c.l.b16 %v471
  %v510 = vunpack.c.l.b16 %v472
  %v511 = vunpack.c.l.b16 %v473
  %v512 = vunpack.c.l.b16 %v474
  %v513 = vunpack.c.l.b16 %v475
  %v514 = vunpack.c.l.b16 %v476
  %v515 = vunpack.c.l.b16 %v477
  %v516 = vunpack.c.l.b16 %v478
  %v517 = vunpack.c.l.b16 %v479
  %v518 = vunpack.c.l.b16 %v480
  %v519 = vunpack.c.l.b16 %v481
  %v520 = vunpack.c.l.b16 %v482
  %v521 = vunpack.c.l.b16 %v483
  %v522 = vunpack.c.l.b16 %v484
  %v523 = vunpack.c.l.b16 %v485
  %v524 = vunpack.c.l.b16 %v486
  %v525 = vunpack.c.l.b16 %v487
  %v526 = vpack.c.b16 %v508, %v507
  %v527 = vpack.c.b16 %v510, %v509
  %v528 = vpack.c.b16 %v512, %v511
  %v529 = vpack.c.b16 %v514, %v513
  %v530 = vpack.c.b16 %v516, %v515
  %v531 = vpack.c.b16 %v518, %v517
  %v532 = vpack.c.b16 %v520, %v519
  %v533 = vpack.c.b16 %v522, %v521
  %v534 = vpack.c.b16 %v524, %v523
  %v535 = vpack.c.b16 %v525, %v525
  %v546 = vsel %vm106, %v535, 0
  %548 = vmatpush.bf16.msra.mxu0 %v533
  %549 = vmatpush.bf16.msra.mxu0 %v532
  %550 = vmatpush.bf16.msra.mxu0 %v531
  %551 = vmatpush.bf16.msra.mxu0 %v530
  %552 = vmatpush.bf16.msra.mxu0 %v529
  %553 = vmatpush.bf16.msra.mxu0 %v528
  %554 = vmatpush.bf16.msra.mxu0 %v527
  %555 = vmatpush.bf16.msra.mxu0 %v526
  %556 = vmatmul.bf16.gmra.mxu0 %v42
  %v557 = vpop.f32.mrf.mxu0
  %v558 = vadd.f32 0.0, %v557
  %v559 = vpop.f32.mrf.mxu0
  %v560 = vadd.f32 0.0, %v559
  %561 = vdwg.mxu0
  %562 = vmatpush.bf16.msra.mxu0 0
  %563 = vmatpush.bf16.msra.mxu0 0
  %564 = vmatpush.bf16.msra.mxu0 0
  %565 = vmatpush.bf16.msra.mxu0 0
  %566 = vmatpush.bf16.msra.mxu0 0
  %567 = vmatpush.bf16.msra.mxu0 0
  %568 = vmatpush.bf16.msra.mxu0 %v546
  %569 = vmatpush.bf16.msra.mxu0 %v534
  %570 = vmatmul.bf16.gmra.mxu0 %v104
  %v571 = vpop.f32.mrf.mxu0
  %v572 = vadd.f32 %v558, %v571
  %v573 = vpop.f32.mrf.mxu0
  %v574 = vadd.f32 %v560, %v573
  %575 = vdwg.mxu0
  %v576 = vmax.f32 %v466, %v572
  %v577 = vmax.f32 %v467, %v574
  %s578 = scalar_lea.vmem %s0, 380
  %v579 = vld [vmem:[%s578] sm:$0xf]
  %v580 = vld [vmem:[%s578 + $0x4] sm:$0xf]
  %v581 = vld [vmem:[%s578 + $0x8] sm:$0xf]
  %v582 = vld [vmem:[%s578 + $0xc] sm:$0xf]
  %v583 = vld [vmem:[%s578 + $0x10] sm:$0xf]
  %v584 = vld [vmem:[%s578 + $0x14] sm:$0xf]
  %v585 = vld [vmem:[%s578 + $0x18] sm:$0xf]
  %v586 = vld [vmem:[%s578 + $0x1c] sm:$0xf]
  %v587 = vld [vmem:[%s578 + $0x20] sm:$0xf]
  %v588 = vld [vmem:[%s578 + $0x24] sm:$0xf]
  %v589 = vld [vmem:[%s578 + $0x28] sm:$0xf]
  %v590 = vld [vmem:[%s578 + $0x2c] sm:$0xf]
  %v591 = vld [vmem:[%s578 + $0x30] sm:$0xf]
  %v592 = vld [vmem:[%s578 + $0x34] sm:$0xf]
  %v593 = vld [vmem:[%s578 + $0x38] sm:$0xf]
  %v594 = vld [vmem:[%s578 + $0x3c] sm:$0xf]
  %v595 = vld [vmem:[%s578 + $0x40] sm:$0xf]
  %v596 = vld [vmem:[%s578 + $0x44] sm:$0xf]
  %v597 = vld [vmem:[%s578 + $0x48] sm:$0x7]
  %v617 = vunpack.c.l.b16 %v579
  %v618 = vunpack.c.l.b16 %v580
  %v619 = vunpack.c.l.b16 %v581
  %v620 = vunpack.c.l.b16 %v582
  %v621 = vunpack.c.l.b16 %v583
  %v622 = vunpack.c.l.b16 %v584
  %v623 = vunpack.c.l.b16 %v585
  %v624 = vunpack.c.l.b16 %v586
  %v625 = vunpack.c.l.b16 %v587
  %v626 = vunpack.c.l.b16 %v588
  %v627 = vunpack.c.l.b16 %v589
  %v628 = vunpack.c.l.b16 %v590
  %v629 = vunpack.c.l.b16 %v591
  %v630 = vunpack.c.l.b16 %v592
  %v631 = vunpack.c.l.b16 %v593
  %v632 = vunpack.c.l.b16 %v594
  %v633 = vunpack.c.l.b16 %v595
  %v634 = vunpack.c.l.b16 %v596
  %v635 = vunpack.c.l.b16 %v597
  %v636 = vpack.c.b16 %v618, %v617
  %v637 = vpack.c.b16 %v620, %v619
  %v638 = vpack.c.b16 %v622, %v621
  %v639 = vpack.c.b16 %v624, %v623
  %v640 = vpack.c.b16 %v626, %v625
  %v641 = vpack.c.b16 %v628, %v627
  %v642 = vpack.c.b16 %v630, %v629
  %v643 = vpack.c.b16 %v632, %v631
  %v644 = vpack.c.b16 %v634, %v633
  %v645 = vpack.c.b16 %v635, %v635
  %v656 = vsel %vm106, %v645, 0
  %658 = vmatpush.bf16.msra.mxu0 %v643
  %659 = vmatpush.bf16.msra.mxu0 %v642
  %660 = vmatpush.bf16.msra.mxu0 %v641
  %661 = vmatpush.bf16.msra.mxu0 %v640
  %662 = vmatpush.bf16.msra.mxu0 %v639
  %663 = vmatpush.bf16.msra.mxu0 %v638
  %664 = vmatpush.bf16.msra.mxu0 %v637
  %665 = vmatpush.bf16.msra.mxu0 %v636
  %666 = vmatmul.bf16.gmra.mxu0 %v42
  %v667 = vpop.f32.mrf.mxu0
  %v668 = vadd.f32 0.0, %v667
  %v669 = vpop.f32.mrf.mxu0
  %v670 = vadd.f32 0.0, %v669
  %671 = vdwg.mxu0
  %672 = vmatpush.bf16.msra.mxu0 0
  %673 = vmatpush.bf16.msra.mxu0 0
  %674 = vmatpush.bf16.msra.mxu0 0
  %675 = vmatpush.bf16.msra.mxu0 0
  %676 = vmatpush.bf16.msra.mxu0 0
  %677 = vmatpush.bf16.msra.mxu0 0
  %678 = vmatpush.bf16.msra.mxu0 %v656
  %679 = vmatpush.bf16.msra.mxu0 %v644
  %680 = vmatmul.bf16.gmra.mxu0 %v104
  %v681 = vpop.f32.mrf.mxu0
  %v682 = vadd.f32 %v668, %v681
  %v683 = vpop.f32.mrf.mxu0
  %v684 = vadd.f32 %v670, %v683
  %685 = vdwg.mxu0
  %v686 = vmax.f32 %v576, %v682
  %v687 = vmax.f32 %v577, %v684
  %s688 = scalar_lea.vmem %s0, 456
  %v689 = vld [vmem:[%s688] sm:$0xf]
  %v690 = vld [vmem:[%s688 + $0x4] sm:$0xf]
  %v691 = vld [vmem:[%s688 + $0x8] sm:$0xf]
  %v692 = vld [vmem:[%s688 + $0xc] sm:$0xf]
  %v693 = vld [vmem:[%s688 + $0x10] sm:$0xf]
  %v694 = vld [vmem:[%s688 + $0x14] sm:$0xf]
  %v695 = vld [vmem:[%s688 + $0x18] sm:$0xf]
  %v696 = vld [vmem:[%s688 + $0x1c] sm:$0xf]
  %v697 = vld [vmem:[%s688 + $0x20] sm:$0xf]
  %v698 = vld [vmem:[%s688 + $0x24] sm:$0xf]
  %v699 = vld [vmem:[%s688 + $0x28] sm:$0xf]
  %v700 = vld [vmem:[%s688 + $0x2c] sm:$0xf]
  %v701 = vld [vmem:[%s688 + $0x30] sm:$0xf]
  %v702 = vld [vmem:[%s688 + $0x34] sm:$0xf]
  %v703 = vld [vmem:[%s688 + $0x38] sm:$0xf]
  %v704 = vld [vmem:[%s688 + $0x3c] sm:$0xf]
  %v705 = vld [vmem:[%s688 + $0x40] sm:$0xf]
  %v706 = vld [vmem:[%s688 + $0x44] sm:$0xf]
  %v707 = vld [vmem:[%s688 + $0x48] sm:$0x7]
  %v727 = vunpack.c.l.b16 %v689
  %v728 = vunpack.c.l.b16 %v690
  %v729 = vunpack.c.l.b16 %v691
  %v730 = vunpack.c.l.b16 %v692
  %v731 = vunpack.c.l.b16 %v693
  %v732 = vunpack.c.l.b16 %v694
  %v733 = vunpack.c.l.b16 %v695
  %v734 = vunpack.c.l.b16 %v696
  %v735 = vunpack.c.l.b16 %v697
  %v736 = vunpack.c.l.b16 %v698
  %v737 = vunpack.c.l.b16 %v699
  %v738 = vunpack.c.l.b16 %v700
  %v739 = vunpack.c.l.b16 %v701
  %v740 = vunpack.c.l.b16 %v702
  %v741 = vunpack.c.l.b16 %v703
  %v742 = vunpack.c.l.b16 %v704
  %v743 = vunpack.c.l.b16 %v705
  %v744 = vunpack.c.l.b16 %v706
  %v745 = vunpack.c.l.b16 %v707
  %v746 = vpack.c.b16 %v728, %v727
  %v747 = vpack.c.b16 %v730, %v729
  %v748 = vpack.c.b16 %v732, %v731
  %v749 = vpack.c.b16 %v734, %v733
  %v750 = vpack.c.b16 %v736, %v735
  %v751 = vpack.c.b16 %v738, %v737
  %v752 = vpack.c.b16 %v740, %v739
  %v753 = vpack.c.b16 %v742, %v741
  %v754 = vpack.c.b16 %v744, %v743
  %v755 = vpack.c.b16 %v745, %v745
  %v766 = vsel %vm106, %v755, 0
  %768 = vmatpush.bf16.msra.mxu0 %v753
  %769 = vmatpush.bf16.msra.mxu0 %v752
  %770 = vmatpush.bf16.msra.mxu0 %v751
  %771 = vmatpush.bf16.msra.mxu0 %v750
  %772 = vmatpush.bf16.msra.mxu0 %v749
  %773 = vmatpush.bf16.msra.mxu0 %v748
  %774 = vmatpush.bf16.msra.mxu0 %v747
  %775 = vmatpush.bf16.msra.mxu0 %v746
  %776 = vmatmul.bf16.gmra.mxu0 %v42
  %v777 = vpop.f32.mrf.mxu0
  %v778 = vadd.f32 0.0, %v777
  %v779 = vpop.f32.mrf.mxu0
  %v780 = vadd.f32 0.0, %v779
  %781 = vdwg.mxu0
  %782 = vmatpush.bf16.msra.mxu0 0
  %783 = vmatpush.bf16.msra.mxu0 0
  %784 = vmatpush.bf16.msra.mxu0 0
  %785 = vmatpush.bf16.msra.mxu0 0
  %786 = vmatpush.bf16.msra.mxu0 0
  %787 = vmatpush.bf16.msra.mxu0 0
  %788 = vmatpush.bf16.msra.mxu0 %v766
  %789 = vmatpush.bf16.msra.mxu0 %v754
  %790 = vmatmul.bf16.gmra.mxu0 %v104
  %v791 = vpop.f32.mrf.mxu0
  %v792 = vadd.f32 %v778, %v791
  %v793 = vpop.f32.mrf.mxu0
  %v794 = vadd.f32 %v780, %v793
  %795 = vdwg.mxu0
  %v796 = vmax.f32 %v686, %v792
  %v797 = vmax.f32 %v687, %v794
  %s798 = scalar_lea.vmem %s0, 532
  %v799 = vld [vmem:[%s798] sm:$0xf]
  %v800 = vld [vmem:[%s798 + $0x4] sm:$0xf]
  %v801 = vld [vmem:[%s798 + $0x8] sm:$0xf]
  %v802 = vld [vmem:[%s798 + $0xc] sm:$0xf]
  %v803 = vld [vmem:[%s798 + $0x10] sm:$0xf]
  %v804 = vld [vmem:[%s798 + $0x14] sm:$0xf]
  %v805 = vld [vmem:[%s798 + $0x18] sm:$0xf]
  %v806 = vld [vmem:[%s798 + $0x1c] sm:$0xf]
  %v807 = vld [vmem:[%s798 + $0x20] sm:$0xf]
  %v808 = vld [vmem:[%s798 + $0x24] sm:$0xf]
  %v809 = vld [vmem:[%s798 + $0x28] sm:$0xf]
  %v810 = vld [vmem:[%s798 + $0x2c] sm:$0xf]
  %v811 = vld [vmem:[%s798 + $0x30] sm:$0xf]
  %v812 = vld [vmem:[%s798 + $0x34] sm:$0xf]
  %v813 = vld [vmem:[%s798 + $0x38] sm:$0xf]
  %v814 = vld [vmem:[%s798 + $0x3c] sm:$0xf]
  %v815 = vld [vmem:[%s798 + $0x40] sm:$0xf]
  %v816 = vld [vmem:[%s798 + $0x44] sm:$0xf]
  %v817 = vld [vmem:[%s798 + $0x48] sm:$0x7]
  %v837 = vunpack.c.l.b16 %v799
  %v838 = vunpack.c.l.b16 %v800
  %v839 = vunpack.c.l.b16 %v801
  %v840 = vunpack.c.l.b16 %v802
  %v841 = vunpack.c.l.b16 %v803
  %v842 = vunpack.c.l.b16 %v804
  %v843 = vunpack.c.l.b16 %v805
  %v844 = vunpack.c.l.b16 %v806
  %v845 = vunpack.c.l.b16 %v807
  %v846 = vunpack.c.l.b16 %v808
  %v847 = vunpack.c.l.b16 %v809
  %v848 = vunpack.c.l.b16 %v810
  %v849 = vunpack.c.l.b16 %v811
  %v850 = vunpack.c.l.b16 %v812
  %v851 = vunpack.c.l.b16 %v813
  %v852 = vunpack.c.l.b16 %v814
  %v853 = vunpack.c.l.b16 %v815
  %v854 = vunpack.c.l.b16 %v816
  %v855 = vunpack.c.l.b16 %v817
  %v856 = vpack.c.b16 %v838, %v837
  %v857 = vpack.c.b16 %v840, %v839
  %v858 = vpack.c.b16 %v842, %v841
  %v859 = vpack.c.b16 %v844, %v843
  %v860 = vpack.c.b16 %v846, %v845
  %v861 = vpack.c.b16 %v848, %v847
  %v862 = vpack.c.b16 %v850, %v849
  %v863 = vpack.c.b16 %v852, %v851
  %v864 = vpack.c.b16 %v854, %v853
  %v865 = vpack.c.b16 %v855, %v855
  %v876 = vsel %vm106, %v865, 0
  %878 = vmatpush.bf16.msra.mxu0 %v863
  %879 = vmatpush.bf16.msra.mxu0 %v862
  %880 = vmatpush.bf16.msra.mxu0 %v861
  %881 = vmatpush.bf16.msra.mxu0 %v860
  %882 = vmatpush.bf16.msra.mxu0 %v859
  %883 = vmatpush.bf16.msra.mxu0 %v858
  %884 = vmatpush.bf16.msra.mxu0 %v857
  %885 = vmatpush.bf16.msra.mxu0 %v856
  %886 = vmatmul.bf16.gmra.mxu0 %v42
  %v887 = vpop.f32.mrf.mxu0
  %v888 = vadd.f32 0.0, %v887
  %v889 = vpop.f32.mrf.mxu0
  %v890 = vadd.f32 0.0, %v889
  %891 = vdwg.mxu0
  %892 = vmatpush.bf16.msra.mxu0 0
  %893 = vmatpush.bf16.msra.mxu0 0
  %894 = vmatpush.bf16.msra.mxu0 0
  %895 = vmatpush.bf16.msra.mxu0 0
  %896 = vmatpush.bf16.msra.mxu0 0
  %897 = vmatpush.bf16.msra.mxu0 0
  %898 = vmatpush.bf16.msra.mxu0 %v876
  %899 = vmatpush.bf16.msra.mxu0 %v864
  %900 = vmatmul.bf16.gmra.mxu0 %v104
  %v901 = vpop.f32.mrf.mxu0
  %v902 = vadd.f32 %v888, %v901
  %v903 = vpop.f32.mrf.mxu0
  %v904 = vadd.f32 %v890, %v903
  %905 = vdwg.mxu0
  %v906 = vmax.f32 %v796, %v902
  %v907 = vmax.f32 %v797, %v904
  %s908 = scalar_lea.vmem %s0, 608
  %v909 = vld [vmem:[%s908] sm:$0xf]
  %v910 = vld [vmem:[%s908 + $0x4] sm:$0xf]
  %v911 = vld [vmem:[%s908 + $0x8] sm:$0xf]
  %v912 = vld [vmem:[%s908 + $0xc] sm:$0xf]
  %v913 = vld [vmem:[%s908 + $0x10] sm:$0xf]
  %v914 = vld [vmem:[%s908 + $0x14] sm:$0xf]
  %v915 = vld [vmem:[%s908 + $0x18] sm:$0xf]
  %v916 = vld [vmem:[%s908 + $0x1c] sm:$0xf]
  %v917 = vld [vmem:[%s908 + $0x20] sm:$0xf]
  %v918 = vld [vmem:[%s908 + $0x24] sm:$0xf]
  %v919 = vld [vmem:[%s908 + $0x28] sm:$0xf]
  %v920 = vld [vmem:[%s908 + $0x2c] sm:$0xf]
  %v921 = vld [vmem:[%s908 + $0x30] sm:$0xf]
  %v922 = vld [vmem:[%s908 + $0x34] sm:$0xf]
  %v923 = vld [vmem:[%s908 + $0x38] sm:$0xf]
  %v924 = vld [vmem:[%s908 + $0x3c] sm:$0xf]
  %v925 = vld [vmem:[%s908 + $0x40] sm:$0xf]
  %v926 = vld [vmem:[%s908 + $0x44] sm:$0xf]
  %v927 = vld [vmem:[%s908 + $0x48] sm:$0x7]
  %v947 = vunpack.c.l.b16 %v909
  %v948 = vunpack.c.l.b16 %v910
  %v949 = vunpack.c.l.b16 %v911
  %v950 = vunpack.c.l.b16 %v912
  %v951 = vunpack.c.l.b16 %v913
  %v952 = vunpack.c.l.b16 %v914
  %v953 = vunpack.c.l.b16 %v915
  %v954 = vunpack.c.l.b16 %v916
  %v955 = vunpack.c.l.b16 %v917
  %v956 = vunpack.c.l.b16 %v918
  %v957 = vunpack.c.l.b16 %v919
  %v958 = vunpack.c.l.b16 %v920
  %v959 = vunpack.c.l.b16 %v921
  %v960 = vunpack.c.l.b16 %v922
  %v961 = vunpack.c.l.b16 %v923
  %v962 = vunpack.c.l.b16 %v924
  %v963 = vunpack.c.l.b16 %v925
  %v964 = vunpack.c.l.b16 %v926
  %v965 = vunpack.c.l.b16 %v927
  %v966 = vpack.c.b16 %v948, %v947
  %v967 = vpack.c.b16 %v950, %v949
  %v968 = vpack.c.b16 %v952, %v951
  %v969 = vpack.c.b16 %v954, %v953
  %v970 = vpack.c.b16 %v956, %v955
  %v971 = vpack.c.b16 %v958, %v957
  %v972 = vpack.c.b16 %v960, %v959
  %v973 = vpack.c.b16 %v962, %v961
  %v974 = vpack.c.b16 %v964, %v963
  %v975 = vpack.c.b16 %v965, %v965
  %v986 = vsel %vm106, %v975, 0
  %988 = vmatpush.bf16.msra.mxu0 %v973
  %989 = vmatpush.bf16.msra.mxu0 %v972
  %990 = vmatpush.bf16.msra.mxu0 %v971
  %991 = vmatpush.bf16.msra.mxu0 %v970
  %992 = vmatpush.bf16.msra.mxu0 %v969
  %993 = vmatpush.bf16.msra.mxu0 %v968
  %994 = vmatpush.bf16.msra.mxu0 %v967
  %995 = vmatpush.bf16.msra.mxu0 %v966
  %996 = vmatmul.bf16.gmra.mxu0 %v42
  %v997 = vpop.f32.mrf.mxu0
  %v998 = vadd.f32 0.0, %v997
  %v999 = vpop.f32.mrf.mxu0
  %v1000 = vadd.f32 0.0, %v999
  %1001 = vdwg.mxu0
  %1002 = vmatpush.bf16.msra.mxu0 0
  %1003 = vmatpush.bf16.msra.mxu0 0
  %1004 = vmatpush.bf16.msra.mxu0 0
  %1005 = vmatpush.bf16.msra.mxu0 0
  %1006 = vmatpush.bf16.msra.mxu0 0
  %1007 = vmatpush.bf16.msra.mxu0 0
  %1008 = vmatpush.bf16.msra.mxu0 %v986
  %1009 = vmatpush.bf16.msra.mxu0 %v974
  %1010 = vmatmul.bf16.gmra.mxu0 %v104
  %v1011 = vpop.f32.mrf.mxu0
  %v1012 = vadd.f32 %v998, %v1011
  %v1013 = vpop.f32.mrf.mxu0
  %v1014 = vadd.f32 %v1000, %v1013
  %1015 = vdwg.mxu0
  %v1016 = vmax.f32 %v906, %v1012
  %v1017 = vmax.f32 %v907, %v1014
  %s1018 = scalar_lea.vmem %s0, 684
  %v1019 = vld [vmem:[%s1018] sm:$0xf]
  %v1020 = vld [vmem:[%s1018 + $0x4] sm:$0xf]
  %v1021 = vld [vmem:[%s1018 + $0x8] sm:$0xf]
  %v1022 = vld [vmem:[%s1018 + $0xc] sm:$0xf]
  %v1023 = vld [vmem:[%s1018 + $0x10] sm:$0xf]
  %v1024 = vld [vmem:[%s1018 + $0x14] sm:$0xf]
  %v1025 = vld [vmem:[%s1018 + $0x18] sm:$0xf]
  %v1026 = vld [vmem:[%s1018 + $0x1c] sm:$0xf]
  %v1027 = vld [vmem:[%s1018 + $0x20] sm:$0xf]
  %v1028 = vld [vmem:[%s1018 + $0x24] sm:$0xf]
  %v1029 = vld [vmem:[%s1018 + $0x28] sm:$0xf]
  %v1030 = vld [vmem:[%s1018 + $0x2c] sm:$0xf]
  %v1031 = vld [vmem:[%s1018 + $0x30] sm:$0xf]
  %v1032 = vld [vmem:[%s1018 + $0x34] sm:$0xf]
  %v1033 = vld [vmem:[%s1018 + $0x38] sm:$0xf]
  %v1034 = vld [vmem:[%s1018 + $0x3c] sm:$0xf]
  %v1035 = vld [vmem:[%s1018 + $0x40] sm:$0xf]
  %v1036 = vld [vmem:[%s1018 + $0x44] sm:$0xf]
  %v1037 = vld [vmem:[%s1018 + $0x48] sm:$0x7]
  %v1057 = vunpack.c.l.b16 %v1019
  %v1058 = vunpack.c.l.b16 %v1020
  %v1059 = vunpack.c.l.b16 %v1021
  %v1060 = vunpack.c.l.b16 %v1022
  %v1061 = vunpack.c.l.b16 %v1023
  %v1062 = vunpack.c.l.b16 %v1024
  %v1063 = vunpack.c.l.b16 %v1025
  %v1064 = vunpack.c.l.b16 %v1026
  %v1065 = vunpack.c.l.b16 %v1027
  %v1066 = vunpack.c.l.b16 %v1028
  %v1067 = vunpack.c.l.b16 %v1029
  %v1068 = vunpack.c.l.b16 %v1030
  %v1069 = vunpack.c.l.b16 %v1031
  %v1070 = vunpack.c.l.b16 %v1032
  %v1071 = vunpack.c.l.b16 %v1033
  %v1072 = vunpack.c.l.b16 %v1034
  %v1073 = vunpack.c.l.b16 %v1035
  %v1074 = vunpack.c.l.b16 %v1036
  %v1075 = vunpack.c.l.b16 %v1037
  %v1076 = vpack.c.b16 %v1058, %v1057
  %v1077 = vpack.c.b16 %v1060, %v1059
  %v1078 = vpack.c.b16 %v1062, %v1061
  %v1079 = vpack.c.b16 %v1064, %v1063
  %v1080 = vpack.c.b16 %v1066, %v1065
  %v1081 = vpack.c.b16 %v1068, %v1067
  %v1082 = vpack.c.b16 %v1070, %v1069
  %v1083 = vpack.c.b16 %v1072, %v1071
  %v1084 = vpack.c.b16 %v1074, %v1073
  %v1085 = vpack.c.b16 %v1075, %v1075
  %v1096 = vsel %vm106, %v1085, 0
  %1098 = vmatpush.bf16.msra.mxu0 %v1083
  %1099 = vmatpush.bf16.msra.mxu0 %v1082
  %1100 = vmatpush.bf16.msra.mxu0 %v1081
  %1101 = vmatpush.bf16.msra.mxu0 %v1080
  %1102 = vmatpush.bf16.msra.mxu0 %v1079
  %1103 = vmatpush.bf16.msra.mxu0 %v1078
  %1104 = vmatpush.bf16.msra.mxu0 %v1077
  %1105 = vmatpush.bf16.msra.mxu0 %v1076
  %1106 = vmatmul.bf16.gmra.mxu0 %v42
  %v1107 = vpop.f32.mrf.mxu0
  %v1108 = vadd.f32 0.0, %v1107
  %v1109 = vpop.f32.mrf.mxu0
  %v1110 = vadd.f32 0.0, %v1109
  %1111 = vdwg.mxu0
  %1112 = vmatpush.bf16.msra.mxu0 0
  %1113 = vmatpush.bf16.msra.mxu0 0
  %1114 = vmatpush.bf16.msra.mxu0 0
  %1115 = vmatpush.bf16.msra.mxu0 0
  %1116 = vmatpush.bf16.msra.mxu0 0
  %1117 = vmatpush.bf16.msra.mxu0 0
  %1118 = vmatpush.bf16.msra.mxu0 %v1096
  %1119 = vmatpush.bf16.msra.mxu0 %v1084
  %1120 = vmatmul.bf16.gmra.mxu0 %v104
  %v1121 = vpop.f32.mrf.mxu0
  %v1122 = vadd.f32 %v1108, %v1121
  %v1123 = vpop.f32.mrf.mxu0
  %v1124 = vadd.f32 %v1110, %v1123
  %1125 = vdwg.mxu0
  %v1126 = vmax.f32 %v1016, %v1122
  %v1127 = vmax.f32 %v1017, %v1124
  %s1128 = scalar_lea.vmem %s0, 760
  %v1129 = vld [vmem:[%s1128] sm:$0xf]
  %v1130 = vld [vmem:[%s1128 + $0x4] sm:$0xf]
  %v1131 = vld [vmem:[%s1128 + $0x8] sm:$0xf]
  %v1132 = vld [vmem:[%s1128 + $0xc] sm:$0xf]
  %v1133 = vld [vmem:[%s1128 + $0x10] sm:$0xf]
  %v1134 = vld [vmem:[%s1128 + $0x14] sm:$0xf]
  %v1135 = vld [vmem:[%s1128 + $0x18] sm:$0xf]
  %v1136 = vld [vmem:[%s1128 + $0x1c] sm:$0xf]
  %v1137 = vld [vmem:[%s1128 + $0x20] sm:$0xf]
  %v1138 = vld [vmem:[%s1128 + $0x24] sm:$0xf]
  %v1139 = vld [vmem:[%s1128 + $0x28] sm:$0xf]
  %v1140 = vld [vmem:[%s1128 + $0x2c] sm:$0xf]
  %v1141 = vld [vmem:[%s1128 + $0x30] sm:$0xf]
  %v1142 = vld [vmem:[%s1128 + $0x34] sm:$0xf]
  %v1143 = vld [vmem:[%s1128 + $0x38] sm:$0xf]
  %v1144 = vld [vmem:[%s1128 + $0x3c] sm:$0xf]
  %v1145 = vld [vmem:[%s1128 + $0x40] sm:$0xf]
  %v1146 = vld [vmem:[%s1128 + $0x44] sm:$0xf]
  %v1147 = vld [vmem:[%s1128 + $0x48] sm:$0x7]
  %v1167 = vunpack.c.l.b16 %v1129
  %v1168 = vunpack.c.l.b16 %v1130
  %v1169 = vunpack.c.l.b16 %v1131
  %v1170 = vunpack.c.l.b16 %v1132
  %v1171 = vunpack.c.l.b16 %v1133
  %v1172 = vunpack.c.l.b16 %v1134
  %v1173 = vunpack.c.l.b16 %v1135
  %v1174 = vunpack.c.l.b16 %v1136
  %v1175 = vunpack.c.l.b16 %v1137
  %v1176 = vunpack.c.l.b16 %v1138
  %v1177 = vunpack.c.l.b16 %v1139
  %v1178 = vunpack.c.l.b16 %v1140
  %v1179 = vunpack.c.l.b16 %v1141
  %v1180 = vunpack.c.l.b16 %v1142
  %v1181 = vunpack.c.l.b16 %v1143
  %v1182 = vunpack.c.l.b16 %v1144
  %v1183 = vunpack.c.l.b16 %v1145
  %v1184 = vunpack.c.l.b16 %v1146
  %v1185 = vunpack.c.l.b16 %v1147
  %v1186 = vpack.c.b16 %v1168, %v1167
  %v1187 = vpack.c.b16 %v1170, %v1169
  %v1188 = vpack.c.b16 %v1172, %v1171
  %v1189 = vpack.c.b16 %v1174, %v1173
  %v1190 = vpack.c.b16 %v1176, %v1175
  %v1191 = vpack.c.b16 %v1178, %v1177
  %v1192 = vpack.c.b16 %v1180, %v1179
  %v1193 = vpack.c.b16 %v1182, %v1181
  %v1194 = vpack.c.b16 %v1184, %v1183
  %v1195 = vpack.c.b16 %v1185, %v1185
  %v1206 = vsel %vm106, %v1195, 0
  %1208 = vmatpush.bf16.msra.mxu0 %v1193
  %1209 = vmatpush.bf16.msra.mxu0 %v1192
  %1210 = vmatpush.bf16.msra.mxu0 %v1191
  %1211 = vmatpush.bf16.msra.mxu0 %v1190
  %1212 = vmatpush.bf16.msra.mxu0 %v1189
  %1213 = vmatpush.bf16.msra.mxu0 %v1188
  %1214 = vmatpush.bf16.msra.mxu0 %v1187
  %1215 = vmatpush.bf16.msra.mxu0 %v1186
  %1216 = vmatmul.bf16.gmra.mxu0 %v42
  %v1217 = vpop.f32.mrf.mxu0
  %v1218 = vadd.f32 0.0, %v1217
  %v1219 = vpop.f32.mrf.mxu0
  %v1220 = vadd.f32 0.0, %v1219
  %1221 = vdwg.mxu0
  %1222 = vmatpush.bf16.msra.mxu0 0
  %1223 = vmatpush.bf16.msra.mxu0 0
  %1224 = vmatpush.bf16.msra.mxu0 0
  %1225 = vmatpush.bf16.msra.mxu0 0
  %1226 = vmatpush.bf16.msra.mxu0 0
  %1227 = vmatpush.bf16.msra.mxu0 0
  %1228 = vmatpush.bf16.msra.mxu0 %v1206
  %1229 = vmatpush.bf16.msra.mxu0 %v1194
  %1230 = vmatmul.bf16.gmra.mxu0 %v104
  %v1231 = vpop.f32.mrf.mxu0
  %v1232 = vadd.f32 %v1218, %v1231
  %v1233 = vpop.f32.mrf.mxu0
  %v1234 = vadd.f32 %v1220, %v1233
  %1235 = vdwg.mxu0
  %v1236 = vmax.f32 %v1126, %v1232
  %v1237 = vmax.f32 %v1127, %v1234
  %s1238 = scalar_lea.vmem %s0, 836
  %v1239 = vld [vmem:[%s1238] sm:$0xf]
  %v1240 = vld [vmem:[%s1238 + $0x4] sm:$0xf]
  %v1241 = vld [vmem:[%s1238 + $0x8] sm:$0xf]
  %v1242 = vld [vmem:[%s1238 + $0xc] sm:$0xf]
  %v1243 = vld [vmem:[%s1238 + $0x10] sm:$0xf]
  %v1244 = vld [vmem:[%s1238 + $0x14] sm:$0xf]
  %v1245 = vld [vmem:[%s1238 + $0x18] sm:$0xf]
  %v1246 = vld [vmem:[%s1238 + $0x1c] sm:$0xf]
  %v1247 = vld [vmem:[%s1238 + $0x20] sm:$0xf]
  %v1248 = vld [vmem:[%s1238 + $0x24] sm:$0xf]
  %v1249 = vld [vmem:[%s1238 + $0x28] sm:$0xf]
  %v1250 = vld [vmem:[%s1238 + $0x2c] sm:$0xf]
  %v1251 = vld [vmem:[%s1238 + $0x30] sm:$0xf]
  %v1252 = vld [vmem:[%s1238 + $0x34] sm:$0xf]
  %v1253 = vld [vmem:[%s1238 + $0x38] sm:$0xf]
  %v1254 = vld [vmem:[%s1238 + $0x3c] sm:$0xf]
  %v1255 = vld [vmem:[%s1238 + $0x40] sm:$0xf]
  %v1256 = vld [vmem:[%s1238 + $0x44] sm:$0xf]
  %v1257 = vld [vmem:[%s1238 + $0x48] sm:$0x7]
  %v1277 = vunpack.c.l.b16 %v1239
  %v1278 = vunpack.c.l.b16 %v1240
  %v1279 = vunpack.c.l.b16 %v1241
  %v1280 = vunpack.c.l.b16 %v1242
  %v1281 = vunpack.c.l.b16 %v1243
  %v1282 = vunpack.c.l.b16 %v1244
  %v1283 = vunpack.c.l.b16 %v1245
  %v1284 = vunpack.c.l.b16 %v1246
  %v1285 = vunpack.c.l.b16 %v1247
  %v1286 = vunpack.c.l.b16 %v1248
  %v1287 = vunpack.c.l.b16 %v1249
  %v1288 = vunpack.c.l.b16 %v1250
  %v1289 = vunpack.c.l.b16 %v1251
  %v1290 = vunpack.c.l.b16 %v1252
  %v1291 = vunpack.c.l.b16 %v1253
  %v1292 = vunpack.c.l.b16 %v1254
  %v1293 = vunpack.c.l.b16 %v1255
  %v1294 = vunpack.c.l.b16 %v1256
  %v1295 = vunpack.c.l.b16 %v1257
  %v1296 = vpack.c.b16 %v1278, %v1277
  %v1297 = vpack.c.b16 %v1280, %v1279
  %v1298 = vpack.c.b16 %v1282, %v1281
  %v1299 = vpack.c.b16 %v1284, %v1283
  %v1300 = vpack.c.b16 %v1286, %v1285
  %v1301 = vpack.c.b16 %v1288, %v1287
  %v1302 = vpack.c.b16 %v1290, %v1289
  %v1303 = vpack.c.b16 %v1292, %v1291
  %v1304 = vpack.c.b16 %v1294, %v1293
  %v1305 = vpack.c.b16 %v1295, %v1295
  %v1316 = vsel %vm106, %v1305, 0
  %1318 = vmatpush.bf16.msra.mxu0 %v1303
  %1319 = vmatpush.bf16.msra.mxu0 %v1302
  %1320 = vmatpush.bf16.msra.mxu0 %v1301
  %1321 = vmatpush.bf16.msra.mxu0 %v1300
  %1322 = vmatpush.bf16.msra.mxu0 %v1299
  %1323 = vmatpush.bf16.msra.mxu0 %v1298
  %1324 = vmatpush.bf16.msra.mxu0 %v1297
  %1325 = vmatpush.bf16.msra.mxu0 %v1296
  %1326 = vmatmul.bf16.gmra.mxu0 %v42
  %v1327 = vpop.f32.mrf.mxu0
  %v1328 = vadd.f32 0.0, %v1327
  %v1329 = vpop.f32.mrf.mxu0
  %v1330 = vadd.f32 0.0, %v1329
  %1331 = vdwg.mxu0
  %1332 = vmatpush.bf16.msra.mxu0 0
  %1333 = vmatpush.bf16.msra.mxu0 0
  %1334 = vmatpush.bf16.msra.mxu0 0
  %1335 = vmatpush.bf16.msra.mxu0 0
  %1336 = vmatpush.bf16.msra.mxu0 0
  %1337 = vmatpush.bf16.msra.mxu0 0
  %1338 = vmatpush.bf16.msra.mxu0 %v1316
  %1339 = vmatpush.bf16.msra.mxu0 %v1304
  %1340 = vmatmul.bf16.gmra.mxu0 %v104
  %v1341 = vpop.f32.mrf.mxu0
  %v1342 = vadd.f32 %v1328, %v1341
  %v1343 = vpop.f32.mrf.mxu0
  %v1344 = vadd.f32 %v1330, %v1343
  %1345 = vdwg.mxu0
  %v1346 = vmax.f32 %v1236, %v1342
  %v1347 = vmax.f32 %v1237, %v1344
  %s1348 = scalar_lea.vmem %s0, 912
  %v1349 = vld [vmem:[%s1348] sm:$0xf]
  %v1350 = vld [vmem:[%s1348 + $0x4] sm:$0xf]
  %v1351 = vld [vmem:[%s1348 + $0x8] sm:$0xf]
  %v1352 = vld [vmem:[%s1348 + $0xc] sm:$0xf]
  %v1353 = vld [vmem:[%s1348 + $0x10] sm:$0xf]
  %v1354 = vld [vmem:[%s1348 + $0x14] sm:$0xf]
  %v1355 = vld [vmem:[%s1348 + $0x18] sm:$0xf]
  %v1356 = vld [vmem:[%s1348 + $0x1c] sm:$0xf]
  %v1357 = vld [vmem:[%s1348 + $0x20] sm:$0xf]
  %v1358 = vld [vmem:[%s1348 + $0x24] sm:$0xf]
  %v1359 = vld [vmem:[%s1348 + $0x28] sm:$0xf]
  %v1360 = vld [vmem:[%s1348 + $0x2c] sm:$0xf]
  %v1361 = vld [vmem:[%s1348 + $0x30] sm:$0xf]
  %v1362 = vld [vmem:[%s1348 + $0x34] sm:$0xf]
  %v1363 = vld [vmem:[%s1348 + $0x38] sm:$0xf]
  %v1364 = vld [vmem:[%s1348 + $0x3c] sm:$0xf]
  %v1365 = vld [vmem:[%s1348 + $0x40] sm:$0xf]
  %v1366 = vld [vmem:[%s1348 + $0x44] sm:$0xf]
  %v1367 = vld [vmem:[%s1348 + $0x48] sm:$0x7]
  %v1387 = vunpack.c.l.b16 %v1349
  %v1388 = vunpack.c.l.b16 %v1350
  %v1389 = vunpack.c.l.b16 %v1351
  %v1390 = vunpack.c.l.b16 %v1352
  %v1391 = vunpack.c.l.b16 %v1353
  %v1392 = vunpack.c.l.b16 %v1354
  %v1393 = vunpack.c.l.b16 %v1355
  %v1394 = vunpack.c.l.b16 %v1356
  %v1395 = vunpack.c.l.b16 %v1357
  %v1396 = vunpack.c.l.b16 %v1358
  %v1397 = vunpack.c.l.b16 %v1359
  %v1398 = vunpack.c.l.b16 %v1360
  %v1399 = vunpack.c.l.b16 %v1361
  %v1400 = vunpack.c.l.b16 %v1362
  %v1401 = vunpack.c.l.b16 %v1363
  %v1402 = vunpack.c.l.b16 %v1364
  %v1403 = vunpack.c.l.b16 %v1365
  %v1404 = vunpack.c.l.b16 %v1366
  %v1405 = vunpack.c.l.b16 %v1367
  %v1406 = vpack.c.b16 %v1388, %v1387
  %v1407 = vpack.c.b16 %v1390, %v1389
  %v1408 = vpack.c.b16 %v1392, %v1391
  %v1409 = vpack.c.b16 %v1394, %v1393
  %v1410 = vpack.c.b16 %v1396, %v1395
  %v1411 = vpack.c.b16 %v1398, %v1397
  %v1412 = vpack.c.b16 %v1400, %v1399
  %v1413 = vpack.c.b16 %v1402, %v1401
  %v1414 = vpack.c.b16 %v1404, %v1403
  %v1415 = vpack.c.b16 %v1405, %v1405
  %v1426 = vsel %vm106, %v1415, 0
  %1428 = vmatpush.bf16.msra.mxu0 %v1413
  %1429 = vmatpush.bf16.msra.mxu0 %v1412
  %1430 = vmatpush.bf16.msra.mxu0 %v1411
  %1431 = vmatpush.bf16.msra.mxu0 %v1410
  %1432 = vmatpush.bf16.msra.mxu0 %v1409
  %1433 = vmatpush.bf16.msra.mxu0 %v1408
  %1434 = vmatpush.bf16.msra.mxu0 %v1407
  %1435 = vmatpush.bf16.msra.mxu0 %v1406
  %1436 = vmatmul.bf16.gmra.mxu0 %v42
  %v1437 = vpop.f32.mrf.mxu0
  %v1438 = vadd.f32 0.0, %v1437
  %v1439 = vpop.f32.mrf.mxu0
  %v1440 = vadd.f32 0.0, %v1439
  %1441 = vdwg.mxu0
  %1442 = vmatpush.bf16.msra.mxu0 0
  %1443 = vmatpush.bf16.msra.mxu0 0
  %1444 = vmatpush.bf16.msra.mxu0 0
  %1445 = vmatpush.bf16.msra.mxu0 0
  %1446 = vmatpush.bf16.msra.mxu0 0
  %1447 = vmatpush.bf16.msra.mxu0 0
  %1448 = vmatpush.bf16.msra.mxu0 %v1426
  %1449 = vmatpush.bf16.msra.mxu0 %v1414
  %1450 = vmatmul.bf16.gmra.mxu0 %v104
  %v1451 = vpop.f32.mrf.mxu0
  %v1452 = vadd.f32 %v1438, %v1451
  %v1453 = vpop.f32.mrf.mxu0
  %v1454 = vadd.f32 %v1440, %v1453
  %1455 = vdwg.mxu0
  %v1456 = vmax.f32 %v1346, %v1452
  %v1457 = vmax.f32 %v1347, %v1454
  %s1458 = scalar_lea.vmem %s0, 988
  %v1459 = vld [vmem:[%s1458] sm:$0xf]
  %v1460 = vld [vmem:[%s1458 + $0x4] sm:$0xf]
  %v1461 = vld [vmem:[%s1458 + $0x8] sm:$0xf]
  %v1462 = vld [vmem:[%s1458 + $0xc] sm:$0xf]
  %v1463 = vld [vmem:[%s1458 + $0x10] sm:$0xf]
  %v1464 = vld [vmem:[%s1458 + $0x14] sm:$0xf]
  %v1465 = vld [vmem:[%s1458 + $0x18] sm:$0xf]
  %v1466 = vld [vmem:[%s1458 + $0x1c] sm:$0xf]
  %v1467 = vld [vmem:[%s1458 + $0x20] sm:$0xf]
  %v1468 = vld [vmem:[%s1458 + $0x24] sm:$0xf]
  %v1469 = vld [vmem:[%s1458 + $0x28] sm:$0xf]
  %v1470 = vld [vmem:[%s1458 + $0x2c] sm:$0xf]
  %v1471 = vld [vmem:[%s1458 + $0x30] sm:$0xf]
  %v1472 = vld [vmem:[%s1458 + $0x34] sm:$0xf]
  %v1473 = vld [vmem:[%s1458 + $0x38] sm:$0xf]
  %v1474 = vld [vmem:[%s1458 + $0x3c] sm:$0xf]
  %v1475 = vld [vmem:[%s1458 + $0x40] sm:$0xf]
  %v1476 = vld [vmem:[%s1458 + $0x44] sm:$0xf]
  %v1477 = vld [vmem:[%s1458 + $0x48] sm:$0x7]
  %v1497 = vunpack.c.l.b16 %v1459
  %v1498 = vunpack.c.l.b16 %v1460
  %v1499 = vunpack.c.l.b16 %v1461
  %v1500 = vunpack.c.l.b16 %v1462
  %v1501 = vunpack.c.l.b16 %v1463
  %v1502 = vunpack.c.l.b16 %v1464
  %v1503 = vunpack.c.l.b16 %v1465
  %v1504 = vunpack.c.l.b16 %v1466
  %v1505 = vunpack.c.l.b16 %v1467
  %v1506 = vunpack.c.l.b16 %v1468
  %v1507 = vunpack.c.l.b16 %v1469
  %v1508 = vunpack.c.l.b16 %v1470
  %v1509 = vunpack.c.l.b16 %v1471
  %v1510 = vunpack.c.l.b16 %v1472
  %v1511 = vunpack.c.l.b16 %v1473
  %v1512 = vunpack.c.l.b16 %v1474
  %v1513 = vunpack.c.l.b16 %v1475
  %v1514 = vunpack.c.l.b16 %v1476
  %v1515 = vunpack.c.l.b16 %v1477
  %v1516 = vpack.c.b16 %v1498, %v1497
  %v1517 = vpack.c.b16 %v1500, %v1499
  %v1518 = vpack.c.b16 %v1502, %v1501
  %v1519 = vpack.c.b16 %v1504, %v1503
  %v1520 = vpack.c.b16 %v1506, %v1505
  %v1521 = vpack.c.b16 %v1508, %v1507
  %v1522 = vpack.c.b16 %v1510, %v1509
  %v1523 = vpack.c.b16 %v1512, %v1511
  %v1524 = vpack.c.b16 %v1514, %v1513
  %v1525 = vpack.c.b16 %v1515, %v1515
  %v1536 = vsel %vm106, %v1525, 0
  %1538 = vmatpush.bf16.msra.mxu0 %v1523
  %1539 = vmatpush.bf16.msra.mxu0 %v1522
  %1540 = vmatpush.bf16.msra.mxu0 %v1521
  %1541 = vmatpush.bf16.msra.mxu0 %v1520
  %1542 = vmatpush.bf16.msra.mxu0 %v1519
  %1543 = vmatpush.bf16.msra.mxu0 %v1518
  %1544 = vmatpush.bf16.msra.mxu0 %v1517
  %1545 = vmatpush.bf16.msra.mxu0 %v1516
  %1546 = vmatmul.bf16.gmra.mxu0 %v42
  %v1547 = vpop.f32.mrf.mxu0
  %v1548 = vadd.f32 0.0, %v1547
  %v1549 = vpop.f32.mrf.mxu0
  %v1550 = vadd.f32 0.0, %v1549
  %1551 = vdwg.mxu0
  %1552 = vmatpush.bf16.msra.mxu0 0
  %1553 = vmatpush.bf16.msra.mxu0 0
  %1554 = vmatpush.bf16.msra.mxu0 0
  %1555 = vmatpush.bf16.msra.mxu0 0
  %1556 = vmatpush.bf16.msra.mxu0 0
  %1557 = vmatpush.bf16.msra.mxu0 0
  %1558 = vmatpush.bf16.msra.mxu0 %v1536
  %1559 = vmatpush.bf16.msra.mxu0 %v1524
  %1560 = vmatmul.bf16.gmra.mxu0 %v104
  %v1561 = vpop.f32.mrf.mxu0
  %v1562 = vadd.f32 %v1548, %v1561
  %v1563 = vpop.f32.mrf.mxu0
  %v1564 = vadd.f32 %v1550, %v1563
  %1565 = vdwg.mxu0
  %v1566 = vmax.f32 %v1456, %v1562
  %v1567 = vmax.f32 %v1457, %v1564
  %s1568 = scalar_lea.vmem %s0, 1064
  %v1569 = vld [vmem:[%s1568] sm:$0xf]
  %v1570 = vld [vmem:[%s1568 + $0x4] sm:$0xf]
  %v1571 = vld [vmem:[%s1568 + $0x8] sm:$0xf]
  %v1572 = vld [vmem:[%s1568 + $0xc] sm:$0xf]
  %v1573 = vld [vmem:[%s1568 + $0x10] sm:$0xf]
  %v1574 = vld [vmem:[%s1568 + $0x14] sm:$0xf]
  %v1575 = vld [vmem:[%s1568 + $0x18] sm:$0xf]
  %v1576 = vld [vmem:[%s1568 + $0x1c] sm:$0xf]
  %v1577 = vld [vmem:[%s1568 + $0x20] sm:$0xf]
  %v1578 = vld [vmem:[%s1568 + $0x24] sm:$0xf]
  %v1579 = vld [vmem:[%s1568 + $0x28] sm:$0xf]
  %v1580 = vld [vmem:[%s1568 + $0x2c] sm:$0xf]
  %v1581 = vld [vmem:[%s1568 + $0x30] sm:$0xf]
  %v1582 = vld [vmem:[%s1568 + $0x34] sm:$0xf]
  %v1583 = vld [vmem:[%s1568 + $0x38] sm:$0xf]
  %v1584 = vld [vmem:[%s1568 + $0x3c] sm:$0xf]
  %v1585 = vld [vmem:[%s1568 + $0x40] sm:$0xf]
  %v1586 = vld [vmem:[%s1568 + $0x44] sm:$0xf]
  %v1587 = vld [vmem:[%s1568 + $0x48] sm:$0x7]
  %v1607 = vunpack.c.l.b16 %v1569
  %v1608 = vunpack.c.l.b16 %v1570
  %v1609 = vunpack.c.l.b16 %v1571
  %v1610 = vunpack.c.l.b16 %v1572
  %v1611 = vunpack.c.l.b16 %v1573
  %v1612 = vunpack.c.l.b16 %v1574
  %v1613 = vunpack.c.l.b16 %v1575
  %v1614 = vunpack.c.l.b16 %v1576
  %v1615 = vunpack.c.l.b16 %v1577
  %v1616 = vunpack.c.l.b16 %v1578
  %v1617 = vunpack.c.l.b16 %v1579
  %v1618 = vunpack.c.l.b16 %v1580
  %v1619 = vunpack.c.l.b16 %v1581
  %v1620 = vunpack.c.l.b16 %v1582
  %v1621 = vunpack.c.l.b16 %v1583
  %v1622 = vunpack.c.l.b16 %v1584
  %v1623 = vunpack.c.l.b16 %v1585
  %v1624 = vunpack.c.l.b16 %v1586
  %v1625 = vunpack.c.l.b16 %v1587
  %v1626 = vpack.c.b16 %v1608, %v1607
  %v1627 = vpack.c.b16 %v1610, %v1609
  %v1628 = vpack.c.b16 %v1612, %v1611
  %v1629 = vpack.c.b16 %v1614, %v1613
  %v1630 = vpack.c.b16 %v1616, %v1615
  %v1631 = vpack.c.b16 %v1618, %v1617
  %v1632 = vpack.c.b16 %v1620, %v1619
  %v1633 = vpack.c.b16 %v1622, %v1621
  %v1634 = vpack.c.b16 %v1624, %v1623
  %v1635 = vpack.c.b16 %v1625, %v1625
  %v1646 = vsel %vm106, %v1635, 0
  %1648 = vmatpush.bf16.msra.mxu0 %v1633
  %1649 = vmatpush.bf16.msra.mxu0 %v1632
  %1650 = vmatpush.bf16.msra.mxu0 %v1631
  %1651 = vmatpush.bf16.msra.mxu0 %v1630
  %1652 = vmatpush.bf16.msra.mxu0 %v1629
  %1653 = vmatpush.bf16.msra.mxu0 %v1628
  %1654 = vmatpush.bf16.msra.mxu0 %v1627
  %1655 = vmatpush.bf16.msra.mxu0 %v1626
  %1656 = vmatmul.bf16.gmra.mxu0 %v42
  %v1657 = vpop.f32.mrf.mxu0
  %v1658 = vadd.f32 0.0, %v1657
  %v1659 = vpop.f32.mrf.mxu0
  %v1660 = vadd.f32 0.0, %v1659
  %1661 = vdwg.mxu0
  %1662 = vmatpush.bf16.msra.mxu0 0
  %1663 = vmatpush.bf16.msra.mxu0 0
  %1664 = vmatpush.bf16.msra.mxu0 0
  %1665 = vmatpush.bf16.msra.mxu0 0
  %1666 = vmatpush.bf16.msra.mxu0 0
  %1667 = vmatpush.bf16.msra.mxu0 0
  %1668 = vmatpush.bf16.msra.mxu0 %v1646
  %1669 = vmatpush.bf16.msra.mxu0 %v1634
  %1670 = vmatmul.bf16.gmra.mxu0 %v104
  %v1671 = vpop.f32.mrf.mxu0
  %v1672 = vadd.f32 %v1658, %v1671
  %v1673 = vpop.f32.mrf.mxu0
  %v1674 = vadd.f32 %v1660, %v1673
  %1675 = vdwg.mxu0
  %v1676 = vmax.f32 %v1566, %v1672
  %v1677 = vmax.f32 %v1567, %v1674
  %s1678 = scalar_lea.vmem %s0, 1140
  %v1679 = vld [vmem:[%s1678] sm:$0xf]
  %v1680 = vld [vmem:[%s1678 + $0x4] sm:$0xf]
  %v1681 = vld [vmem:[%s1678 + $0x8] sm:$0xf]
  %v1682 = vld [vmem:[%s1678 + $0xc] sm:$0xf]
  %v1683 = vld [vmem:[%s1678 + $0x10] sm:$0xf]
  %v1684 = vld [vmem:[%s1678 + $0x14] sm:$0xf]
  %v1685 = vld [vmem:[%s1678 + $0x18] sm:$0xf]
  %v1686 = vld [vmem:[%s1678 + $0x1c] sm:$0xf]
  %v1687 = vld [vmem:[%s1678 + $0x20] sm:$0xf]
  %v1688 = vld [vmem:[%s1678 + $0x24] sm:$0xf]
  %v1689 = vld [vmem:[%s1678 + $0x28] sm:$0xf]
  %v1690 = vld [vmem:[%s1678 + $0x2c] sm:$0xf]
  %v1691 = vld [vmem:[%s1678 + $0x30] sm:$0xf]
  %v1692 = vld [vmem:[%s1678 + $0x34] sm:$0xf]
  %v1693 = vld [vmem:[%s1678 + $0x38] sm:$0xf]
  %v1694 = vld [vmem:[%s1678 + $0x3c] sm:$0xf]
  %v1695 = vld [vmem:[%s1678 + $0x40] sm:$0xf]
  %v1696 = vld [vmem:[%s1678 + $0x44] sm:$0xf]
  %v1697 = vld [vmem:[%s1678 + $0x48] sm:$0x7]
  %v1717 = vunpack.c.l.b16 %v1679
  %v1718 = vunpack.c.l.b16 %v1680
  %v1719 = vunpack.c.l.b16 %v1681
  %v1720 = vunpack.c.l.b16 %v1682
  %v1721 = vunpack.c.l.b16 %v1683
  %v1722 = vunpack.c.l.b16 %v1684
  %v1723 = vunpack.c.l.b16 %v1685
  %v1724 = vunpack.c.l.b16 %v1686
  %v1725 = vunpack.c.l.b16 %v1687
  %v1726 = vunpack.c.l.b16 %v1688
  %v1727 = vunpack.c.l.b16 %v1689
  %v1728 = vunpack.c.l.b16 %v1690
  %v1729 = vunpack.c.l.b16 %v1691
  %v1730 = vunpack.c.l.b16 %v1692
  %v1731 = vunpack.c.l.b16 %v1693
  %v1732 = vunpack.c.l.b16 %v1694
  %v1733 = vunpack.c.l.b16 %v1695
  %v1734 = vunpack.c.l.b16 %v1696
  %v1735 = vunpack.c.l.b16 %v1697
  %v1736 = vpack.c.b16 %v1718, %v1717
  %v1737 = vpack.c.b16 %v1720, %v1719
  %v1738 = vpack.c.b16 %v1722, %v1721
  %v1739 = vpack.c.b16 %v1724, %v1723
  %v1740 = vpack.c.b16 %v1726, %v1725
  %v1741 = vpack.c.b16 %v1728, %v1727
  %v1742 = vpack.c.b16 %v1730, %v1729
  %v1743 = vpack.c.b16 %v1732, %v1731
  %v1744 = vpack.c.b16 %v1734, %v1733
  %v1745 = vpack.c.b16 %v1735, %v1735
  %v1756 = vsel %vm106, %v1745, 0
  %1758 = vmatpush.bf16.msra.mxu0 %v1743
  %1759 = vmatpush.bf16.msra.mxu0 %v1742
  %1760 = vmatpush.bf16.msra.mxu0 %v1741
  %1761 = vmatpush.bf16.msra.mxu0 %v1740
  %1762 = vmatpush.bf16.msra.mxu0 %v1739
  %1763 = vmatpush.bf16.msra.mxu0 %v1738
  %1764 = vmatpush.bf16.msra.mxu0 %v1737
  %1765 = vmatpush.bf16.msra.mxu0 %v1736
  %1766 = vmatmul.bf16.gmra.mxu0 %v42
  %v1767 = vpop.f32.mrf.mxu0
  %v1768 = vadd.f32 0.0, %v1767
  %v1769 = vpop.f32.mrf.mxu0
  %v1770 = vadd.f32 0.0, %v1769
  %1771 = vdwg.mxu0
  %1772 = vmatpush.bf16.msra.mxu0 0
  %1773 = vmatpush.bf16.msra.mxu0 0
  %1774 = vmatpush.bf16.msra.mxu0 0
  %1775 = vmatpush.bf16.msra.mxu0 0
  %1776 = vmatpush.bf16.msra.mxu0 0
  %1777 = vmatpush.bf16.msra.mxu0 0
  %1778 = vmatpush.bf16.msra.mxu0 %v1756
  %1779 = vmatpush.bf16.msra.mxu0 %v1744
  %1780 = vmatmul.bf16.gmra.mxu0 %v104
  %v1781 = vpop.f32.mrf.mxu0
  %v1782 = vadd.f32 %v1768, %v1781
  %v1783 = vpop.f32.mrf.mxu0
  %v1784 = vadd.f32 %v1770, %v1783
  %1785 = vdwg.mxu0
  %v1786 = vmax.f32 %v1676, %v1782
  %v1787 = vmax.f32 %v1677, %v1784
  %s1788 = scalar_lea.vmem %s0, 1216
  %v1789 = vld [vmem:[%s1788] sm:$0xf]
  %v1790 = vld [vmem:[%s1788 + $0x4] sm:$0xf]
  %v1791 = vld [vmem:[%s1788 + $0x8] sm:$0xf]
  %v1792 = vld [vmem:[%s1788 + $0xc] sm:$0xf]
  %v1793 = vld [vmem:[%s1788 + $0x10] sm:$0xf]
  %v1794 = vld [vmem:[%s1788 + $0x14] sm:$0xf]
  %v1795 = vld [vmem:[%s1788 + $0x18] sm:$0xf]
  %v1796 = vld [vmem:[%s1788 + $0x1c] sm:$0xf]
  %v1797 = vld [vmem:[%s1788 + $0x20] sm:$0xf]
  %v1798 = vld [vmem:[%s1788 + $0x24] sm:$0xf]
  %v1799 = vld [vmem:[%s1788 + $0x28] sm:$0xf]
  %v1800 = vld [vmem:[%s1788 + $0x2c] sm:$0xf]
  %v1801 = vld [vmem:[%s1788 + $0x30] sm:$0xf]
  %v1802 = vld [vmem:[%s1788 + $0x34] sm:$0xf]
  %v1803 = vld [vmem:[%s1788 + $0x38] sm:$0xf]
  %v1804 = vld [vmem:[%s1788 + $0x3c] sm:$0xf]
  %v1805 = vld [vmem:[%s1788 + $0x40] sm:$0xf]
  %v1806 = vld [vmem:[%s1788 + $0x44] sm:$0xf]
  %v1807 = vld [vmem:[%s1788 + $0x48] sm:$0x7]
  %v1827 = vunpack.c.l.b16 %v1789
  %v1828 = vunpack.c.l.b16 %v1790
  %v1829 = vunpack.c.l.b16 %v1791
  %v1830 = vunpack.c.l.b16 %v1792
  %v1831 = vunpack.c.l.b16 %v1793
  %v1832 = vunpack.c.l.b16 %v1794
  %v1833 = vunpack.c.l.b16 %v1795
  %v1834 = vunpack.c.l.b16 %v1796
  %v1835 = vunpack.c.l.b16 %v1797
  %v1836 = vunpack.c.l.b16 %v1798
  %v1837 = vunpack.c.l.b16 %v1799
  %v1838 = vunpack.c.l.b16 %v1800
  %v1839 = vunpack.c.l.b16 %v1801
  %v1840 = vunpack.c.l.b16 %v1802
  %v1841 = vunpack.c.l.b16 %v1803
  %v1842 = vunpack.c.l.b16 %v1804
  %v1843 = vunpack.c.l.b16 %v1805
  %v1844 = vunpack.c.l.b16 %v1806
  %v1845 = vunpack.c.l.b16 %v1807
  %v1846 = vpack.c.b16 %v1828, %v1827
  %v1847 = vpack.c.b16 %v1830, %v1829
  %v1848 = vpack.c.b16 %v1832, %v1831
  %v1849 = vpack.c.b16 %v1834, %v1833
  %v1850 = vpack.c.b16 %v1836, %v1835
  %v1851 = vpack.c.b16 %v1838, %v1837
  %v1852 = vpack.c.b16 %v1840, %v1839
  %v1853 = vpack.c.b16 %v1842, %v1841
  %v1854 = vpack.c.b16 %v1844, %v1843
  %v1855 = vpack.c.b16 %v1845, %v1845
  %v1866 = vsel %vm106, %v1855, 0
  %1868 = vmatpush.bf16.msra.mxu0 %v1853
  %1869 = vmatpush.bf16.msra.mxu0 %v1852
  %1870 = vmatpush.bf16.msra.mxu0 %v1851
  %1871 = vmatpush.bf16.msra.mxu0 %v1850
  %1872 = vmatpush.bf16.msra.mxu0 %v1849
  %1873 = vmatpush.bf16.msra.mxu0 %v1848
  %1874 = vmatpush.bf16.msra.mxu0 %v1847
  %1875 = vmatpush.bf16.msra.mxu0 %v1846
  %1876 = vmatmul.bf16.gmra.mxu0 %v42
  %v1877 = vpop.f32.mrf.mxu0
  %v1878 = vadd.f32 0.0, %v1877
  %v1879 = vpop.f32.mrf.mxu0
  %v1880 = vadd.f32 0.0, %v1879
  %1881 = vdwg.mxu0
  %1882 = vmatpush.bf16.msra.mxu0 0
  %1883 = vmatpush.bf16.msra.mxu0 0
  %1884 = vmatpush.bf16.msra.mxu0 0
  %1885 = vmatpush.bf16.msra.mxu0 0
  %1886 = vmatpush.bf16.msra.mxu0 0
  %1887 = vmatpush.bf16.msra.mxu0 0
  %1888 = vmatpush.bf16.msra.mxu0 %v1866
  %1889 = vmatpush.bf16.msra.mxu0 %v1854
  %1890 = vmatmul.bf16.gmra.mxu0 %v104
  %v1891 = vpop.f32.mrf.mxu0
  %v1892 = vadd.f32 %v1878, %v1891
  %v1893 = vpop.f32.mrf.mxu0
  %v1894 = vadd.f32 %v1880, %v1893
  %1895 = vdwg.mxu0
  %v1896 = vmax.f32 %v1786, %v1892
  %v1897 = vmax.f32 %v1787, %v1894
  %s1898 = scalar_lea.vmem %s0, 1292
  %v1899 = vld [vmem:[%s1898] sm:$0xf]
  %v1900 = vld [vmem:[%s1898 + $0x4] sm:$0xf]
  %v1901 = vld [vmem:[%s1898 + $0x8] sm:$0xf]
  %v1902 = vld [vmem:[%s1898 + $0xc] sm:$0xf]
  %v1903 = vld [vmem:[%s1898 + $0x10] sm:$0xf]
  %v1904 = vld [vmem:[%s1898 + $0x14] sm:$0xf]
  %v1905 = vld [vmem:[%s1898 + $0x18] sm:$0xf]
  %v1906 = vld [vmem:[%s1898 + $0x1c] sm:$0xf]
  %v1907 = vld [vmem:[%s1898 + $0x20] sm:$0xf]
  %v1908 = vld [vmem:[%s1898 + $0x24] sm:$0xf]
  %v1909 = vld [vmem:[%s1898 + $0x28] sm:$0xf]
  %v1910 = vld [vmem:[%s1898 + $0x2c] sm:$0xf]
  %v1911 = vld [vmem:[%s1898 + $0x30] sm:$0xf]
  %v1912 = vld [vmem:[%s1898 + $0x34] sm:$0xf]
  %v1913 = vld [vmem:[%s1898 + $0x38] sm:$0xf]
  %v1914 = vld [vmem:[%s1898 + $0x3c] sm:$0xf]
  %v1915 = vld [vmem:[%s1898 + $0x40] sm:$0xf]
  %v1916 = vld [vmem:[%s1898 + $0x44] sm:$0xf]
  %v1917 = vld [vmem:[%s1898 + $0x48] sm:$0x7]
  %v1937 = vunpack.c.l.b16 %v1899
  %v1938 = vunpack.c.l.b16 %v1900
  %v1939 = vunpack.c.l.b16 %v1901
  %v1940 = vunpack.c.l.b16 %v1902
  %v1941 = vunpack.c.l.b16 %v1903
  %v1942 = vunpack.c.l.b16 %v1904
  %v1943 = vunpack.c.l.b16 %v1905
  %v1944 = vunpack.c.l.b16 %v1906
  %v1945 = vunpack.c.l.b16 %v1907
  %v1946 = vunpack.c.l.b16 %v1908
  %v1947 = vunpack.c.l.b16 %v1909
  %v1948 = vunpack.c.l.b16 %v1910
  %v1949 = vunpack.c.l.b16 %v1911
  %v1950 = vunpack.c.l.b16 %v1912
  %v1951 = vunpack.c.l.b16 %v1913
  %v1952 = vunpack.c.l.b16 %v1914
  %v1953 = vunpack.c.l.b16 %v1915
  %v1954 = vunpack.c.l.b16 %v1916
  %v1955 = vunpack.c.l.b16 %v1917
  %v1956 = vpack.c.b16 %v1938, %v1937
  %v1957 = vpack.c.b16 %v1940, %v1939
  %v1958 = vpack.c.b16 %v1942, %v1941
  %v1959 = vpack.c.b16 %v1944, %v1943
  %v1960 = vpack.c.b16 %v1946, %v1945
  %v1961 = vpack.c.b16 %v1948, %v1947
  %v1962 = vpack.c.b16 %v1950, %v1949
  %v1963 = vpack.c.b16 %v1952, %v1951
  %v1964 = vpack.c.b16 %v1954, %v1953
  %v1965 = vpack.c.b16 %v1955, %v1955
  %v1976 = vsel %vm106, %v1965, 0
  %1978 = vmatpush.bf16.msra.mxu0 %v1963
  %1979 = vmatpush.bf16.msra.mxu0 %v1962
  %1980 = vmatpush.bf16.msra.mxu0 %v1961
  %1981 = vmatpush.bf16.msra.mxu0 %v1960
  %1982 = vmatpush.bf16.msra.mxu0 %v1959
  %1983 = vmatpush.bf16.msra.mxu0 %v1958
  %1984 = vmatpush.bf16.msra.mxu0 %v1957
  %1985 = vmatpush.bf16.msra.mxu0 %v1956
  %1986 = vmatmul.bf16.gmra.mxu0 %v42
  %v1987 = vpop.f32.mrf.mxu0
  %v1988 = vadd.f32 0.0, %v1987
  %v1989 = vpop.f32.mrf.mxu0
  %v1990 = vadd.f32 0.0, %v1989
  %1991 = vdwg.mxu0
  %1992 = vmatpush.bf16.msra.mxu0 0
  %1993 = vmatpush.bf16.msra.mxu0 0
  %1994 = vmatpush.bf16.msra.mxu0 0
  %1995 = vmatpush.bf16.msra.mxu0 0
  %1996 = vmatpush.bf16.msra.mxu0 0
  %1997 = vmatpush.bf16.msra.mxu0 0
  %1998 = vmatpush.bf16.msra.mxu0 %v1976
  %1999 = vmatpush.bf16.msra.mxu0 %v1964
  %2000 = vmatmul.bf16.gmra.mxu0 %v104
  %v2001 = vpop.f32.mrf.mxu0
  %v2002 = vadd.f32 %v1988, %v2001
  %v2003 = vpop.f32.mrf.mxu0
  %v2004 = vadd.f32 %v1990, %v2003
  %2005 = vdwg.mxu0
  %v2006 = vmax.f32 %v1896, %v2002
  %v2007 = vmax.f32 %v1897, %v2004
  %s2008 = scalar_lea.vmem %s0, 1368
  %v2009 = vld [vmem:[%s2008] sm:$0xf]
  %v2010 = vld [vmem:[%s2008 + $0x4] sm:$0xf]
  %v2011 = vld [vmem:[%s2008 + $0x8] sm:$0xf]
  %v2012 = vld [vmem:[%s2008 + $0xc] sm:$0xf]
  %v2013 = vld [vmem:[%s2008 + $0x10] sm:$0xf]
  %v2014 = vld [vmem:[%s2008 + $0x14] sm:$0xf]
  %v2015 = vld [vmem:[%s2008 + $0x18] sm:$0xf]
  %v2016 = vld [vmem:[%s2008 + $0x1c] sm:$0xf]
  %v2017 = vld [vmem:[%s2008 + $0x20] sm:$0xf]
  %v2018 = vld [vmem:[%s2008 + $0x24] sm:$0xf]
  %v2019 = vld [vmem:[%s2008 + $0x28] sm:$0xf]
  %v2020 = vld [vmem:[%s2008 + $0x2c] sm:$0xf]
  %v2021 = vld [vmem:[%s2008 + $0x30] sm:$0xf]
  %v2022 = vld [vmem:[%s2008 + $0x34] sm:$0xf]
  %v2023 = vld [vmem:[%s2008 + $0x38] sm:$0xf]
  %v2024 = vld [vmem:[%s2008 + $0x3c] sm:$0xf]
  %v2025 = vld [vmem:[%s2008 + $0x40] sm:$0xf]
  %v2026 = vld [vmem:[%s2008 + $0x44] sm:$0xf]
  %v2027 = vld [vmem:[%s2008 + $0x48] sm:$0x7]
  %v2047 = vunpack.c.l.b16 %v2009
  %v2048 = vunpack.c.l.b16 %v2010
  %v2049 = vunpack.c.l.b16 %v2011
  %v2050 = vunpack.c.l.b16 %v2012
  %v2051 = vunpack.c.l.b16 %v2013
  %v2052 = vunpack.c.l.b16 %v2014
  %v2053 = vunpack.c.l.b16 %v2015
  %v2054 = vunpack.c.l.b16 %v2016
  %v2055 = vunpack.c.l.b16 %v2017
  %v2056 = vunpack.c.l.b16 %v2018
  %v2057 = vunpack.c.l.b16 %v2019
  %v2058 = vunpack.c.l.b16 %v2020
  %v2059 = vunpack.c.l.b16 %v2021
  %v2060 = vunpack.c.l.b16 %v2022
  %v2061 = vunpack.c.l.b16 %v2023
  %v2062 = vunpack.c.l.b16 %v2024
  %v2063 = vunpack.c.l.b16 %v2025
  %v2064 = vunpack.c.l.b16 %v2026
  %v2065 = vunpack.c.l.b16 %v2027
  %v2066 = vpack.c.b16 %v2048, %v2047
  %v2067 = vpack.c.b16 %v2050, %v2049
  %v2068 = vpack.c.b16 %v2052, %v2051
  %v2069 = vpack.c.b16 %v2054, %v2053
  %v2070 = vpack.c.b16 %v2056, %v2055
  %v2071 = vpack.c.b16 %v2058, %v2057
  %v2072 = vpack.c.b16 %v2060, %v2059
  %v2073 = vpack.c.b16 %v2062, %v2061
  %v2074 = vpack.c.b16 %v2064, %v2063
  %v2075 = vpack.c.b16 %v2065, %v2065
  %v2086 = vsel %vm106, %v2075, 0
  %2088 = vmatpush.bf16.msra.mxu0 %v2073
  %2089 = vmatpush.bf16.msra.mxu0 %v2072
  %2090 = vmatpush.bf16.msra.mxu0 %v2071
  %2091 = vmatpush.bf16.msra.mxu0 %v2070
  %2092 = vmatpush.bf16.msra.mxu0 %v2069
  %2093 = vmatpush.bf16.msra.mxu0 %v2068
  %2094 = vmatpush.bf16.msra.mxu0 %v2067
  %2095 = vmatpush.bf16.msra.mxu0 %v2066
  %2096 = vmatmul.bf16.gmra.mxu0 %v42
  %v2097 = vpop.f32.mrf.mxu0
  %v2098 = vadd.f32 0.0, %v2097
  %v2099 = vpop.f32.mrf.mxu0
  %v2100 = vadd.f32 0.0, %v2099
  %2101 = vdwg.mxu0
  %2102 = vmatpush.bf16.msra.mxu0 0
  %2103 = vmatpush.bf16.msra.mxu0 0
  %2104 = vmatpush.bf16.msra.mxu0 0
  %2105 = vmatpush.bf16.msra.mxu0 0
  %2106 = vmatpush.bf16.msra.mxu0 0
  %2107 = vmatpush.bf16.msra.mxu0 0
  %2108 = vmatpush.bf16.msra.mxu0 %v2086
  %2109 = vmatpush.bf16.msra.mxu0 %v2074
  %2110 = vmatmul.bf16.gmra.mxu0 %v104
  %v2111 = vpop.f32.mrf.mxu0
  %v2112 = vadd.f32 %v2098, %v2111
  %v2113 = vpop.f32.mrf.mxu0
  %v2114 = vadd.f32 %v2100, %v2113
  %2115 = vdwg.mxu0
  %v2116 = vmax.f32 %v2006, %v2112
  %v2117 = vmax.f32 %v2007, %v2114
  %s2118 = scalar_lea.vmem %s0, 1444
  %v2119 = vld [vmem:[%s2118] sm:$0xf]
  %v2120 = vld [vmem:[%s2118 + $0x4] sm:$0xf]
  %v2121 = vld [vmem:[%s2118 + $0x8] sm:$0xf]
  %v2122 = vld [vmem:[%s2118 + $0xc] sm:$0xf]
  %v2123 = vld [vmem:[%s2118 + $0x10] sm:$0xf]
  %v2124 = vld [vmem:[%s2118 + $0x14] sm:$0xf]
  %v2125 = vld [vmem:[%s2118 + $0x18] sm:$0xf]
  %v2126 = vld [vmem:[%s2118 + $0x1c] sm:$0xf]
  %v2127 = vld [vmem:[%s2118 + $0x20] sm:$0xf]
  %v2128 = vld [vmem:[%s2118 + $0x24] sm:$0xf]
  %v2129 = vld [vmem:[%s2118 + $0x28] sm:$0xf]
  %v2130 = vld [vmem:[%s2118 + $0x2c] sm:$0xf]
  %v2131 = vld [vmem:[%s2118 + $0x30] sm:$0xf]
  %v2132 = vld [vmem:[%s2118 + $0x34] sm:$0xf]
  %v2133 = vld [vmem:[%s2118 + $0x38] sm:$0xf]
  %v2134 = vld [vmem:[%s2118 + $0x3c] sm:$0xf]
  %v2135 = vld [vmem:[%s2118 + $0x40] sm:$0xf]
  %v2136 = vld [vmem:[%s2118 + $0x44] sm:$0xf]
  %v2137 = vld [vmem:[%s2118 + $0x48] sm:$0x7]
  %v2157 = vunpack.c.l.b16 %v2119
  %v2158 = vunpack.c.l.b16 %v2120
  %v2159 = vunpack.c.l.b16 %v2121
  %v2160 = vunpack.c.l.b16 %v2122
  %v2161 = vunpack.c.l.b16 %v2123
  %v2162 = vunpack.c.l.b16 %v2124
  %v2163 = vunpack.c.l.b16 %v2125
  %v2164 = vunpack.c.l.b16 %v2126
  %v2165 = vunpack.c.l.b16 %v2127
  %v2166 = vunpack.c.l.b16 %v2128
  %v2167 = vunpack.c.l.b16 %v2129
  %v2168 = vunpack.c.l.b16 %v2130
  %v2169 = vunpack.c.l.b16 %v2131
  %v2170 = vunpack.c.l.b16 %v2132
  %v2171 = vunpack.c.l.b16 %v2133
  %v2172 = vunpack.c.l.b16 %v2134
  %v2173 = vunpack.c.l.b16 %v2135
  %v2174 = vunpack.c.l.b16 %v2136
  %v2175 = vunpack.c.l.b16 %v2137
  %v2176 = vpack.c.b16 %v2158, %v2157
  %v2177 = vpack.c.b16 %v2160, %v2159
  %v2178 = vpack.c.b16 %v2162, %v2161
  %v2179 = vpack.c.b16 %v2164, %v2163
  %v2180 = vpack.c.b16 %v2166, %v2165
  %v2181 = vpack.c.b16 %v2168, %v2167
  %v2182 = vpack.c.b16 %v2170, %v2169
  %v2183 = vpack.c.b16 %v2172, %v2171
  %v2184 = vpack.c.b16 %v2174, %v2173
  %v2185 = vpack.c.b16 %v2175, %v2175
  %v2196 = vsel %vm106, %v2185, 0
  %2198 = vmatpush.bf16.msra.mxu0 %v2183
  %2199 = vmatpush.bf16.msra.mxu0 %v2182
  %2200 = vmatpush.bf16.msra.mxu0 %v2181
  %2201 = vmatpush.bf16.msra.mxu0 %v2180
  %2202 = vmatpush.bf16.msra.mxu0 %v2179
  %2203 = vmatpush.bf16.msra.mxu0 %v2178
  %2204 = vmatpush.bf16.msra.mxu0 %v2177
  %2205 = vmatpush.bf16.msra.mxu0 %v2176
  %2206 = vmatmul.bf16.gmra.mxu0 %v42
  %v2207 = vpop.f32.mrf.mxu0
  %v2208 = vadd.f32 0.0, %v2207
  %v2209 = vpop.f32.mrf.mxu0
  %v2210 = vadd.f32 0.0, %v2209
  %2211 = vdwg.mxu0
  %2212 = vmatpush.bf16.msra.mxu0 0
  %2213 = vmatpush.bf16.msra.mxu0 0
  %2214 = vmatpush.bf16.msra.mxu0 0
  %2215 = vmatpush.bf16.msra.mxu0 0
  %2216 = vmatpush.bf16.msra.mxu0 0
  %2217 = vmatpush.bf16.msra.mxu0 0
  %2218 = vmatpush.bf16.msra.mxu0 %v2196
  %2219 = vmatpush.bf16.msra.mxu0 %v2184
  %2220 = vmatmul.bf16.gmra.mxu0 %v104
  %v2221 = vpop.f32.mrf.mxu0
  %v2222 = vadd.f32 %v2208, %v2221
  %v2223 = vpop.f32.mrf.mxu0
  %v2224 = vadd.f32 %v2210, %v2223
  %2225 = vdwg.mxu0
  %v2226 = vmax.f32 %v2116, %v2222
  %v2227 = vmax.f32 %v2117, %v2224
  %s2228 = scalar_lea.vmem %s0, 1520
  %v2229 = vld [vmem:[%s2228] sm:$0xf]
  %v2230 = vld [vmem:[%s2228 + $0x4] sm:$0xf]
  %v2231 = vld [vmem:[%s2228 + $0x8] sm:$0xf]
  %v2232 = vld [vmem:[%s2228 + $0xc] sm:$0xf]
  %v2233 = vld [vmem:[%s2228 + $0x10] sm:$0xf]
  %v2234 = vld [vmem:[%s2228 + $0x14] sm:$0xf]
  %v2235 = vld [vmem:[%s2228 + $0x18] sm:$0xf]
  %v2236 = vld [vmem:[%s2228 + $0x1c] sm:$0xf]
  %v2237 = vld [vmem:[%s2228 + $0x20] sm:$0xf]
  %v2238 = vld [vmem:[%s2228 + $0x24] sm:$0xf]
  %v2239 = vld [vmem:[%s2228 + $0x28] sm:$0xf]
  %v2240 = vld [vmem:[%s2228 + $0x2c] sm:$0xf]
  %v2241 = vld [vmem:[%s2228 + $0x30] sm:$0xf]
  %v2242 = vld [vmem:[%s2228 + $0x34] sm:$0xf]
  %v2243 = vld [vmem:[%s2228 + $0x38] sm:$0xf]
  %v2244 = vld [vmem:[%s2228 + $0x3c] sm:$0xf]
  %v2245 = vld [vmem:[%s2228 + $0x40] sm:$0xf]
  %v2246 = vld [vmem:[%s2228 + $0x44] sm:$0xf]
  %v2247 = vld [vmem:[%s2228 + $0x48] sm:$0x7]
  %v2267 = vunpack.c.l.b16 %v2229
  %v2268 = vunpack.c.l.b16 %v2230
  %v2269 = vunpack.c.l.b16 %v2231
  %v2270 = vunpack.c.l.b16 %v2232
  %v2271 = vunpack.c.l.b16 %v2233
  %v2272 = vunpack.c.l.b16 %v2234
  %v2273 = vunpack.c.l.b16 %v2235
  %v2274 = vunpack.c.l.b16 %v2236
  %v2275 = vunpack.c.l.b16 %v2237
  %v2276 = vunpack.c.l.b16 %v2238
  %v2277 = vunpack.c.l.b16 %v2239
  %v2278 = vunpack.c.l.b16 %v2240
  %v2279 = vunpack.c.l.b16 %v2241
  %v2280 = vunpack.c.l.b16 %v2242
  %v2281 = vunpack.c.l.b16 %v2243
  %v2282 = vunpack.c.l.b16 %v2244
  %v2283 = vunpack.c.l.b16 %v2245
  %v2284 = vunpack.c.l.b16 %v2246
  %v2285 = vunpack.c.l.b16 %v2247
  %v2286 = vpack.c.b16 %v2268, %v2267
  %v2287 = vpack.c.b16 %v2270, %v2269
  %v2288 = vpack.c.b16 %v2272, %v2271
  %v2289 = vpack.c.b16 %v2274, %v2273
  %v2290 = vpack.c.b16 %v2276, %v2275
  %v2291 = vpack.c.b16 %v2278, %v2277
  %v2292 = vpack.c.b16 %v2280, %v2279
  %v2293 = vpack.c.b16 %v2282, %v2281
  %v2294 = vpack.c.b16 %v2284, %v2283
  %v2295 = vpack.c.b16 %v2285, %v2285
  %v2306 = vsel %vm106, %v2295, 0
  %2308 = vmatpush.bf16.msra.mxu0 %v2293
  %2309 = vmatpush.bf16.msra.mxu0 %v2292
  %2310 = vmatpush.bf16.msra.mxu0 %v2291
  %2311 = vmatpush.bf16.msra.mxu0 %v2290
  %2312 = vmatpush.bf16.msra.mxu0 %v2289
  %2313 = vmatpush.bf16.msra.mxu0 %v2288
  %2314 = vmatpush.bf16.msra.mxu0 %v2287
  %2315 = vmatpush.bf16.msra.mxu0 %v2286
  %2316 = vmatmul.bf16.gmra.mxu0 %v42
  %v2317 = vpop.f32.mrf.mxu0
  %v2318 = vadd.f32 0.0, %v2317
  %v2319 = vpop.f32.mrf.mxu0
  %v2320 = vadd.f32 0.0, %v2319
  %2321 = vdwg.mxu0
  %2322 = vmatpush.bf16.msra.mxu0 0
  %2323 = vmatpush.bf16.msra.mxu0 0
  %2324 = vmatpush.bf16.msra.mxu0 0
  %2325 = vmatpush.bf16.msra.mxu0 0
  %2326 = vmatpush.bf16.msra.mxu0 0
  %2327 = vmatpush.bf16.msra.mxu0 0
  %2328 = vmatpush.bf16.msra.mxu0 %v2306
  %2329 = vmatpush.bf16.msra.mxu0 %v2294
  %2330 = vmatmul.bf16.gmra.mxu0 %v104
  %v2331 = vpop.f32.mrf.mxu0
  %v2332 = vadd.f32 %v2318, %v2331
  %v2333 = vpop.f32.mrf.mxu0
  %v2334 = vadd.f32 %v2320, %v2333
  %2335 = vdwg.mxu0
  %v2336 = vmax.f32 %v2226, %v2332
  %v2337 = vmax.f32 %v2227, %v2334
  %s2338 = scalar_lea.vmem %s0, 1596
  %v2339 = vld [vmem:[%s2338] sm:$0xf]
  %v2340 = vld [vmem:[%s2338 + $0x4] sm:$0xf]
  %v2341 = vld [vmem:[%s2338 + $0x8] sm:$0xf]
  %v2342 = vld [vmem:[%s2338 + $0xc] sm:$0xf]
  %v2343 = vld [vmem:[%s2338 + $0x10] sm:$0xf]
  %v2344 = vld [vmem:[%s2338 + $0x14] sm:$0xf]
  %v2345 = vld [vmem:[%s2338 + $0x18] sm:$0xf]
  %v2346 = vld [vmem:[%s2338 + $0x1c] sm:$0xf]
  %v2347 = vld [vmem:[%s2338 + $0x20] sm:$0xf]
  %v2348 = vld [vmem:[%s2338 + $0x24] sm:$0xf]
  %v2349 = vld [vmem:[%s2338 + $0x28] sm:$0xf]
  %v2350 = vld [vmem:[%s2338 + $0x2c] sm:$0xf]
  %v2351 = vld [vmem:[%s2338 + $0x30] sm:$0xf]
  %v2352 = vld [vmem:[%s2338 + $0x34] sm:$0xf]
  %v2353 = vld [vmem:[%s2338 + $0x38] sm:$0xf]
  %v2354 = vld [vmem:[%s2338 + $0x3c] sm:$0xf]
  %v2355 = vld [vmem:[%s2338 + $0x40] sm:$0xf]
  %v2356 = vld [vmem:[%s2338 + $0x44] sm:$0xf]
  %v2357 = vld [vmem:[%s2338 + $0x48] sm:$0x7]
  %v2377 = vunpack.c.l.b16 %v2339
  %v2378 = vunpack.c.l.b16 %v2340
  %v2379 = vunpack.c.l.b16 %v2341
  %v2380 = vunpack.c.l.b16 %v2342
  %v2381 = vunpack.c.l.b16 %v2343
  %v2382 = vunpack.c.l.b16 %v2344
  %v2383 = vunpack.c.l.b16 %v2345
  %v2384 = vunpack.c.l.b16 %v2346
  %v2385 = vunpack.c.l.b16 %v2347
  %v2386 = vunpack.c.l.b16 %v2348
  %v2387 = vunpack.c.l.b16 %v2349
  %v2388 = vunpack.c.l.b16 %v2350
  %v2389 = vunpack.c.l.b16 %v2351
  %v2390 = vunpack.c.l.b16 %v2352
  %v2391 = vunpack.c.l.b16 %v2353
  %v2392 = vunpack.c.l.b16 %v2354
  %v2393 = vunpack.c.l.b16 %v2355
  %v2394 = vunpack.c.l.b16 %v2356
  %v2395 = vunpack.c.l.b16 %v2357
  %v2396 = vpack.c.b16 %v2378, %v2377
  %v2397 = vpack.c.b16 %v2380, %v2379
  %v2398 = vpack.c.b16 %v2382, %v2381
  %v2399 = vpack.c.b16 %v2384, %v2383
  %v2400 = vpack.c.b16 %v2386, %v2385
  %v2401 = vpack.c.b16 %v2388, %v2387
  %v2402 = vpack.c.b16 %v2390, %v2389
  %v2403 = vpack.c.b16 %v2392, %v2391
  %v2404 = vpack.c.b16 %v2394, %v2393
  %v2405 = vpack.c.b16 %v2395, %v2395
  %v2416 = vsel %vm106, %v2405, 0
  %2418 = vmatpush.bf16.msra.mxu0 %v2403
  %2419 = vmatpush.bf16.msra.mxu0 %v2402
  %2420 = vmatpush.bf16.msra.mxu0 %v2401
  %2421 = vmatpush.bf16.msra.mxu0 %v2400
  %2422 = vmatpush.bf16.msra.mxu0 %v2399
  %2423 = vmatpush.bf16.msra.mxu0 %v2398
  %2424 = vmatpush.bf16.msra.mxu0 %v2397
  %2425 = vmatpush.bf16.msra.mxu0 %v2396
  %2426 = vmatmul.bf16.gmra.mxu0 %v42
  %v2427 = vpop.f32.mrf.mxu0
  %v2428 = vadd.f32 0.0, %v2427
  %v2429 = vpop.f32.mrf.mxu0
  %v2430 = vadd.f32 0.0, %v2429
  %2431 = vdwg.mxu0
  %2432 = vmatpush.bf16.msra.mxu0 0
  %2433 = vmatpush.bf16.msra.mxu0 0
  %2434 = vmatpush.bf16.msra.mxu0 0
  %2435 = vmatpush.bf16.msra.mxu0 0
  %2436 = vmatpush.bf16.msra.mxu0 0
  %2437 = vmatpush.bf16.msra.mxu0 0
  %2438 = vmatpush.bf16.msra.mxu0 %v2416
  %2439 = vmatpush.bf16.msra.mxu0 %v2404
  %2440 = vmatmul.bf16.gmra.mxu0 %v104
  %v2441 = vpop.f32.mrf.mxu0
  %v2442 = vadd.f32 %v2428, %v2441
  %v2443 = vpop.f32.mrf.mxu0
  %v2444 = vadd.f32 %v2430, %v2443
  %2445 = vdwg.mxu0
  %v2446 = vmax.f32 %v2336, %v2442
  %v2447 = vmax.f32 %v2337, %v2444
  %s2448 = scalar_lea.vmem %s0, 1672
  %v2449 = vld [vmem:[%s2448] sm:$0xf]
  %v2450 = vld [vmem:[%s2448 + $0x4] sm:$0xf]
  %v2451 = vld [vmem:[%s2448 + $0x8] sm:$0xf]
  %v2452 = vld [vmem:[%s2448 + $0xc] sm:$0xf]
  %v2453 = vld [vmem:[%s2448 + $0x10] sm:$0xf]
  %v2454 = vld [vmem:[%s2448 + $0x14] sm:$0xf]
  %v2455 = vld [vmem:[%s2448 + $0x18] sm:$0xf]
  %v2456 = vld [vmem:[%s2448 + $0x1c] sm:$0xf]
  %v2457 = vld [vmem:[%s2448 + $0x20] sm:$0xf]
  %v2458 = vld [vmem:[%s2448 + $0x24] sm:$0xf]
  %v2459 = vld [vmem:[%s2448 + $0x28] sm:$0xf]
  %v2460 = vld [vmem:[%s2448 + $0x2c] sm:$0xf]
  %v2461 = vld [vmem:[%s2448 + $0x30] sm:$0xf]
  %v2462 = vld [vmem:[%s2448 + $0x34] sm:$0xf]
  %v2463 = vld [vmem:[%s2448 + $0x38] sm:$0xf]
  %v2464 = vld [vmem:[%s2448 + $0x3c] sm:$0xf]
  %v2465 = vld [vmem:[%s2448 + $0x40] sm:$0xf]
  %v2466 = vld [vmem:[%s2448 + $0x44] sm:$0xf]
  %v2467 = vld [vmem:[%s2448 + $0x48] sm:$0x7]
  %v2487 = vunpack.c.l.b16 %v2449
  %v2488 = vunpack.c.l.b16 %v2450
  %v2489 = vunpack.c.l.b16 %v2451
  %v2490 = vunpack.c.l.b16 %v2452
  %v2491 = vunpack.c.l.b16 %v2453
  %v2492 = vunpack.c.l.b16 %v2454
  %v2493 = vunpack.c.l.b16 %v2455
  %v2494 = vunpack.c.l.b16 %v2456
  %v2495 = vunpack.c.l.b16 %v2457
  %v2496 = vunpack.c.l.b16 %v2458
  %v2497 = vunpack.c.l.b16 %v2459
  %v2498 = vunpack.c.l.b16 %v2460
  %v2499 = vunpack.c.l.b16 %v2461
  %v2500 = vunpack.c.l.b16 %v2462
  %v2501 = vunpack.c.l.b16 %v2463
  %v2502 = vunpack.c.l.b16 %v2464
  %v2503 = vunpack.c.l.b16 %v2465
  %v2504 = vunpack.c.l.b16 %v2466
  %v2505 = vunpack.c.l.b16 %v2467
  %v2506 = vpack.c.b16 %v2488, %v2487
  %v2507 = vpack.c.b16 %v2490, %v2489
  %v2508 = vpack.c.b16 %v2492, %v2491
  %v2509 = vpack.c.b16 %v2494, %v2493
  %v2510 = vpack.c.b16 %v2496, %v2495
  %v2511 = vpack.c.b16 %v2498, %v2497
  %v2512 = vpack.c.b16 %v2500, %v2499
  %v2513 = vpack.c.b16 %v2502, %v2501
  %v2514 = vpack.c.b16 %v2504, %v2503
  %v2515 = vpack.c.b16 %v2505, %v2505
  %v2526 = vsel %vm106, %v2515, 0
  %2528 = vmatpush.bf16.msra.mxu0 %v2513
  %2529 = vmatpush.bf16.msra.mxu0 %v2512
  %2530 = vmatpush.bf16.msra.mxu0 %v2511
  %2531 = vmatpush.bf16.msra.mxu0 %v2510
  %2532 = vmatpush.bf16.msra.mxu0 %v2509
  %2533 = vmatpush.bf16.msra.mxu0 %v2508
  %2534 = vmatpush.bf16.msra.mxu0 %v2507
  %2535 = vmatpush.bf16.msra.mxu0 %v2506
  %2536 = vmatmul.bf16.gmra.mxu0 %v42
  %v2537 = vpop.f32.mrf.mxu0
  %v2538 = vadd.f32 0.0, %v2537
  %v2539 = vpop.f32.mrf.mxu0
  %v2540 = vadd.f32 0.0, %v2539
  %2541 = vdwg.mxu0
  %2542 = vmatpush.bf16.msra.mxu0 0
  %2543 = vmatpush.bf16.msra.mxu0 0
  %2544 = vmatpush.bf16.msra.mxu0 0
  %2545 = vmatpush.bf16.msra.mxu0 0
  %2546 = vmatpush.bf16.msra.mxu0 0
  %2547 = vmatpush.bf16.msra.mxu0 0
  %2548 = vmatpush.bf16.msra.mxu0 %v2526
  %2549 = vmatpush.bf16.msra.mxu0 %v2514
  %2550 = vmatmul.bf16.gmra.mxu0 %v104
  %v2551 = vpop.f32.mrf.mxu0
  %v2552 = vadd.f32 %v2538, %v2551
  %v2553 = vpop.f32.mrf.mxu0
  %v2554 = vadd.f32 %v2540, %v2553
  %2555 = vdwg.mxu0
  %v2556 = vmax.f32 %v2446, %v2552
  %v2557 = vmax.f32 %v2447, %v2554
  %s2558 = scalar_lea.vmem %s0, 1748
  %v2559 = vld [vmem:[%s2558] sm:$0xf]
  %v2560 = vld [vmem:[%s2558 + $0x4] sm:$0xf]
  %v2561 = vld [vmem:[%s2558 + $0x8] sm:$0xf]
  %v2562 = vld [vmem:[%s2558 + $0xc] sm:$0xf]
  %v2563 = vld [vmem:[%s2558 + $0x10] sm:$0xf]
  %v2564 = vld [vmem:[%s2558 + $0x14] sm:$0xf]
  %v2565 = vld [vmem:[%s2558 + $0x18] sm:$0xf]
  %v2566 = vld [vmem:[%s2558 + $0x1c] sm:$0xf]
  %v2567 = vld [vmem:[%s2558 + $0x20] sm:$0xf]
  %v2568 = vld [vmem:[%s2558 + $0x24] sm:$0xf]
  %v2569 = vld [vmem:[%s2558 + $0x28] sm:$0xf]
  %v2570 = vld [vmem:[%s2558 + $0x2c] sm:$0xf]
  %v2571 = vld [vmem:[%s2558 + $0x30] sm:$0xf]
  %v2572 = vld [vmem:[%s2558 + $0x34] sm:$0xf]
  %v2573 = vld [vmem:[%s2558 + $0x38] sm:$0xf]
  %v2574 = vld [vmem:[%s2558 + $0x3c] sm:$0xf]
  %v2575 = vld [vmem:[%s2558 + $0x40] sm:$0xf]
  %v2576 = vld [vmem:[%s2558 + $0x44] sm:$0xf]
  %v2577 = vld [vmem:[%s2558 + $0x48] sm:$0x7]
  %v2597 = vunpack.c.l.b16 %v2559
  %v2598 = vunpack.c.l.b16 %v2560
  %v2599 = vunpack.c.l.b16 %v2561
  %v2600 = vunpack.c.l.b16 %v2562
  %v2601 = vunpack.c.l.b16 %v2563
  %v2602 = vunpack.c.l.b16 %v2564
  %v2603 = vunpack.c.l.b16 %v2565
  %v2604 = vunpack.c.l.b16 %v2566
  %v2605 = vunpack.c.l.b16 %v2567
  %v2606 = vunpack.c.l.b16 %v2568
  %v2607 = vunpack.c.l.b16 %v2569
  %v2608 = vunpack.c.l.b16 %v2570
  %v2609 = vunpack.c.l.b16 %v2571
  %v2610 = vunpack.c.l.b16 %v2572
  %v2611 = vunpack.c.l.b16 %v2573
  %v2612 = vunpack.c.l.b16 %v2574
  %v2613 = vunpack.c.l.b16 %v2575
  %v2614 = vunpack.c.l.b16 %v2576
  %v2615 = vunpack.c.l.b16 %v2577
  %v2616 = vpack.c.b16 %v2598, %v2597
  %v2617 = vpack.c.b16 %v2600, %v2599
  %v2618 = vpack.c.b16 %v2602, %v2601
  %v2619 = vpack.c.b16 %v2604, %v2603
  %v2620 = vpack.c.b16 %v2606, %v2605
  %v2621 = vpack.c.b16 %v2608, %v2607
  %v2622 = vpack.c.b16 %v2610, %v2609
  %v2623 = vpack.c.b16 %v2612, %v2611
  %v2624 = vpack.c.b16 %v2614, %v2613
  %v2625 = vpack.c.b16 %v2615, %v2615
  %v2636 = vsel %vm106, %v2625, 0
  %2638 = vmatpush.bf16.msra.mxu0 %v2623
  %2639 = vmatpush.bf16.msra.mxu0 %v2622
  %2640 = vmatpush.bf16.msra.mxu0 %v2621
  %2641 = vmatpush.bf16.msra.mxu0 %v2620
  %2642 = vmatpush.bf16.msra.mxu0 %v2619
  %2643 = vmatpush.bf16.msra.mxu0 %v2618
  %2644 = vmatpush.bf16.msra.mxu0 %v2617
  %2645 = vmatpush.bf16.msra.mxu0 %v2616
  %2646 = vmatmul.bf16.gmra.mxu0 %v42
  %v2647 = vpop.f32.mrf.mxu0
  %v2648 = vadd.f32 0.0, %v2647
  %v2649 = vpop.f32.mrf.mxu0
  %v2650 = vadd.f32 0.0, %v2649
  %2651 = vdwg.mxu0
  %2652 = vmatpush.bf16.msra.mxu0 0
  %2653 = vmatpush.bf16.msra.mxu0 0
  %2654 = vmatpush.bf16.msra.mxu0 0
  %2655 = vmatpush.bf16.msra.mxu0 0
  %2656 = vmatpush.bf16.msra.mxu0 0
  %2657 = vmatpush.bf16.msra.mxu0 0
  %2658 = vmatpush.bf16.msra.mxu0 %v2636
  %2659 = vmatpush.bf16.msra.mxu0 %v2624
  %2660 = vmatmul.bf16.gmra.mxu0 %v104
  %v2661 = vpop.f32.mrf.mxu0
  %v2662 = vadd.f32 %v2648, %v2661
  %v2663 = vpop.f32.mrf.mxu0
  %v2664 = vadd.f32 %v2650, %v2663
  %2665 = vdwg.mxu0
  %v2666 = vmax.f32 %v2556, %v2662
  %v2667 = vmax.f32 %v2557, %v2664
  %s2668 = scalar_lea.vmem %s0, 1824
  %v2669 = vld [vmem:[%s2668] sm:$0xf]
  %v2670 = vld [vmem:[%s2668 + $0x4] sm:$0xf]
  %v2671 = vld [vmem:[%s2668 + $0x8] sm:$0xf]
  %v2672 = vld [vmem:[%s2668 + $0xc] sm:$0xf]
  %v2673 = vld [vmem:[%s2668 + $0x10] sm:$0xf]
  %v2674 = vld [vmem:[%s2668 + $0x14] sm:$0xf]
  %v2675 = vld [vmem:[%s2668 + $0x18] sm:$0xf]
  %v2676 = vld [vmem:[%s2668 + $0x1c] sm:$0xf]
  %v2677 = vld [vmem:[%s2668 + $0x20] sm:$0xf]
  %v2678 = vld [vmem:[%s2668 + $0x24] sm:$0xf]
  %v2679 = vld [vmem:[%s2668 + $0x28] sm:$0xf]
  %v2680 = vld [vmem:[%s2668 + $0x2c] sm:$0xf]
  %v2681 = vld [vmem:[%s2668 + $0x30] sm:$0xf]
  %v2682 = vld [vmem:[%s2668 + $0x34] sm:$0xf]
  %v2683 = vld [vmem:[%s2668 + $0x38] sm:$0xf]
  %v2684 = vld [vmem:[%s2668 + $0x3c] sm:$0xf]
  %v2685 = vld [vmem:[%s2668 + $0x40] sm:$0xf]
  %v2686 = vld [vmem:[%s2668 + $0x44] sm:$0xf]
  %v2687 = vld [vmem:[%s2668 + $0x48] sm:$0x7]
  %v2707 = vunpack.c.l.b16 %v2669
  %v2708 = vunpack.c.l.b16 %v2670
  %v2709 = vunpack.c.l.b16 %v2671
  %v2710 = vunpack.c.l.b16 %v2672
  %v2711 = vunpack.c.l.b16 %v2673
  %v2712 = vunpack.c.l.b16 %v2674
  %v2713 = vunpack.c.l.b16 %v2675
  %v2714 = vunpack.c.l.b16 %v2676
  %v2715 = vunpack.c.l.b16 %v2677
  %v2716 = vunpack.c.l.b16 %v2678
  %v2717 = vunpack.c.l.b16 %v2679
  %v2718 = vunpack.c.l.b16 %v2680
  %v2719 = vunpack.c.l.b16 %v2681
  %v2720 = vunpack.c.l.b16 %v2682
  %v2721 = vunpack.c.l.b16 %v2683
  %v2722 = vunpack.c.l.b16 %v2684
  %v2723 = vunpack.c.l.b16 %v2685
  %v2724 = vunpack.c.l.b16 %v2686
  %v2725 = vunpack.c.l.b16 %v2687
  %v2726 = vpack.c.b16 %v2708, %v2707
  %v2727 = vpack.c.b16 %v2710, %v2709
  %v2728 = vpack.c.b16 %v2712, %v2711
  %v2729 = vpack.c.b16 %v2714, %v2713
  %v2730 = vpack.c.b16 %v2716, %v2715
  %v2731 = vpack.c.b16 %v2718, %v2717
  %v2732 = vpack.c.b16 %v2720, %v2719
  %v2733 = vpack.c.b16 %v2722, %v2721
  %v2734 = vpack.c.b16 %v2724, %v2723
  %v2735 = vpack.c.b16 %v2725, %v2725
  %v2746 = vsel %vm106, %v2735, 0
  %2748 = vmatpush.bf16.msra.mxu0 %v2733
  %2749 = vmatpush.bf16.msra.mxu0 %v2732
  %2750 = vmatpush.bf16.msra.mxu0 %v2731
  %2751 = vmatpush.bf16.msra.mxu0 %v2730
  %2752 = vmatpush.bf16.msra.mxu0 %v2729
  %2753 = vmatpush.bf16.msra.mxu0 %v2728
  %2754 = vmatpush.bf16.msra.mxu0 %v2727
  %2755 = vmatpush.bf16.msra.mxu0 %v2726
  %2756 = vmatmul.bf16.gmra.mxu0 %v42
  %v2757 = vpop.f32.mrf.mxu0
  %v2758 = vadd.f32 0.0, %v2757
  %v2759 = vpop.f32.mrf.mxu0
  %v2760 = vadd.f32 0.0, %v2759
  %2761 = vdwg.mxu0
  %2762 = vmatpush.bf16.msra.mxu0 0
  %2763 = vmatpush.bf16.msra.mxu0 0
  %2764 = vmatpush.bf16.msra.mxu0 0
  %2765 = vmatpush.bf16.msra.mxu0 0
  %2766 = vmatpush.bf16.msra.mxu0 0
  %2767 = vmatpush.bf16.msra.mxu0 0
  %2768 = vmatpush.bf16.msra.mxu0 %v2746
  %2769 = vmatpush.bf16.msra.mxu0 %v2734
  %2770 = vmatmul.bf16.gmra.mxu0 %v104
  %v2771 = vpop.f32.mrf.mxu0
  %v2772 = vadd.f32 %v2758, %v2771
  %v2773 = vpop.f32.mrf.mxu0
  %v2774 = vadd.f32 %v2760, %v2773
  %2775 = vdwg.mxu0
  %v2776 = vmax.f32 %v2666, %v2772
  %v2777 = vmax.f32 %v2667, %v2774
  %v2778 = vld [vmem:[%s2] sm:$0xff]
  %v2779 = vld [vmem:[%s2 + $0x8] sm:$0xff]
  %2781 = vset.pattern.permute.xlu0 0
  %2782 = vperm.xlu0 %2781, %v2778
  %v2783 = vpop.permute.xlu0 %2782
  %2786 = vset.pattern.permute.xlu0 0
  %2787 = vperm.xlu0 %2786, %v2779
  %v2788 = vpop.permute.xlu0 %2787
  %v2790 = vadd.f32 %v2776, %v2783
  %v2791 = vadd.f32 %v2777, %v2788
  %v2792 = vmax.f32 %v2790, 0.0
  %v2793 = vmax.f32 %v2791, 0.0
  %2794 = vst [vmem:[%s3] sm:$0xff] %v2792
  %2795 = vst [vmem:[%s3 + $0x8] sm:$0xff] %v2793
  // Predicated region
  $region14: #{cnn_forward.5} parent=0 // pred_check
    _
  $region15: #{cnn_forward.5} parent=0 // pred_check_branch
    %2797 = sbr.rel (0) target = $region17
  $region16: #{cnn_forward.5} parent=0 // pred_region
    _
  $region17: #{cnn_forward.5} parent=0 // pred_fallthru
    _
  // Predicated region
  $region18: #{cnn_forward.5} parent=0 // pred_check
    _
  $region19: #{cnn_forward.5} parent=0 // pred_check_branch
    %2799 = sbr.rel (0) target = $region21
  $region20: #{cnn_forward.5} parent=0 // pred_region
    _
  $region21: #{cnn_forward.5} parent=0 // pred_fallthru
    _

// kernel: cnn_forward.6
$region0: #{cnn_forward.6}
  #allocation0 [shape = 'u32[]', space=smem, size = 0x4, offset = 0x4, fixed_abs, tag = 'smem constant byte address 0x4 - core index']
  #allocation1 [shape = 'u32[72,128]{1,0:T(1,128)}', space=vmem, size = 0x9000, scoped, tag = 'internal scratch']
  %s0 = inlined_call_operand.vmem [shape: bf16[4,108,18], index: 0, kind: input, shape index: {}]
  %s1 = inlined_call_operand.vmem [shape: bf16[24,108], index: 1, kind: input, shape index: {}]
  %s2 = inlined_call_operand.vmem [shape: f32[24,1], index: 2, kind: input, shape index: {}]
  %s3 = inlined_call_operand.vmem [shape: f32[24,18], index: 3, kind: output, shape index: {}]
  %s4 = sld [smem:[#allocation0]]
  $region22: #{cnn_forward.6} parent=0
    _
  %s6 = ssub.s32 1, %s4
  %s7 = scalar_select 0, %s6, %s4
  // Predicated region
  $region2: #{cnn_forward.6} parent=0 // pred_check
    _
  $region3: #{cnn_forward.6} parent=0 // pred_check_branch
    %9 = sbr.rel (0) target = $region5
  $region4: #{cnn_forward.6} parent=0 // pred_region
    _
  $region5: #{cnn_forward.6} parent=0 // pred_fallthru
    _
  // Predicated region
  $region6: #{cnn_forward.6} parent=0 // pred_check
    _
  $region7: #{cnn_forward.6} parent=0 // pred_check_branch
    %11 = sbr.rel (0) target = $region9
  $region8: #{cnn_forward.6} parent=0 // pred_region
    _
  $region9: #{cnn_forward.6} parent=0 // pred_fallthru
    _
  // Predicated region
  $region10: #{cnn_forward.6} parent=0 // pred_check
    _
  $region11: #{cnn_forward.6} parent=0 // pred_check_branch
    %13 = sbr.rel (0) target = $region13
  $region12: #{cnn_forward.6} parent=0 // pred_region
    _
  $region13: #{cnn_forward.6} parent=0 // pred_fallthru
    _
  %v15 = vld [vmem:[%s1] sm:$0xf]
  %v16 = vld [vmem:[%s1 + $0x4] sm:$0xf]
  %v17 = vld [vmem:[%s1 + $0x8] sm:$0xf]
  %v18 = vld [vmem:[%s0] sm:$0xf]
  %v19 = vld [vmem:[%s0 + $0x4] sm:$0xf]
  %v20 = vld [vmem:[%s0 + $0x8] sm:$0xf]
  %v21 = vld [vmem:[%s0 + $0xc] sm:$0xf]
  %v22 = vld [vmem:[%s0 + $0x10] sm:$0xf]
  %v23 = vld [vmem:[%s0 + $0x14] sm:$0xf]
  %v24 = vld [vmem:[%s0 + $0x18] sm:$0xf]
  %v25 = vld [vmem:[%s0 + $0x1c] sm:$0xf]
  %v26 = vld [vmem:[%s0 + $0x20] sm:$0xf]
  %v27 = vld [vmem:[%s0 + $0x24] sm:$0xf]
  %v28 = vld [vmem:[%s0 + $0x28] sm:$0xf]
  %v29 = vld [vmem:[%s0 + $0x2c] sm:$0xf]
  %v30 = vld [vmem:[%s0 + $0x30] sm:$0xf]
  %v31 = vld [vmem:[%s0 + $0x34] sm:$0x3]
  %v35 = vunpack.c.l.b16 %v15
  %v36 = vunpack.c.l.b16 %v16
  %v37 = vunpack.c.l.b16 %v17
  %v38 = vpack.c.b16 %v36, %v35
  %v39 = vpack.c.b16 %v37, %v37
  %v54 = vunpack.c.l.b16 %v18
  %v55 = vunpack.c.l.b16 %v19
  %v56 = vunpack.c.l.b16 %v20
  %v57 = vunpack.c.l.b16 %v21
  %v58 = vunpack.c.l.b16 %v22
  %v59 = vunpack.c.l.b16 %v23
  %v60 = vunpack.c.l.b16 %v24
  %v61 = vunpack.c.l.b16 %v25
  %v62 = vunpack.c.l.b16 %v26
  %v63 = vunpack.c.l.b16 %v27
  %v64 = vunpack.c.l.b16 %v28
  %v65 = vunpack.c.l.b16 %v29
  %v66 = vunpack.c.l.b16 %v30
  %v67 = vunpack.c.l.b16 %v31
  %v68 = vpack.c.b16 %v55, %v54
  %v69 = vpack.c.b16 %v57, %v56
  %v70 = vpack.c.b16 %v59, %v58
  %v71 = vpack.c.b16 %v61, %v60
  %v72 = vpack.c.b16 %v63, %v62
  %v73 = vpack.c.b16 %v65, %v64
  %v74 = vpack.c.b16 %v67, %v66
  %vm81 = vcmask 883712
  %v83 = vsel %vm81, %v38, 0
  %v86 = vsel %vm81, %v39, 0
  %vm88 = vcmask 1045504
  %v90 = vsel %vm88, %v74, 0
  %92 = vmatpush.bf16.msra.mxu0 0
  %93 = vmatpush.bf16.msra.mxu0 %v90
  %94 = vmatpush.bf16.msra.mxu0 %v73
  %95 = vmatpush.bf16.msra.mxu0 %v72
  %96 = vmatpush.bf16.msra.mxu0 %v71
  %97 = vmatpush.bf16.msra.mxu0 %v70
  %98 = vmatpush.bf16.msra.mxu0 %v69
  %99 = vmatpush.bf16.msra.mxu0 %v68
  %100 = vmatmul.bf16.gmra.mxu0 %v83
  %v101 = vpop.f32.mrf.mxu0
  %v102 = vadd.f32 0.0, %v101
  %v103 = vpop.f32.mrf.mxu0
  %v104 = vadd.f32 0.0, %v103
  %105 = vmatmul.bf16.gmra.mxu0 %v86
  %v106 = vpop.f32.mrf.mxu0
  %v107 = vadd.f32 0.0, %v106
  %v108 = vpop.f32.mrf.mxu0
  %109 = vdwg.mxu0
  %s110 = scalar_lea.vmem %s0, 56
  %v111 = vld [vmem:[%s110] sm:$0xf]
  %v112 = vld [vmem:[%s110 + $0x4] sm:$0xf]
  %v113 = vld [vmem:[%s110 + $0x8] sm:$0xf]
  %v114 = vld [vmem:[%s110 + $0xc] sm:$0xf]
  %v115 = vld [vmem:[%s110 + $0x10] sm:$0xf]
  %v116 = vld [vmem:[%s110 + $0x14] sm:$0xf]
  %v117 = vld [vmem:[%s110 + $0x18] sm:$0xf]
  %v118 = vld [vmem:[%s110 + $0x1c] sm:$0xf]
  %v119 = vld [vmem:[%s110 + $0x20] sm:$0xf]
  %v120 = vld [vmem:[%s110 + $0x24] sm:$0xf]
  %v121 = vld [vmem:[%s110 + $0x28] sm:$0xf]
  %v122 = vld [vmem:[%s110 + $0x2c] sm:$0xf]
  %v123 = vld [vmem:[%s110 + $0x30] sm:$0xf]
  %v124 = vld [vmem:[%s110 + $0x34] sm:$0x3]
  %v139 = vunpack.c.l.b16 %v111
  %v140 = vunpack.c.l.b16 %v112
  %v141 = vunpack.c.l.b16 %v113
  %v142 = vunpack.c.l.b16 %v114
  %v143 = vunpack.c.l.b16 %v115
  %v144 = vunpack.c.l.b16 %v116
  %v145 = vunpack.c.l.b16 %v117
  %v146 = vunpack.c.l.b16 %v118
  %v147 = vunpack.c.l.b16 %v119
  %v148 = vunpack.c.l.b16 %v120
  %v149 = vunpack.c.l.b16 %v121
  %v150 = vunpack.c.l.b16 %v122
  %v151 = vunpack.c.l.b16 %v123
  %v152 = vunpack.c.l.b16 %v124
  %v153 = vpack.c.b16 %v140, %v139
  %v154 = vpack.c.b16 %v142, %v141
  %v155 = vpack.c.b16 %v144, %v143
  %v156 = vpack.c.b16 %v146, %v145
  %v157 = vpack.c.b16 %v148, %v147
  %v158 = vpack.c.b16 %v150, %v149
  %v159 = vpack.c.b16 %v152, %v151
  %v167 = vsel %vm88, %v159, 0
  %169 = vmatpush.bf16.msra.mxu0 0
  %170 = vmatpush.bf16.msra.mxu0 %v167
  %171 = vmatpush.bf16.msra.mxu0 %v158
  %172 = vmatpush.bf16.msra.mxu0 %v157
  %173 = vmatpush.bf16.msra.mxu0 %v156
  %174 = vmatpush.bf16.msra.mxu0 %v155
  %175 = vmatpush.bf16.msra.mxu0 %v154
  %176 = vmatpush.bf16.msra.mxu0 %v153
  %177 = vmatmul.bf16.gmra.mxu0 %v83
  %v178 = vpop.f32.mrf.mxu0
  %v179 = vadd.f32 0.0, %v178
  %v180 = vpop.f32.mrf.mxu0
  %v181 = vadd.f32 0.0, %v180
  %182 = vmatmul.bf16.gmra.mxu0 %v86
  %v183 = vpop.f32.mrf.mxu0
  %v184 = vadd.f32 0.0, %v183
  %v185 = vpop.f32.mrf.mxu0
  %186 = vdwg.mxu0
  %v187 = vmax.f32 %v102, %v179
  %v188 = vmax.f32 %v104, %v181
  %v189 = vmax.f32 %v107, %v184
  %s190 = scalar_lea.vmem %s0, 112
  %v191 = vld [vmem:[%s190] sm:$0xf]
  %v192 = vld [vmem:[%s190 + $0x4] sm:$0xf]
  %v193 = vld [vmem:[%s190 + $0x8] sm:$0xf]
  %v194 = vld [vmem:[%s190 + $0xc] sm:$0xf]
  %v195 = vld [vmem:[%s190 + $0x10] sm:$0xf]
  %v196 = vld [vmem:[%s190 + $0x14] sm:$0xf]
  %v197 = vld [vmem:[%s190 + $0x18] sm:$0xf]
  %v198 = vld [vmem:[%s190 + $0x1c] sm:$0xf]
  %v199 = vld [vmem:[%s190 + $0x20] sm:$0xf]
  %v200 = vld [vmem:[%s190 + $0x24] sm:$0xf]
  %v201 = vld [vmem:[%s190 + $0x28] sm:$0xf]
  %v202 = vld [vmem:[%s190 + $0x2c] sm:$0xf]
  %v203 = vld [vmem:[%s190 + $0x30] sm:$0xf]
  %v204 = vld [vmem:[%s190 + $0x34] sm:$0x3]
  %v219 = vunpack.c.l.b16 %v191
  %v220 = vunpack.c.l.b16 %v192
  %v221 = vunpack.c.l.b16 %v193
  %v222 = vunpack.c.l.b16 %v194
  %v223 = vunpack.c.l.b16 %v195
  %v224 = vunpack.c.l.b16 %v196
  %v225 = vunpack.c.l.b16 %v197
  %v226 = vunpack.c.l.b16 %v198
  %v227 = vunpack.c.l.b16 %v199
  %v228 = vunpack.c.l.b16 %v200
  %v229 = vunpack.c.l.b16 %v201
  %v230 = vunpack.c.l.b16 %v202
  %v231 = vunpack.c.l.b16 %v203
  %v232 = vunpack.c.l.b16 %v204
  %v233 = vpack.c.b16 %v220, %v219
  %v234 = vpack.c.b16 %v222, %v221
  %v235 = vpack.c.b16 %v224, %v223
  %v236 = vpack.c.b16 %v226, %v225
  %v237 = vpack.c.b16 %v228, %v227
  %v238 = vpack.c.b16 %v230, %v229
  %v239 = vpack.c.b16 %v232, %v231
  %v247 = vsel %vm88, %v239, 0
  %249 = vmatpush.bf16.msra.mxu0 0
  %250 = vmatpush.bf16.msra.mxu0 %v247
  %251 = vmatpush.bf16.msra.mxu0 %v238
  %252 = vmatpush.bf16.msra.mxu0 %v237
  %253 = vmatpush.bf16.msra.mxu0 %v236
  %254 = vmatpush.bf16.msra.mxu0 %v235
  %255 = vmatpush.bf16.msra.mxu0 %v234
  %256 = vmatpush.bf16.msra.mxu0 %v233
  %257 = vmatmul.bf16.gmra.mxu0 %v83
  %v258 = vpop.f32.mrf.mxu0
  %v259 = vadd.f32 0.0, %v258
  %v260 = vpop.f32.mrf.mxu0
  %v261 = vadd.f32 0.0, %v260
  %262 = vmatmul.bf16.gmra.mxu0 %v86
  %v263 = vpop.f32.mrf.mxu0
  %v264 = vadd.f32 0.0, %v263
  %v265 = vpop.f32.mrf.mxu0
  %266 = vdwg.mxu0
  %v267 = vmax.f32 %v187, %v259
  %v268 = vmax.f32 %v188, %v261
  %v269 = vmax.f32 %v189, %v264
  %s270 = scalar_lea.vmem %s0, 168
  %v271 = vld [vmem:[%s270] sm:$0xf]
  %v272 = vld [vmem:[%s270 + $0x4] sm:$0xf]
  %v273 = vld [vmem:[%s270 + $0x8] sm:$0xf]
  %v274 = vld [vmem:[%s270 + $0xc] sm:$0xf]
  %v275 = vld [vmem:[%s270 + $0x10] sm:$0xf]
  %v276 = vld [vmem:[%s270 + $0x14] sm:$0xf]
  %v277 = vld [vmem:[%s270 + $0x18] sm:$0xf]
  %v278 = vld [vmem:[%s270 + $0x1c] sm:$0xf]
  %v279 = vld [vmem:[%s270 + $0x20] sm:$0xf]
  %v280 = vld [vmem:[%s270 + $0x24] sm:$0xf]
  %v281 = vld [vmem:[%s270 + $0x28] sm:$0xf]
  %v282 = vld [vmem:[%s270 + $0x2c] sm:$0xf]
  %v283 = vld [vmem:[%s270 + $0x30] sm:$0xf]
  %v284 = vld [vmem:[%s270 + $0x34] sm:$0x3]
  %v299 = vunpack.c.l.b16 %v271
  %v300 = vunpack.c.l.b16 %v272
  %v301 = vunpack.c.l.b16 %v273
  %v302 = vunpack.c.l.b16 %v274
  %v303 = vunpack.c.l.b16 %v275
  %v304 = vunpack.c.l.b16 %v276
  %v305 = vunpack.c.l.b16 %v277
  %v306 = vunpack.c.l.b16 %v278
  %v307 = vunpack.c.l.b16 %v279
  %v308 = vunpack.c.l.b16 %v280
  %v309 = vunpack.c.l.b16 %v281
  %v310 = vunpack.c.l.b16 %v282
  %v311 = vunpack.c.l.b16 %v283
  %v312 = vunpack.c.l.b16 %v284
  %v313 = vpack.c.b16 %v300, %v299
  %v314 = vpack.c.b16 %v302, %v301
  %v315 = vpack.c.b16 %v304, %v303
  %v316 = vpack.c.b16 %v306, %v305
  %v317 = vpack.c.b16 %v308, %v307
  %v318 = vpack.c.b16 %v310, %v309
  %v319 = vpack.c.b16 %v312, %v311
  %v327 = vsel %vm88, %v319, 0
  %329 = vmatpush.bf16.msra.mxu0 0
  %330 = vmatpush.bf16.msra.mxu0 %v327
  %331 = vmatpush.bf16.msra.mxu0 %v318
  %332 = vmatpush.bf16.msra.mxu0 %v317
  %333 = vmatpush.bf16.msra.mxu0 %v316
  %334 = vmatpush.bf16.msra.mxu0 %v315
  %335 = vmatpush.bf16.msra.mxu0 %v314
  %336 = vmatpush.bf16.msra.mxu0 %v313
  %337 = vmatmul.bf16.gmra.mxu0 %v83
  %v338 = vpop.f32.mrf.mxu0
  %v339 = vadd.f32 0.0, %v338
  %v340 = vpop.f32.mrf.mxu0
  %v341 = vadd.f32 0.0, %v340
  %342 = vmatmul.bf16.gmra.mxu0 %v86
  %v343 = vpop.f32.mrf.mxu0
  %v344 = vadd.f32 0.0, %v343
  %v345 = vpop.f32.mrf.mxu0
  %346 = vdwg.mxu0
  %v347 = vmax.f32 %v267, %v339
  %v348 = vmax.f32 %v268, %v341
  %v349 = vmax.f32 %v269, %v344
  %v350 = vld [vmem:[%s2] sm:$0xff]
  %v351 = vld [vmem:[%s2 + $0x8] sm:$0xff]
  %v352 = vld [vmem:[%s2 + $0x10] sm:$0xff]
  %354 = vset.pattern.permute.xlu0 0
  %355 = vperm.xlu0 %354, %v350
  %v356 = vpop.permute.xlu0 %355
  %359 = vset.pattern.permute.xlu0 0
  %360 = vperm.xlu0 %359, %v351
  %v361 = vpop.permute.xlu0 %360
  %364 = vset.pattern.permute.xlu0 0
  %365 = vperm.xlu0 %364, %v352
  %v366 = vpop.permute.xlu0 %365
  %v368 = vadd.f32 %v347, %v356
  %v369 = vadd.f32 %v348, %v361
  %v370 = vadd.f32 %v349, %v366
  %v371 = vmax.f32 %v368, 0.0
  %v372 = vmax.f32 %v369, 0.0
  %v373 = vmax.f32 %v370, 0.0
  %vm374 = vcmask 146432
  %375 = vst.msk [vmem:[%s3] sm:$0xff] %vm374, %v371
  %376 = vst.msk [vmem:[%s3 + $0x8] sm:$0xff] %vm374, %v372
  %377 = vst.msk [vmem:[%s3 + $0x10] sm:$0xff] %vm374, %v373
  // Predicated region
  $region14: #{cnn_forward.6} parent=0 // pred_check
    _
  $region15: #{cnn_forward.6} parent=0 // pred_check_branch
    %379 = sbr.rel (0) target = $region17
  $region16: #{cnn_forward.6} parent=0 // pred_region
    _
  $region17: #{cnn_forward.6} parent=0 // pred_fallthru
    _
  // Predicated region
  $region18: #{cnn_forward.6} parent=0 // pred_check
    _
  $region19: #{cnn_forward.6} parent=0 // pred_check_branch
    %381 = sbr.rel (0) target = $region21
  $region20: #{cnn_forward.6} parent=0 // pred_region
    _
  $region21: #{cnn_forward.6} parent=0 // pred_fallthru
    _

// kernel: cnn_forward.7
$region0: #{cnn_forward.7}
  #allocation0 [shape = 'u32[]', space=smem, size = 0x4, offset = 0x4, fixed_abs, tag = 'smem constant byte address 0x4 - core index']
  #allocation1 [shape = 'u32[72,128]{1,0:T(1,128)}', space=vmem, size = 0x9000, scoped, tag = 'internal scratch']
  %s0 = inlined_call_operand.vmem [shape: f32[2,216], index: 0, kind: input, shape index: {}]
  %s1 = inlined_call_operand.vmem [shape: f32[216,64], index: 1, kind: input, shape index: {}]
  %s2 = inlined_call_operand.vmem [shape: f32[1,64], index: 2, kind: input, shape index: {}]
  %s3 = inlined_call_operand.vmem [shape: f32[64,16], index: 3, kind: input, shape index: {}]
  %s4 = inlined_call_operand.vmem [shape: f32[1,16], index: 4, kind: input, shape index: {}]
  %s5 = inlined_call_operand.vmem [shape: f32[16,2], index: 5, kind: input, shape index: {}]
  %s6 = inlined_call_operand.vmem [shape: f32[1,2], index: 6, kind: input, shape index: {}]
  %s7 = inlined_call_operand.hbm [shape: f32[2,2], index: 7, kind: output, shape index: {}]
  %s8 = sld [smem:[#allocation0]]
  $region38: #{cnn_forward.7} parent=0
    _
  %s10 = ssub.s32 1, %s8
  %s11 = scalar_select 0, %s10, %s8
  $region1: #{cnn_forward.7} parent=0
    #allocation2 [shape = 'u8[1024]{0}', space=vmem, size = 0x400, scoped, tag = 'output window, operand 0, single buffered']
    #allocation3 [shape = 's32[1]{0}', space=sflag, size = 0x4, scoped, tag = 'scoped memory for cnn_forward.7']
    %12 = vsyncpa [#allocation3], 0
    // Predicated region
    $region2: #{cnn_forward.7} parent=1 // pred_check
      _
    $region3: #{cnn_forward.7} parent=1 // pred_check_branch
      %14 = sbr.rel (0) target = $region5
    $region4: #{cnn_forward.7} parent=1 // pred_region
      _
    $region5: #{cnn_forward.7} parent=1 // pred_fallthru
      _
    // Predicated region
    $region6: #{cnn_forward.7} parent=1 // pred_check
      _
    $region7: #{cnn_forward.7} parent=1 // pred_check_branch
      %16 = sbr.rel (0) target = $region9
    $region8: #{cnn_forward.7} parent=1 // pred_region
      _
    $region9: #{cnn_forward.7} parent=1 // pred_fallthru
      _
    // Predicated region
    $region10: #{cnn_forward.7} parent=1 // pred_check
      _
    $region11: #{cnn_forward.7} parent=1 // pred_check_branch
      %18 = sbr.rel (0) target = $region13
    $region12: #{cnn_forward.7} parent=1 // pred_region
      _
    $region13: #{cnn_forward.7} parent=1 // pred_fallthru
      _
    // Predicated region
    $region14: #{cnn_forward.7} parent=1 // pred_check
      _
    $region15: #{cnn_forward.7} parent=1 // pred_check_branch
      %20 = sbr.rel (0) target = $region17
    $region16: #{cnn_forward.7} parent=1 // pred_region
      _
    $region17: #{cnn_forward.7} parent=1 // pred_fallthru
      _
    // Predicated region
    $region18: #{cnn_forward.7} parent=1 // pred_check
      _
    $region19: #{cnn_forward.7} parent=1 // pred_check_branch
      %22 = sbr.rel (0) target = $region21
    $region20: #{cnn_forward.7} parent=1 // pred_region
      _
    $region21: #{cnn_forward.7} parent=1 // pred_fallthru
      _
    // Predicated region
    $region22: #{cnn_forward.7} parent=1 // pred_check
      _
    $region23: #{cnn_forward.7} parent=1 // pred_check_branch
      %24 = sbr.rel (0) target = $region25
    $region24: #{cnn_forward.7} parent=1 // pred_region
      _
    $region25: #{cnn_forward.7} parent=1 // pred_fallthru
      _
    // Predicated region
    $region26: #{cnn_forward.7} parent=1 // pred_check
      _
    $region27: #{cnn_forward.7} parent=1 // pred_check_branch
      %26 = sbr.rel (0) target = $region29
    $region28: #{cnn_forward.7} parent=1 // pred_region
      _
    $region29: #{cnn_forward.7} parent=1 // pred_fallthru
      _
    %v27 = vld [vmem:[%s0] sm:$0xf]
    %v28 = vld [vmem:[%s1] sm:$0xff]
    %v29 = vld [vmem:[%s1 + $0x8] sm:$0xff]
    %v30 = vld [vmem:[%s1 + $0x10] sm:$0xff]
    %v31 = vld [vmem:[%s1 + $0x18] sm:$0xff]
    %v32 = vld [vmem:[%s1 + $0x20] sm:$0xff]
    %v33 = vld [vmem:[%s1 + $0x28] sm:$0xff]
    %v34 = vld [vmem:[%s1 + $0x30] sm:$0xff]
    %v35 = vld [vmem:[%s1 + $0x38] sm:$0xff]
    %v36 = vld [vmem:[%s1 + $0x40] sm:$0xff]
    %v37 = vld [vmem:[%s1 + $0x48] sm:$0xff]
    %v38 = vld [vmem:[%s1 + $0x50] sm:$0xff]
    %v39 = vld [vmem:[%s1 + $0x58] sm:$0xff]
    %v40 = vld [vmem:[%s1 + $0x60] sm:$0xff]
    %v41 = vld [vmem:[%s1 + $0x68] sm:$0xff]
    %v42 = vld [vmem:[%s1 + $0x70] sm:$0xff]
    %v43 = vld [vmem:[%s1 + $0x78] sm:$0xff]
    %v44 = vld [vmem:[%s1 + $0x80] sm:$0xff]
    %v45 = vld [vmem:[%s1 + $0x88] sm:$0xff]
    %v46 = vld [vmem:[%s1 + $0x90] sm:$0xff]
    %v47 = vld [vmem:[%s1 + $0x98] sm:$0xff]
    %v48 = vld [vmem:[%s1 + $0xa0] sm:$0xff]
    %v49 = vld [vmem:[%s1 + $0xa8] sm:$0xff]
    %v50 = vld [vmem:[%s1 + $0xb0] sm:$0xff]
    %v51 = vld [vmem:[%s1 + $0xb8] sm:$0xff]
    %v52 = vld [vmem:[%s1 + $0xc0] sm:$0xff]
    %v53 = vld [vmem:[%s1 + $0xc8] sm:$0xff]
    %v54 = vld [vmem:[%s1 + $0xd0] sm:$0xff]
    %v55 = vld [vmem:[%s2] sm:$0x1]
    %v57 = vperm.slane %v55, 0
    %60 = vst [vmem:[#allocation1] ss:$4 sm:$0xff] %v27
    %v61 = vld.sshfl [vmem:[#allocation1] sm:$0xff pattern:$0x73625140]
    %v62 = vld.sshfl [vmem:[#allocation1 + $0x8] sm:$0xff pattern:$0x73625140]
    %vm64 = vcmask 719872
    %v65 = vsel %vm64, %v62, 0
    %67 = vmatpush.msra.mxu0 %v43
    %68 = vmatpush.msra.mxu0 %v42
    %69 = vmatpush.msra.mxu0 %v41
    %70 = vmatpush.msra.mxu0 %v40
    %71 = vmatpush.msra.mxu0 %v39
    %72 = vmatpush.msra.mxu0 %v38
    %73 = vmatpush.msra.mxu0 %v37
    %74 = vmatpush.msra.mxu0 %v36
    %75 = vmatpush.msra.mxu0 %v35
    %76 = vmatpush.msra.mxu0 %v34
    %77 = vmatpush.msra.mxu0 %v33
    %78 = vmatpush.msra.mxu0 %v32
    %79 = vmatpush.msra.mxu0 %v31
    %80 = vmatpush.msra.mxu0 %v30
    %81 = vmatpush.msra.mxu0 %v29
    %82 = vmatpush.msra.mxu0 %v28
    %83 = vmatmul.f32.gmra.mxu0 %v61
    %v84 = vpop.f32.mrf.mxu0
    %v85 = vadd.f32 %v57, %v84
    %86 = vdwg.mxu0
    %87 = vmatpush.msra.mxu0 0.0
    %88 = vmatpush.msra.mxu0 0.0
    %89 = vmatpush.msra.mxu0 0.0
    %90 = vmatpush.msra.mxu0 0.0
    %91 = vmatpush.msra.mxu0 0.0
    %92 = vmatpush.msra.mxu0 %v54
    %93 = vmatpush.msra.mxu0 %v53
    %94 = vmatpush.msra.mxu0 %v52
    %95 = vmatpush.msra.mxu0 %v51
    %96 = vmatpush.msra.mxu0 %v50
    %97 = vmatpush.msra.mxu0 %v49
    %98 = vmatpush.msra.mxu0 %v48
    %99 = vmatpush.msra.mxu0 %v47
    %100 = vmatpush.msra.mxu0 %v46
    %101 = vmatpush.msra.mxu0 %v45
    %102 = vmatpush.msra.mxu0 %v44
    %103 = vmatmul.f32.gmra.mxu0 %v65
    %v104 = vpop.f32.mrf.mxu0
    %v105 = vadd.f32 %v85, %v104
    %106 = vdwg.mxu0
    %v107 = vmax.f32 %v105, 0.0
    %v108 = vld [vmem:[%s3] sm:$0xff]
    %v109 = vld [vmem:[%s3 + $0x8] sm:$0xff]
    %v110 = vld [vmem:[%s3 + $0x10] sm:$0xff]
    %v111 = vld [vmem:[%s3 + $0x18] sm:$0xff]
    %v112 = vld [vmem:[%s3 + $0x20] sm:$0xff]
    %v113 = vld [vmem:[%s3 + $0x28] sm:$0xff]
    %v114 = vld [vmem:[%s3 + $0x30] sm:$0xff]
    %v115 = vld [vmem:[%s3 + $0x38] sm:$0xff]
    %v116 = vld [vmem:[%s4] sm:$0x1]
    %v118 = vperm.slane %v116, 0
    %vm120 = vcmask 523264
    %v122 = vsel %vm120, %v107, 0
    %124 = vmatpush.msra.mxu0 0.0
    %125 = vmatpush.msra.mxu0 0.0
    %126 = vmatpush.msra.mxu0 0.0
    %127 = vmatpush.msra.mxu0 0.0
    %128 = vmatpush.msra.mxu0 0.0
    %129 = vmatpush.msra.mxu0 0.0
    %130 = vmatpush.msra.mxu0 0.0
    %131 = vmatpush.msra.mxu0 0.0
    %132 = vmatpush.msra.mxu0 %v115
    %133 = vmatpush.msra.mxu0 %v114
    %134 = vmatpush.msra.mxu0 %v113
    %135 = vmatpush.msra.mxu0 %v112
    %136 = vmatpush.msra.mxu0 %v111
    %137 = vmatpush.msra.mxu0 %v110
    %138 = vmatpush.msra.mxu0 %v109
    %139 = vmatpush.msra.mxu0 %v108
    %140 = vmatmul.f32.gmra.mxu0 %v122
    %v141 = vpop.f32.mrf.mxu0
    %v142 = vadd.f32 %v118, %v141
    %143 = vdwg.mxu0
    %v144 = vmax.f32 %v142, 0.0
    %v145 = vld [vmem:[%s5] sm:$0xff]
    %v146 = vld [vmem:[%s5 + $0x8] sm:$0xff]
    %v147 = vld [vmem:[%s6] sm:$0x1]
    %v149 = vperm.slane %v147, 0
    %vm151 = vcmask 130048
    %v153 = vsel %vm151, %v144, 0
    %155 = vmatpush.msra.mxu0 0.0
    %156 = vmatpush.msra.mxu0 0.0
    %157 = vmatpush.msra.mxu0 0.0
    %158 = vmatpush.msra.mxu0 0.0
    %159 = vmatpush.msra.mxu0 0.0
    %160 = vmatpush.msra.mxu0 0.0
    %161 = vmatpush.msra.mxu0 0.0
    %162 = vmatpush.msra.mxu0 0.0
    %163 = vmatpush.msra.mxu0 0.0
    %164 = vmatpush.msra.mxu0 0.0
    %165 = vmatpush.msra.mxu0 0.0
    %166 = vmatpush.msra.mxu0 0.0
    %167 = vmatpush.msra.mxu0 0.0
    %168 = vmatpush.msra.mxu0 0.0
    %169 = vmatpush.msra.mxu0 %v146
    %170 = vmatpush.msra.mxu0 %v145
    %171 = vmatmul.f32.gmra.mxu0 %v153
    %v172 = vpop.f32.mrf.mxu0
    %v173 = vadd.f32 %v149, %v172
    %174 = vdwg.mxu0
    %v175 = vsub.f32 0.0, %v173
    %v176 = vmul.f32 %v175, 1.442695
    %v177 = vpow.pop %v176
    %v178 = vadd.f32 %v177, 1.0
    %v179 = vrcp.pop %v178
    %v180 = vmul.f32 %v178, %v179
    %v181 = vsub.f32 1.0, %v180
    %v182 = vmul.f32 %v179, %v181
    %v183 = vadd.f32 %v179, %v182
    %vm184 = vweird.f32 %v178
    %vm185 = vweird.f32 %v179
    %vm186 = vmor %vm184, %vm185
    %v187 = vsel %vm186, %v179, %v183
    %v188 = vand.u32 2147483647, %v178
    %vm189 = vcmp.eq.f32.partialorder %v188, 8.507059e+37
    %v190 = vand.u32 %v178, 2147483648
    %v191 = vor.u32 1.1754944e-38, %v190
    %v192 = vsel %vm189, %v191, %v187
    %vm193 = vcmask 9216
    %194 = vst.msk [vmem:[#allocation2] sm:$0x3] %vm193, %v192
    // Predicated region
    $region30: #{cnn_forward.7} parent=1 // pred_check
      _
    $region31: #{cnn_forward.7} parent=1 // pred_check_branch
      %196 = sbr.rel (0) target = $region33
    $region32: #{cnn_forward.7} parent=1 // pred_region
      %198 = vsyncadd [#allocation3], 0
      %s200 = sshll.u32 [#allocation2], 4
      %s201 = int_to_ptr.vmem [resolvable:$true] %s200
      %s202 = sshll.u32 %s7, 4
      %s203 = int_to_ptr.hbm [resolvable:$true] %s202
      %205 = dma.vmem_to_hbm [thread:$0]  %s201, 32, %s203, [#allocation3]
    $region33: #{cnn_forward.7} parent=1 // pred_fallthru
      _
    // Predicated region
    $region34: #{cnn_forward.7} parent=1 // pred_check
      _
    $region35: #{cnn_forward.7} parent=1 // pred_check_branch
      %207 = sbr.rel (0) target = $region37
    $region36: #{cnn_forward.7} parent=1 // pred_region
      %209 = dma.done [#allocation3], 32
    $region37: #{cnn_forward.7} parent=1 // pred_fallthru
      _
    %210 = vsyncpa [#allocation3], 1

</llo_original>
